<compile_context>
chip_gen: v6e
topology: v6e:2x2x1
jax: 0.10.0
libtpu: 0.0.40
codegen_flags: <defaults>
</compile_context>

<pallas_src>
import functools

import jax
import jax.numpy as jnp
from jax.experimental import pallas as pl
from jax.experimental.pallas import tpu as pltpu

REL_NAMES = ['DDI', 'DPI', 'PPI']
# canonical etypes: (src node type, relation, dst node type)
CANONICAL_ETYPES = [('drug', 'DDI', 'drug'),
                    ('drug', 'DPI', 'protein'),
                    ('protein', 'PPI', 'protein')]

IN_FEATURES = 16
OUT_FEATURES = 8
E_PAD = 128          # one full vreg lane width per etype row
E_HALF = 64          # pos edges in lanes [0:E_HALF), neg edges in [E_HALF:E_PAD)


# ----------------------------------------------------------------------------
# Fused Pallas kernel: HeteroGraphConv + ScorePredictor(pos) + ScorePredictor(neg)
# ----------------------------------------------------------------------------
def _fused_model_kernel(x_all_ref, w_all_ref, a_stack_ref, b_all_ref, edge_idx_ref,
                        scores_ref, *, n_drug, f_out):
    f32 = jnp.float32
    n_all = x_all_ref.shape[0]          # drug + protein nodes (combined space)
    e_pad = edge_idx_ref.shape[1]
    n_out_rows = scores_ref.shape[0]

    # 1) one projection matmul for all three relations (F_in -> 3*F_out columns)
    xw_all = jnp.dot(x_all_ref[...], w_all_ref[...], preferred_element_type=f32)

    # 2) stack the per-relation projected features along the contraction dim
    xw_stacked = jnp.concatenate(
        [xw_all[:n_drug, 0:f_out],                  # drug    @ W_ddi
         xw_all[:n_drug, f_out:2 * f_out],          # drug    @ W_dpi
         xw_all[n_drug:, 2 * f_out:3 * f_out]],     # protein @ W_ppi
        axis=0)                                     # (2*n_drug + n_prot, f_out)

    # 3) one aggregation matmul against the block-stacked, pre-normalized adjacency.
    #    The HeteroGraphConv 'sum' over relations sharing a dst type falls out of the
    #    contraction; per-dst-type bias is pre-packed into b_all.
    h_all = jnp.dot(a_stack_ref[...], xw_stacked,
                    preferred_element_type=f32) + b_all_ref[...]      # (n_all, f_out)

    # 4) one gram matrix over the combined node space:
    #    score[e] = <h[src_e], h[dst_e]> = G[src_e, dst_e]
    g = jax.lax.dot_general(h_all, h_all, (((1,), (1,)), ((), ())),
                            preferred_element_type=f32)               # (n_all, n_all)

    # 5) per-etype edge scores via one-hot selection (iota hoisted out of the loop).
    #    Row k packs pos scores in lanes [0:E_HALF) and neg scores in [E_HALF:E_PAD).
    iota = jax.lax.broadcasted_iota(jnp.int32, (n_all, e_pad), 0)
    rows = []
    for k in range(3):
        sel_u = (iota == edge_idx_ref[k:k + 1, :]).astype(f32)        # (n_all, e_pad)
        sel_v = (iota == edge_idx_ref[k + 3:k + 4, :]).astype(f32)
        gv = jnp.dot(g, sel_v, preferred_element_type=f32)            # (n_all, e_pad)
        rows.append(jnp.sum(sel_u * gv, axis=0, keepdims=True))       # (1, e_pad)

    # lane-dense (8,128) tile: 3 score rows + one zero block, single full-tile store
    scores_ref[...] = jnp.concatenate(
        rows + [jnp.zeros((n_out_rows - 3, e_pad), f32)], axis=0)


# ----------------------------------------------------------------------------
# Hoisted preprocessing: static graph structure + packed parameters
# ----------------------------------------------------------------------------
def build_graph_tensors(block_edges, pos_edges, neg_edges, num_nodes):
    """Graph-structure-only preprocessing (done once per graph)."""
    f32 = jnp.float32
    n_d, n_p = num_nodes['drug'], num_nodes['protein']

    # transposed adjacency per relation, pre-normalized: rows scaled by 1/clamp(in_deg,1)
    adjt = {}
    for (st, et, dt) in CANONICAL_ETYPES:
        src, dst = block_edges[et]
        ns, nd = num_nodes[st], num_nodes[dt]
        a = jnp.zeros((nd, ns), f32).at[dst, src].add(1.0)   # multi-edges counted
        deg = jnp.maximum(a.sum(axis=1, keepdims=True), 1.0)
        adjt[et] = a / deg

    # block-stacked aggregation operator:
    #   h_all = a_stack @ vstack(x_drug@W_ddi, x_drug@W_dpi, x_prot@W_ppi)
    a_stack = jnp.zeros((n_d + n_p, 2 * n_d + n_p), f32)
    a_stack = a_stack.at[:n_d, :n_d].set(adjt['DDI'])
    a_stack = a_stack.at[n_d:, n_d:2 * n_d].set(adjt['DPI'])
    a_stack = a_stack.at[n_d:, 2 * n_d:].set(adjt['PPI'])

    # edge endpoint ids in the COMBINED node space (drug: [0,n_d), protein: [n_d, n_d+n_p)),
    # pos edges packed into lanes [0:E_HALF), neg edges into [E_HALF:E_PAD).
    node_off = {'drug': 0, 'protein': n_d}
    src_rows, dst_rows, n_pos, n_neg = [], [], [], []
    for (st, et, dt) in CANONICAL_ETYPES:
        ps, pd = pos_edges[et]
        qs, qd = neg_edges[et]
        npos, nneg = int(ps.shape[0]), int(qs.shape[0])
        assert npos <= E_HALF and nneg <= E_HALF, "edge count exceeds packed lane budget"
        n_pos.append(npos)
        n_neg.append(nneg)
        s = jnp.zeros((E_PAD,), jnp.int32)
        d = jnp.zeros((E_PAD,), jnp.int32)
        s = s.at[:npos].set(ps.astype(jnp.int32) + node_off[st])
        s = s.at[E_HALF:E_HALF + nneg].set(qs.astype(jnp.int32) + node_off[st])
        d = d.at[:npos].set(pd.astype(jnp.int32) + node_off[dt])
        d = d.at[E_HALF:E_HALF + nneg].set(qd.astype(jnp.int32) + node_off[dt])
        src_rows.append(s)
        dst_rows.append(d)
    edge_idx = jnp.stack(src_rows + dst_rows, axis=0)   # (6, E_PAD): rows 0-2 src, 3-5 dst

    return dict(a_stack=a_stack, edge_idx=edge_idx, n_pos=n_pos, n_neg=n_neg,
                n_drug=n_d, n_protein=n_p)


def pack_params(params, num_nodes):
    """Parameter packing (done once): W's column-concatenated, per-dst-type bias rows."""
    n_d, n_p = num_nodes['drug'], num_nodes['protein']
    w_all = jnp.concatenate([params[r][0] for r in REL_NAMES], axis=1)          # (16, 24)
    b_drug = jnp.broadcast_to(params['DDI'][1].reshape(1, -1), (n_d, OUT_FEATURES))
    b_prot = jnp.broadcast_to((params['DPI'][1] + params['PPI'][1]).reshape(1, -1),
                              (n_p, OUT_FEATURES))
    b_all = jnp.concatenate([b_drug, b_prot], axis=0)                           # (22, 8)
    return w_all, b_all


# ----------------------------------------------------------------------------
# Forward: one fused pallas_call
# ----------------------------------------------------------------------------
def model_forward(graph, packed_params, x):
    w_all, b_all = packed_params
    x_all = jnp.concatenate([x['drug'], x['protein']], axis=0)      # (n_drug+n_prot, F_in)

    kernel = functools.partial(_fused_model_kernel,
                               n_drug=graph['n_drug'], f_out=OUT_FEATURES)
    out = pl.pallas_call(
        kernel,
        out_shape=jax.ShapeDtypeStruct((8, E_PAD), jnp.float32),
        in_specs=[pl.BlockSpec(memory_space=pltpu.MemorySpace.VMEM)] * 5,
        out_specs=pl.BlockSpec(memory_space=pltpu.MemorySpace.VMEM),
    )(x_all, w_all, graph['a_stack'], b_all, graph['edge_idx'])

    pos_scores, neg_scores = {}, {}
    for k, cet in enumerate(CANONICAL_ETYPES):
        pos_scores[cet] = out[k, :graph['n_pos'][k]].reshape(-1, 1)
        neg_scores[cet] = out[k, E_HALF:E_HALF + graph['n_neg'][k]].reshape(-1, 1)
    return pos_scores, neg_scores


# ----------------------------------------------------------------------------
# Pure-JAX reference (mirrors DGL semantics) for a correctness spot-check
# ----------------------------------------------------------------------------
def reference_forward(block_edges, pos_edges, neg_edges, x, params, num_nodes):
    contrib = {nt: [] for nt in num_nodes}
    for (st, et, dt) in CANONICAL_ETYPES:
        src, dst = block_edges[et]
        ns, nd = num_nodes[st], num_nodes[dt]
        adj_t = jnp.zeros((nd, ns), jnp.float32).at[dst, src].add(1.0)
        deg = jnp.maximum(adj_t.sum(axis=1, keepdims=True), 1.0)
        w, b = params[et]
        contrib[dt].append((adj_t @ x[st]) @ w / deg + b)
    h = {nt: sum(hs[1:], hs[0]) for nt, hs in contrib.items()}

    def scores(edges):
        out = {}
        for (st, et, dt) in CANONICAL_ETYPES:
            src, dst = edges[et]
            out[(st, et, dt)] = jnp.sum(h[st][src] * h[dt][dst], axis=-1, keepdims=True)
        return out
    return scores(pos_edges), scores(neg_edges)


# ----------------------------------------------------------------------------
# Deterministic setup + run
# ----------------------------------------------------------------------------
def _rand_edges(key, n_src, n_dst, n_edges):
    ks, kd = jax.random.split(key)
    src = jax.random.randint(ks, (n_edges,), 0, n_src, dtype=jnp.int32)
    dst = jax.random.randint(kd, (n_edges,), 0, n_dst, dtype=jnp.int32)
    return src, dst


if __name__ == "__main__":
    jax.config.update("jax_default_matmul_precision", "highest")

    key = jax.random.PRNGKey(0)
    num_nodes = {'drug': 12, 'protein': 10}

    # parameters (deterministic): one GraphConv per relation
    params = {}
    for i, rel in enumerate(REL_NAMES):
        kw, kb = jax.random.split(jax.random.fold_in(key, i))
        w = 0.1 * jax.random.normal(kw, (IN_FEATURES, OUT_FEATURES), jnp.float32)
        b = 0.01 * jax.random.normal(kb, (1, OUT_FEATURES), jnp.float32)
        params[rel] = (w, b)

    # node features
    kx_d, kx_p, kg = jax.random.split(jax.random.fold_in(key, 100), 3)
    x = {'drug': jax.random.normal(kx_d, (num_nodes['drug'], IN_FEATURES), jnp.float32),
         'protein': jax.random.normal(kx_p, (num_nodes['protein'], IN_FEATURES), jnp.float32)}

    # synthetic graphs: blocks[0] (message-flow graph), pos_g, neg_g
    def make_graph(seed_key, n_edges):
        edges = {}
        for j, (srctype, etype, dsttype) in enumerate(CANONICAL_ETYPES):
            edges[etype] = _rand_edges(jax.random.fold_in(seed_key, j),
                                       num_nodes[srctype], num_nodes[dsttype], n_edges)
        return edges

    block_edges = make_graph(jax.random.fold_in(kg, 0), 24)
    pos_edges = make_graph(jax.random.fold_in(kg, 1), 16)
    neg_edges = make_graph(jax.random.fold_in(kg, 2), 16)

    # hoisted preprocessing (graph structure + parameter packing), then ONE fused launch
    graph = build_graph_tensors(block_edges, pos_edges, neg_edges, num_nodes)
    packed = pack_params(params, num_nodes)
    pos_scores, neg_scores = model_forward(graph, packed, x)
    jax.block_until_ready((pos_scores, neg_scores))

    # sanity: shapes match DGL's (num_edges, 1) per canonical etype, and values
    # match the pure-JAX reference of the original module.
    ref_pos, ref_neg = reference_forward(block_edges, pos_edges, neg_edges,
                                         x, params, num_nodes)
    for cet in CANONICAL_ETYPES:
        assert pos_scores[cet].shape == (16, 1)
        assert neg_scores[cet].shape == (16, 1)
        assert jnp.allclose(pos_scores[cet], ref_pos[cet], rtol=2e-2, atol=2e-2)
        assert jnp.allclose(neg_scores[cet], ref_neg[cet], rtol=2e-2, atol=2e-2)

    print("KERNEL_OK")
</pallas_src>

<mosaic_0001>
module attributes {stable_mosaic.version = 11 : i64} {
  func.func @_fused_model_kernel(%arg0: memref<22x16xf32, #tpu.memory_space<vmem>>, %arg1: memref<16x24xf32, #tpu.memory_space<vmem>>, %arg2: memref<22x34xf32, #tpu.memory_space<vmem>>, %arg3: memref<22x8xf32, #tpu.memory_space<vmem>>, %arg4: memref<6x128xi32, #tpu.memory_space<vmem>>, %arg5: memref<8x128xf32, #tpu.memory_space<vmem>>) attributes {dimension_semantics = [], scalar_prefetch = 0 : i64, scratch_operands = 0 : i64, tpu.core_type = #tpu.core_type<tc>} {
    %c0 = arith.constant 0 : index
    %c0_0 = arith.constant 0 : index
    %0 = vector.load %arg0[%c0, %c0_0] : memref<22x16xf32, #tpu.memory_space<vmem>>, vector<22x16xf32>
    %c0_1 = arith.constant 0 : index
    %c0_2 = arith.constant 0 : index
    %1 = vector.load %arg1[%c0_1, %c0_2] : memref<16x24xf32, #tpu.memory_space<vmem>>, vector<16x24xf32>
    %cst = arith.constant dense<0.000000e+00> : vector<22x24xf32>
    %2 = tpu.matmul %0, %1, %cst {dimension_numbers = #tpu.dot_dimension_numbers<[1], [0], [0], [1], [0, 0, 1, 1], [], []>, precision = #tpu.contract_precision<fp32>} : vector<22x16xf32>, vector<16x24xf32>, vector<22x24xf32> -> vector<22x24xf32>
    %3 = vector.extract_strided_slice %2 {offsets = [0, 0], sizes = [12, 8], strides = [1, 1]} : vector<22x24xf32> to vector<12x8xf32>
    %4 = vector.extract_strided_slice %2 {offsets = [0, 8], sizes = [12, 8], strides = [1, 1]} : vector<22x24xf32> to vector<12x8xf32>
    %5 = vector.extract_strided_slice %2 {offsets = [12, 16], sizes = [10, 8], strides = [1, 1]} : vector<22x24xf32> to vector<10x8xf32>
    %6 = tpu.concatenate %3, %4, %5 in 0 : vector<12x8xf32>, vector<12x8xf32>, vector<10x8xf32> -> vector<34x8xf32>
    %c0_3 = arith.constant 0 : index
    %c0_4 = arith.constant 0 : index
    %7 = vector.load %arg2[%c0_3, %c0_4] : memref<22x34xf32, #tpu.memory_space<vmem>>, vector<22x34xf32>
    %cst_5 = arith.constant dense<0.000000e+00> : vector<22x8xf32>
    %8 = tpu.matmul %7, %6, %cst_5 {dimension_numbers = #tpu.dot_dimension_numbers<[1], [0], [0], [1], [0, 0, 1, 1], [], []>, precision = #tpu.contract_precision<fp32>} : vector<22x34xf32>, vector<34x8xf32>, vector<22x8xf32> -> vector<22x8xf32>
    %c0_6 = arith.constant 0 : index
    %c0_7 = arith.constant 0 : index
    %9 = vector.load %arg3[%c0_6, %c0_7] : memref<22x8xf32, #tpu.memory_space<vmem>>, vector<22x8xf32>
    %10 = arith.addf %8, %9 : vector<22x8xf32>
    %cst_8 = arith.constant dense<0.000000e+00> : vector<22x22xf32>
    %11 = tpu.matmul %10, %10, %cst_8 {dimension_numbers = #tpu.dot_dimension_numbers<[1], [1], [0], [0], [0, 0, 1, 0], [], []>, precision = #tpu.contract_precision<fp32>} : vector<22x8xf32>, vector<22x8xf32>, vector<22x22xf32> -> vector<22x22xf32>
    %12 = tpu.iota {dimensions = array<i32: 0>} : vector<22x128xi32>
    %c0_9 = arith.constant 0 : index
    %c0_10 = arith.constant 0 : index
    %13 = vector.load %arg4[%c0_9, %c0_10] : memref<6x128xi32, #tpu.memory_space<vmem>>, vector<1x128xi32>
    %14 = vector.broadcast %13 : vector<1x128xi32> to vector<22x128xi32>
    %15 = arith.cmpi eq, %12, %14 : vector<22x128xi32>
    %16 = arith.extui %15 : vector<22x128xi1> to vector<22x128xi32>
    %17 = arith.sitofp %16 : vector<22x128xi32> to vector<22x128xf32>
    %c3 = arith.constant 3 : index
    %c0_11 = arith.constant 0 : index
    %18 = vector.load %arg4[%c3, %c0_11] : memref<6x128xi32, #tpu.memory_space<vmem>>, vector<1x128xi32>
    %19 = vector.broadcast %18 : vector<1x128xi32> to vector<22x128xi32>
    %20 = arith.cmpi eq, %12, %19 : vector<22x128xi32>
    %21 = arith.extui %20 : vector<22x128xi1> to vector<22x128xi32>
    %22 = arith.sitofp %21 : vector<22x128xi32> to vector<22x128xf32>
    %cst_12 = arith.constant dense<0.000000e+00> : vector<22x128xf32>
    %23 = tpu.matmul %11, %22, %cst_12 {dimension_numbers = #tpu.dot_dimension_numbers<[1], [0], [0], [1], [0, 0, 1, 1], [], []>, precision = #tpu.contract_precision<fp32>} : vector<22x22xf32>, vector<22x128xf32>, vector<22x128xf32> -> vector<22x128xf32>
    %24 = arith.mulf %17, %23 : vector<22x128xf32>
    %cst_13 = arith.constant dense<0.000000e+00> : vector<128xf32>
    %25 = vector.multi_reduction <add>, %24, %cst_13 [0] : vector<22x128xf32> to vector<128xf32>
    %26 = vector.shape_cast %25 : vector<128xf32> to vector<1x128xf32>
    %c1 = arith.constant 1 : index
    %c0_14 = arith.constant 0 : index
    %27 = vector.load %arg4[%c1, %c0_14] : memref<6x128xi32, #tpu.memory_space<vmem>>, vector<1x128xi32>
    %28 = vector.broadcast %27 : vector<1x128xi32> to vector<22x128xi32>
    %29 = arith.cmpi eq, %12, %28 : vector<22x128xi32>
    %30 = arith.extui %29 : vector<22x128xi1> to vector<22x128xi32>
    %31 = arith.sitofp %30 : vector<22x128xi32> to vector<22x128xf32>
    %c4 = arith.constant 4 : index
    %c0_15 = arith.constant 0 : index
    %32 = vector.load %arg4[%c4, %c0_15] : memref<6x128xi32, #tpu.memory_space<vmem>>, vector<1x128xi32>
    %33 = vector.broadcast %32 : vector<1x128xi32> to vector<22x128xi32>
    %34 = arith.cmpi eq, %12, %33 : vector<22x128xi32>
    %35 = arith.extui %34 : vector<22x128xi1> to vector<22x128xi32>
    %36 = arith.sitofp %35 : vector<22x128xi32> to vector<22x128xf32>
    %cst_16 = arith.constant dense<0.000000e+00> : vector<22x128xf32>
    %37 = tpu.matmul %11, %36, %cst_16 {dimension_numbers = #tpu.dot_dimension_numbers<[1], [0], [0], [1], [0, 0, 1, 1], [], []>, precision = #tpu.contract_precision<fp32>} : vector<22x22xf32>, vector<22x128xf32>, vector<22x128xf32> -> vector<22x128xf32>
    %38 = arith.mulf %31, %37 : vector<22x128xf32>
    %cst_17 = arith.constant dense<0.000000e+00> : vector<128xf32>
    %39 = vector.multi_reduction <add>, %38, %cst_17 [0] : vector<22x128xf32> to vector<128xf32>
    %40 = vector.shape_cast %39 : vector<128xf32> to vector<1x128xf32>
    %c2 = arith.constant 2 : index
    %c0_18 = arith.constant 0 : index
    %41 = vector.load %arg4[%c2, %c0_18] : memref<6x128xi32, #tpu.memory_space<vmem>>, vector<1x128xi32>
    %42 = vector.broadcast %41 : vector<1x128xi32> to vector<22x128xi32>
    %43 = arith.cmpi eq, %12, %42 : vector<22x128xi32>
    %44 = arith.extui %43 : vector<22x128xi1> to vector<22x128xi32>
    %45 = arith.sitofp %44 : vector<22x128xi32> to vector<22x128xf32>
    %c5 = arith.constant 5 : index
    %c0_19 = arith.constant 0 : index
    %46 = vector.load %arg4[%c5, %c0_19] : memref<6x128xi32, #tpu.memory_space<vmem>>, vector<1x128xi32>
    %47 = vector.broadcast %46 : vector<1x128xi32> to vector<22x128xi32>
    %48 = arith.cmpi eq, %12, %47 : vector<22x128xi32>
    %49 = arith.extui %48 : vector<22x128xi1> to vector<22x128xi32>
    %50 = arith.sitofp %49 : vector<22x128xi32> to vector<22x128xf32>
    %cst_20 = arith.constant dense<0.000000e+00> : vector<22x128xf32>
    %51 = tpu.matmul %11, %50, %cst_20 {dimension_numbers = #tpu.dot_dimension_numbers<[1], [0], [0], [1], [0, 0, 1, 1], [], []>, precision = #tpu.contract_precision<fp32>} : vector<22x22xf32>, vector<22x128xf32>, vector<22x128xf32> -> vector<22x128xf32>
    %52 = arith.mulf %45, %51 : vector<22x128xf32>
    %cst_21 = arith.constant dense<0.000000e+00> : vector<128xf32>
    %53 = vector.multi_reduction <add>, %52, %cst_21 [0] : vector<22x128xf32> to vector<128xf32>
    %54 = vector.shape_cast %53 : vector<128xf32> to vector<1x128xf32>
    %cst_22 = arith.constant 0.000000e+00 : f32
    %55 = vector.broadcast %cst_22 : f32 to vector<5x128xf32>
    %56 = tpu.concatenate %26, %40, %54, %55 in 0 : vector<1x128xf32>, vector<1x128xf32>, vector<1x128xf32>, vector<5x128xf32> -> vector<8x128xf32>
    %c0_23 = arith.constant 0 : index
    %c0_24 = arith.constant 0 : index
    %57 = vector.load %arg5[%c0_23, %c0_24] : memref<8x128xf32, #tpu.memory_space<vmem>>, vector<8x128xf32>
    tpu.vector_store %arg5[%c0_23, %c0_24], %56 {strides = array<i32>} : memref<8x128xf32, #tpu.memory_space<vmem>>, vector<8x128xf32>,
    return
  }
}

</mosaic_0001>

<llo_original>
// kernel: tpu_custom_call.1
$region0: #{tpu_custom_call.1}
  #allocation0 [shape = 'u32[]', space=smem, size = 0x4, offset = 0x4, fixed_abs, tag = 'smem constant byte address 0x4 - core index']
  #allocation1 [shape = 'u32[144,128]{1,0:T(1,128)}', space=vmem, size = 0x12000, scoped, tag = 'internal scratch']
  %s0 = inlined_call_operand.vmem [shape: f32[22,16], index: 0, kind: input, shape index: {}]
  %s1 = inlined_call_operand.vmem [shape: f32[16,24], index: 1, kind: input, shape index: {}]
  %s2 = inlined_call_operand.vmem [shape: f32[22,34], index: 2, kind: input, shape index: {}]
  %s3 = inlined_call_operand.vmem [shape: f32[22,8], index: 3, kind: input, shape index: {}]
  %s4 = inlined_call_operand.vmem [shape: s32[6,128], index: 4, kind: input, shape index: {}]
  %s5 = inlined_call_operand.hbm [shape: f32[8,128], index: 5, kind: output, shape index: {}]
  %s6 = sld [smem:[#allocation0]]
  $region30: #{tpu_custom_call.1} parent=0
    _
  %s8 = ssub.s32 1, %s6
  %s9 = scalar_select 0, %s8, %s6
  $region1: #{tpu_custom_call.1} parent=0
    #allocation2 [shape = 'u8[4096]{0}', space=vmem, size = 0x1000, scoped, tag = 'output window, operand 0, single buffered']
    #allocation3 [shape = 's32[1]{0}', space=sflag, size = 0x4, scoped, tag = 'scoped memory for tpu_custom_call.1']
    %10 = vsyncpa [#allocation3], 0
    // Predicated region
    $region2: #{tpu_custom_call.1} parent=1 // pred_check
      _
    $region3: #{tpu_custom_call.1} parent=1 // pred_check_branch
      %12 = sbr.rel (0) target = $region5
    $region4: #{tpu_custom_call.1} parent=1 // pred_region
      _
    $region5: #{tpu_custom_call.1} parent=1 // pred_fallthru
      _
    // Predicated region
    $region6: #{tpu_custom_call.1} parent=1 // pred_check
      _
    $region7: #{tpu_custom_call.1} parent=1 // pred_check_branch
      %14 = sbr.rel (0) target = $region9
    $region8: #{tpu_custom_call.1} parent=1 // pred_region
      _
    $region9: #{tpu_custom_call.1} parent=1 // pred_fallthru
      _
    // Predicated region
    $region10: #{tpu_custom_call.1} parent=1 // pred_check
      _
    $region11: #{tpu_custom_call.1} parent=1 // pred_check_branch
      %16 = sbr.rel (0) target = $region13
    $region12: #{tpu_custom_call.1} parent=1 // pred_region
      _
    $region13: #{tpu_custom_call.1} parent=1 // pred_fallthru
      _
    // Predicated region
    $region14: #{tpu_custom_call.1} parent=1 // pred_check
      _
    $region15: #{tpu_custom_call.1} parent=1 // pred_check_branch
      %18 = sbr.rel (0) target = $region17
    $region16: #{tpu_custom_call.1} parent=1 // pred_region
      _
    $region17: #{tpu_custom_call.1} parent=1 // pred_fallthru
      _
    // Predicated region
    $region18: #{tpu_custom_call.1} parent=1 // pred_check
      _
    $region19: #{tpu_custom_call.1} parent=1 // pred_check_branch
      %20 = sbr.rel (0) target = $region21
    $region20: #{tpu_custom_call.1} parent=1 // pred_region
      _
    $region21: #{tpu_custom_call.1} parent=1 // pred_fallthru
      _
    %v21 = vld [vmem:[%s0] sm:$0xff]
    %v22 = vld [vmem:[%s0 + $0x8] sm:$0xff]
    %v23 = vld [vmem:[%s0 + $0x10] sm:$0x3f]
    %v24 = vld [vmem:[%s1] sm:$0xff]
    %v25 = vld [vmem:[%s1 + $0x8] sm:$0xff]
    %vm26 = vcmask 130048
    %v28 = vsel %vm26, %v21, 0
    %v31 = vsel %vm26, %v22, 0
    %v34 = vsel %vm26, %v23, 0
    %36 = vmatprep.subr.mxu0 0.0
    %37 = vmatpush1.msra.mxu0 0.0
    %38 = vmatprep.subr.mxu0 0.0
    %39 = vmatpush1.msra.mxu0 0.0
    %40 = vmatprep.subr.mxu0 0.0
    %41 = vmatpush1.msra.mxu0 0.0
    %42 = vmatprep.subr.mxu0 0.0
    %43 = vmatpush1.msra.mxu0 0.0
    %44 = vmatprep.subr.mxu0 0.0
    %45 = vmatpush1.msra.mxu0 0.0
    %46 = vmatprep.subr.mxu0 0.0
    %47 = vmatpush1.msra.mxu0 0.0
    %48 = vmatprep.subr.mxu0 0.0
    %49 = vmatpush1.msra.mxu0 0.0
    %50 = vmatprep.subr.mxu0 0.0
    %51 = vmatpush1.msra.mxu0 0.0
    %52 = vmatprep.subr.mxu0 0.0
    %53 = vmatpush1.msra.mxu0 0.0
    %54 = vmatprep.subr.mxu0 0.0
    %55 = vmatpush1.msra.mxu0 0.0
    %56 = vmatprep.subr.mxu0 0.0
    %57 = vmatpush1.msra.mxu0 0.0
    %58 = vmatprep.subr.mxu0 0.0
    %59 = vmatpush1.msra.mxu0 0.0
    %60 = vmatprep.subr.mxu0 0.0
    %61 = vmatpush1.msra.mxu0 0.0
    %62 = vmatprep.subr.mxu0 0.0
    %63 = vmatpush1.msra.mxu0 0.0
    %64 = vmatprep.subr.mxu0 0.0
    %v65 = vand.u32 %v25, 4294901760
    %66 = vmatpush1.msra.mxu0 %v65
    %67 = vmatprep.subr.mxu0 0.0
    %v68 = vand.u32 %v24, 4294901760
    %69 = vmatpush1.msra.mxu0 %v68
    %70 = vmatprep.subr.mxu0 0.0
    %71 = vmatpush2.msra.mxu0 0.0
    %72 = vmatprep.subr.mxu0 0.0
    %73 = vmatpush2.msra.mxu0 0.0
    %74 = vmatprep.subr.mxu0 0.0
    %75 = vmatpush2.msra.mxu0 0.0
    %76 = vmatprep.subr.mxu0 0.0
    %77 = vmatpush2.msra.mxu0 0.0
    %78 = vmatprep.subr.mxu0 0.0
    %79 = vmatpush2.msra.mxu0 0.0
    %80 = vmatprep.subr.mxu0 0.0
    %81 = vmatpush2.msra.mxu0 0.0
    %82 = vmatprep.subr.mxu0 0.0
    %83 = vmatpush2.msra.mxu0 0.0
    %84 = vmatprep.subr.mxu0 0.0
    %85 = vmatpush2.msra.mxu0 0.0
    %86 = vmatprep.subr.mxu0 0.0
    %87 = vmatpush2.msra.mxu0 0.0
    %88 = vmatprep.subr.mxu0 0.0
    %89 = vmatpush2.msra.mxu0 0.0
    %90 = vmatprep.subr.mxu0 0.0
    %91 = vmatpush2.msra.mxu0 0.0
    %92 = vmatprep.subr.mxu0 0.0
    %93 = vmatpush2.msra.mxu0 0.0
    %94 = vmatprep.subr.mxu0 0.0
    %95 = vmatpush2.msra.mxu0 0.0
    %96 = vmatprep.subr.mxu0 0.0
    %97 = vmatpush2.msra.mxu0 0.0
    %98 = vmatprep.subr.mxu0 0.0
    %99 = vmatpush2.msra.mxu0 0.0
    %100 = vmatprep.subr.mxu0 0.0
    %101 = vmatpush2.msra.mxu0 0.0
    %102 = vmatprep.mubr.f32.mxu0 0.0
    %v103 = vand.u32 %v28, 4294901760
    %v104 = vsub.f32 %v28, %v103
    %v105 = vand.u32 %v104, 4294901760
    %v106 = vsub.f32 %v104, %v105
    %v107 = vand.u32 %v106, 4294901760
    %108 = vmatmul.mubr.f32.gmra.mxu0 %v107
    %v109 = vpop.f32.mrf.mxu0
    %v110 = vadd.f32 0.0, %v109
    %v111 = vpop.f32.mrf.mxu0
    %112 = vmatprep.mubr.f32.mxu0 0.0
    %v113 = vand.u32 %v31, 4294901760
    %v114 = vsub.f32 %v31, %v113
    %v115 = vand.u32 %v114, 4294901760
    %v116 = vsub.f32 %v114, %v115
    %v117 = vand.u32 %v116, 4294901760
    %118 = vmatmul.mubr.f32.gmra.mxu0 %v117
    %v119 = vpop.f32.mrf.mxu0
    %v120 = vadd.f32 0.0, %v119
    %v121 = vpop.f32.mrf.mxu0
    %122 = vmatprep.mubr.f32.mxu0 0.0
    %v123 = vand.u32 %v34, 4294901760
    %v124 = vsub.f32 %v34, %v123
    %v125 = vand.u32 %v124, 4294901760
    %v126 = vsub.f32 %v124, %v125
    %v127 = vand.u32 %v126, 4294901760
    %128 = vmatmul.mubr.f32.gmra.mxu0 %v127
    %v129 = vpop.f32.mrf.mxu0
    %v130 = vadd.f32 0.0, %v129
    %v131 = vpop.f32.mrf.mxu0
    %132 = vdwg.mxu0
    %133 = vmatprep.subr.mxu0 0.0
    %134 = vmatpush1.msra.mxu0 0.0
    %135 = vmatprep.subr.mxu0 0.0
    %136 = vmatpush1.msra.mxu0 0.0
    %137 = vmatprep.subr.mxu0 0.0
    %138 = vmatpush1.msra.mxu0 0.0
    %139 = vmatprep.subr.mxu0 0.0
    %140 = vmatpush1.msra.mxu0 0.0
    %141 = vmatprep.subr.mxu0 0.0
    %142 = vmatpush1.msra.mxu0 0.0
    %143 = vmatprep.subr.mxu0 0.0
    %144 = vmatpush1.msra.mxu0 0.0
    %145 = vmatprep.subr.mxu0 0.0
    %146 = vmatpush1.msra.mxu0 0.0
    %147 = vmatprep.subr.mxu0 0.0
    %148 = vmatpush1.msra.mxu0 0.0
    %149 = vmatprep.subr.mxu0 0.0
    %150 = vmatpush1.msra.mxu0 0.0
    %151 = vmatprep.subr.mxu0 0.0
    %152 = vmatpush1.msra.mxu0 0.0
    %153 = vmatprep.subr.mxu0 0.0
    %154 = vmatpush1.msra.mxu0 0.0
    %155 = vmatprep.subr.mxu0 0.0
    %156 = vmatpush1.msra.mxu0 0.0
    %157 = vmatprep.subr.mxu0 0.0
    %158 = vmatpush1.msra.mxu0 0.0
    %159 = vmatprep.subr.mxu0 0.0
    %160 = vmatpush1.msra.mxu0 0.0
    %161 = vmatprep.subr.mxu0 0.0
    %v162 = vand.u32 %v25, 4294901760
    %v163 = vsub.f32 %v25, %v162
    %v164 = vand.u32 %v163, 4294901760
    %v165 = vsub.f32 %v163, %v164
    %v166 = vand.u32 %v165, 4294901760
    %167 = vmatpush1.msra.mxu0 %v166
    %168 = vmatprep.subr.mxu0 0.0
    %v169 = vand.u32 %v24, 4294901760
    %v170 = vsub.f32 %v24, %v169
    %v171 = vand.u32 %v170, 4294901760
    %v172 = vsub.f32 %v170, %v171
    %v173 = vand.u32 %v172, 4294901760
    %174 = vmatpush1.msra.mxu0 %v173
    %175 = vmatprep.subr.mxu0 0.0
    %176 = vmatpush2.msra.mxu0 0.0
    %177 = vmatprep.subr.mxu0 0.0
    %178 = vmatpush2.msra.mxu0 0.0
    %179 = vmatprep.subr.mxu0 0.0
    %180 = vmatpush2.msra.mxu0 0.0
    %181 = vmatprep.subr.mxu0 0.0
    %182 = vmatpush2.msra.mxu0 0.0
    %183 = vmatprep.subr.mxu0 0.0
    %184 = vmatpush2.msra.mxu0 0.0
    %185 = vmatprep.subr.mxu0 0.0
    %186 = vmatpush2.msra.mxu0 0.0
    %187 = vmatprep.subr.mxu0 0.0
    %188 = vmatpush2.msra.mxu0 0.0
    %189 = vmatprep.subr.mxu0 0.0
    %190 = vmatpush2.msra.mxu0 0.0
    %191 = vmatprep.subr.mxu0 0.0
    %192 = vmatpush2.msra.mxu0 0.0
    %193 = vmatprep.subr.mxu0 0.0
    %194 = vmatpush2.msra.mxu0 0.0
    %195 = vmatprep.subr.mxu0 0.0
    %196 = vmatpush2.msra.mxu0 0.0
    %197 = vmatprep.subr.mxu0 0.0
    %198 = vmatpush2.msra.mxu0 0.0
    %199 = vmatprep.subr.mxu0 0.0
    %200 = vmatpush2.msra.mxu0 0.0
    %201 = vmatprep.subr.mxu0 0.0
    %202 = vmatpush2.msra.mxu0 0.0
    %203 = vmatprep.subr.mxu0 0.0
    %204 = vmatpush2.msra.mxu0 0.0
    %205 = vmatprep.subr.mxu0 0.0
    %206 = vmatpush2.msra.mxu0 0.0
    %207 = vmatprep.mubr.f32.mxu0 0.0
    %v208 = vand.u32 %v28, 4294901760
    %209 = vmatmul.mubr.f32.gmra.mxu0 %v208
    %v210 = vpop.f32.mrf.mxu0
    %v211 = vadd.f32 %v110, %v210
    %v212 = vpop.f32.mrf.mxu0
    %213 = vmatprep.mubr.f32.mxu0 0.0
    %v214 = vand.u32 %v31, 4294901760
    %215 = vmatmul.mubr.f32.gmra.mxu0 %v214
    %v216 = vpop.f32.mrf.mxu0
    %v217 = vadd.f32 %v120, %v216
    %v218 = vpop.f32.mrf.mxu0
    %219 = vmatprep.mubr.f32.mxu0 0.0
    %v220 = vand.u32 %v34, 4294901760
    %221 = vmatmul.mubr.f32.gmra.mxu0 %v220
    %v222 = vpop.f32.mrf.mxu0
    %v223 = vadd.f32 %v130, %v222
    %v224 = vpop.f32.mrf.mxu0
    %225 = vdwg.mxu0
    %226 = vmatprep.subr.mxu0 0.0
    %227 = vmatpush1.msra.mxu0 0.0
    %228 = vmatprep.subr.mxu0 0.0
    %229 = vmatpush1.msra.mxu0 0.0
    %230 = vmatprep.subr.mxu0 0.0
    %231 = vmatpush1.msra.mxu0 0.0
    %232 = vmatprep.subr.mxu0 0.0
    %233 = vmatpush1.msra.mxu0 0.0
    %234 = vmatprep.subr.mxu0 0.0
    %235 = vmatpush1.msra.mxu0 0.0
    %236 = vmatprep.subr.mxu0 0.0
    %237 = vmatpush1.msra.mxu0 0.0
    %238 = vmatprep.subr.mxu0 0.0
    %239 = vmatpush1.msra.mxu0 0.0
    %240 = vmatprep.subr.mxu0 0.0
    %241 = vmatpush1.msra.mxu0 0.0
    %242 = vmatprep.subr.mxu0 0.0
    %243 = vmatpush1.msra.mxu0 0.0
    %244 = vmatprep.subr.mxu0 0.0
    %245 = vmatpush1.msra.mxu0 0.0
    %246 = vmatprep.subr.mxu0 0.0
    %247 = vmatpush1.msra.mxu0 0.0
    %248 = vmatprep.subr.mxu0 0.0
    %249 = vmatpush1.msra.mxu0 0.0
    %250 = vmatprep.subr.mxu0 0.0
    %251 = vmatpush1.msra.mxu0 0.0
    %252 = vmatprep.subr.mxu0 0.0
    %253 = vmatpush1.msra.mxu0 0.0
    %254 = vmatprep.subr.mxu0 0.0
    %v255 = vand.u32 %v25, 4294901760
    %v256 = vsub.f32 %v25, %v255
    %257 = vmatpush1.msra.mxu0 %v256
    %258 = vmatprep.subr.mxu0 0.0
    %v259 = vand.u32 %v24, 4294901760
    %v260 = vsub.f32 %v24, %v259
    %261 = vmatpush1.msra.mxu0 %v260
    %262 = vmatprep.subr.mxu0 0.0
    %263 = vmatpush2.msra.mxu0 0.0
    %264 = vmatprep.subr.mxu0 0.0
    %265 = vmatpush2.msra.mxu0 0.0
    %266 = vmatprep.subr.mxu0 0.0
    %267 = vmatpush2.msra.mxu0 0.0
    %268 = vmatprep.subr.mxu0 0.0
    %269 = vmatpush2.msra.mxu0 0.0
    %270 = vmatprep.subr.mxu0 0.0
    %271 = vmatpush2.msra.mxu0 0.0
    %272 = vmatprep.subr.mxu0 0.0
    %273 = vmatpush2.msra.mxu0 0.0
    %274 = vmatprep.subr.mxu0 0.0
    %275 = vmatpush2.msra.mxu0 0.0
    %276 = vmatprep.subr.mxu0 0.0
    %277 = vmatpush2.msra.mxu0 0.0
    %278 = vmatprep.subr.mxu0 0.0
    %279 = vmatpush2.msra.mxu0 0.0
    %280 = vmatprep.subr.mxu0 0.0
    %281 = vmatpush2.msra.mxu0 0.0
    %282 = vmatprep.subr.mxu0 0.0
    %283 = vmatpush2.msra.mxu0 0.0
    %284 = vmatprep.subr.mxu0 0.0
    %285 = vmatpush2.msra.mxu0 0.0
    %286 = vmatprep.subr.mxu0 0.0
    %287 = vmatpush2.msra.mxu0 0.0
    %288 = vmatprep.subr.mxu0 0.0
    %289 = vmatpush2.msra.mxu0 0.0
    %290 = vmatprep.subr.mxu0 0.0
    %291 = vmatpush2.msra.mxu0 0.0
    %292 = vmatprep.subr.mxu0 0.0
    %293 = vmatpush2.msra.mxu0 0.0
    %294 = vmatprep.mubr.f32.mxu0 0.0
    %v295 = vand.u32 %v28, 4294901760
    %v296 = vsub.f32 %v28, %v295
    %297 = vmatmul.mubr.f32.gmra.mxu0 %v296
    %v298 = vpop.f32.mrf.mxu0
    %v299 = vadd.f32 %v211, %v298
    %v300 = vpop.f32.mrf.mxu0
    %301 = vmatprep.mubr.f32.mxu0 0.0
    %v302 = vand.u32 %v31, 4294901760
    %v303 = vsub.f32 %v31, %v302
    %304 = vmatmul.mubr.f32.gmra.mxu0 %v303
    %v305 = vpop.f32.mrf.mxu0
    %v306 = vadd.f32 %v217, %v305
    %v307 = vpop.f32.mrf.mxu0
    %308 = vmatprep.mubr.f32.mxu0 0.0
    %v309 = vand.u32 %v34, 4294901760
    %v310 = vsub.f32 %v34, %v309
    %311 = vmatmul.mubr.f32.gmra.mxu0 %v310
    %v312 = vpop.f32.mrf.mxu0
    %v313 = vadd.f32 %v223, %v312
    %v314 = vpop.f32.mrf.mxu0
    %315 = vdwg.mxu0
    %316 = vmatprep.subr.mxu0 0.0
    %317 = vmatpush1.msra.mxu0 0.0
    %318 = vmatprep.subr.mxu0 0.0
    %319 = vmatpush1.msra.mxu0 0.0
    %320 = vmatprep.subr.mxu0 0.0
    %321 = vmatpush1.msra.mxu0 0.0
    %322 = vmatprep.subr.mxu0 0.0
    %323 = vmatpush1.msra.mxu0 0.0
    %324 = vmatprep.subr.mxu0 0.0
    %325 = vmatpush1.msra.mxu0 0.0
    %326 = vmatprep.subr.mxu0 0.0
    %327 = vmatpush1.msra.mxu0 0.0
    %328 = vmatprep.subr.mxu0 0.0
    %329 = vmatpush1.msra.mxu0 0.0
    %330 = vmatprep.subr.mxu0 0.0
    %331 = vmatpush1.msra.mxu0 0.0
    %332 = vmatprep.subr.mxu0 0.0
    %333 = vmatpush1.msra.mxu0 0.0
    %334 = vmatprep.subr.mxu0 0.0
    %335 = vmatpush1.msra.mxu0 0.0
    %336 = vmatprep.subr.mxu0 0.0
    %337 = vmatpush1.msra.mxu0 0.0
    %338 = vmatprep.subr.mxu0 0.0
    %339 = vmatpush1.msra.mxu0 0.0
    %340 = vmatprep.subr.mxu0 0.0
    %341 = vmatpush1.msra.mxu0 0.0
    %342 = vmatprep.subr.mxu0 0.0
    %343 = vmatpush1.msra.mxu0 0.0
    %344 = vmatprep.subr.mxu0 0.0
    %v345 = vand.u32 %v25, 4294901760
    %346 = vmatpush1.msra.mxu0 %v345
    %347 = vmatprep.subr.mxu0 0.0
    %v348 = vand.u32 %v24, 4294901760
    %349 = vmatpush1.msra.mxu0 %v348
    %350 = vmatprep.subr.mxu0 0.0
    %351 = vmatpush2.msra.mxu0 0.0
    %352 = vmatprep.subr.mxu0 0.0
    %353 = vmatpush2.msra.mxu0 0.0
    %354 = vmatprep.subr.mxu0 0.0
    %355 = vmatpush2.msra.mxu0 0.0
    %356 = vmatprep.subr.mxu0 0.0
    %357 = vmatpush2.msra.mxu0 0.0
    %358 = vmatprep.subr.mxu0 0.0
    %359 = vmatpush2.msra.mxu0 0.0
    %360 = vmatprep.subr.mxu0 0.0
    %361 = vmatpush2.msra.mxu0 0.0
    %362 = vmatprep.subr.mxu0 0.0
    %363 = vmatpush2.msra.mxu0 0.0
    %364 = vmatprep.subr.mxu0 0.0
    %365 = vmatpush2.msra.mxu0 0.0
    %366 = vmatprep.subr.mxu0 0.0
    %367 = vmatpush2.msra.mxu0 0.0
    %368 = vmatprep.subr.mxu0 0.0
    %369 = vmatpush2.msra.mxu0 0.0
    %370 = vmatprep.subr.mxu0 0.0
    %371 = vmatpush2.msra.mxu0 0.0
    %372 = vmatprep.subr.mxu0 0.0
    %373 = vmatpush2.msra.mxu0 0.0
    %374 = vmatprep.subr.mxu0 0.0
    %375 = vmatpush2.msra.mxu0 0.0
    %376 = vmatprep.subr.mxu0 0.0
    %377 = vmatpush2.msra.mxu0 0.0
    %378 = vmatprep.subr.mxu0 0.0
    %379 = vmatpush2.msra.mxu0 0.0
    %380 = vmatprep.subr.mxu0 0.0
    %381 = vmatpush2.msra.mxu0 0.0
    %382 = vmatprep.mubr.f32.mxu0 0.0
    %v383 = vand.u32 %v28, 4294901760
    %v384 = vsub.f32 %v28, %v383
    %v385 = vand.u32 %v384, 4294901760
    %386 = vmatmul.mubr.f32.gmra.mxu0 %v385
    %v387 = vpop.f32.mrf.mxu0
    %v388 = vadd.f32 %v299, %v387
    %v389 = vpop.f32.mrf.mxu0
    %390 = vmatprep.mubr.f32.mxu0 0.0
    %v391 = vand.u32 %v31, 4294901760
    %v392 = vsub.f32 %v31, %v391
    %v393 = vand.u32 %v392, 4294901760
    %394 = vmatmul.mubr.f32.gmra.mxu0 %v393
    %v395 = vpop.f32.mrf.mxu0
    %v396 = vadd.f32 %v306, %v395
    %v397 = vpop.f32.mrf.mxu0
    %398 = vmatprep.mubr.f32.mxu0 0.0
    %v399 = vand.u32 %v34, 4294901760
    %v400 = vsub.f32 %v34, %v399
    %v401 = vand.u32 %v400, 4294901760
    %402 = vmatmul.mubr.f32.gmra.mxu0 %v401
    %v403 = vpop.f32.mrf.mxu0
    %v404 = vadd.f32 %v313, %v403
    %v405 = vpop.f32.mrf.mxu0
    %406 = vdwg.mxu0
    %407 = vmatprep.subr.mxu0 0.0
    %408 = vmatpush1.msra.mxu0 0.0
    %409 = vmatprep.subr.mxu0 0.0
    %410 = vmatpush1.msra.mxu0 0.0
    %411 = vmatprep.subr.mxu0 0.0
    %412 = vmatpush1.msra.mxu0 0.0
    %413 = vmatprep.subr.mxu0 0.0
    %414 = vmatpush1.msra.mxu0 0.0
    %415 = vmatprep.subr.mxu0 0.0
    %416 = vmatpush1.msra.mxu0 0.0
    %417 = vmatprep.subr.mxu0 0.0
    %418 = vmatpush1.msra.mxu0 0.0
    %419 = vmatprep.subr.mxu0 0.0
    %420 = vmatpush1.msra.mxu0 0.0
    %421 = vmatprep.subr.mxu0 0.0
    %422 = vmatpush1.msra.mxu0 0.0
    %423 = vmatprep.subr.mxu0 0.0
    %424 = vmatpush1.msra.mxu0 0.0
    %425 = vmatprep.subr.mxu0 0.0
    %426 = vmatpush1.msra.mxu0 0.0
    %427 = vmatprep.subr.mxu0 0.0
    %428 = vmatpush1.msra.mxu0 0.0
    %429 = vmatprep.subr.mxu0 0.0
    %430 = vmatpush1.msra.mxu0 0.0
    %431 = vmatprep.subr.mxu0 0.0
    %432 = vmatpush1.msra.mxu0 0.0
    %433 = vmatprep.subr.mxu0 0.0
    %434 = vmatpush1.msra.mxu0 0.0
    %435 = vmatprep.subr.mxu0 0.0
    %v436 = vand.u32 %v25, 4294901760
    %v437 = vsub.f32 %v25, %v436
    %v438 = vand.u32 %v437, 4294901760
    %439 = vmatpush1.msra.mxu0 %v438
    %440 = vmatprep.subr.mxu0 0.0
    %v441 = vand.u32 %v24, 4294901760
    %v442 = vsub.f32 %v24, %v441
    %v443 = vand.u32 %v442, 4294901760
    %444 = vmatpush1.msra.mxu0 %v443
    %445 = vmatprep.subr.mxu0 0.0
    %446 = vmatpush2.msra.mxu0 0.0
    %447 = vmatprep.subr.mxu0 0.0
    %448 = vmatpush2.msra.mxu0 0.0
    %449 = vmatprep.subr.mxu0 0.0
    %450 = vmatpush2.msra.mxu0 0.0
    %451 = vmatprep.subr.mxu0 0.0
    %452 = vmatpush2.msra.mxu0 0.0
    %453 = vmatprep.subr.mxu0 0.0
    %454 = vmatpush2.msra.mxu0 0.0
    %455 = vmatprep.subr.mxu0 0.0
    %456 = vmatpush2.msra.mxu0 0.0
    %457 = vmatprep.subr.mxu0 0.0
    %458 = vmatpush2.msra.mxu0 0.0
    %459 = vmatprep.subr.mxu0 0.0
    %460 = vmatpush2.msra.mxu0 0.0
    %461 = vmatprep.subr.mxu0 0.0
    %462 = vmatpush2.msra.mxu0 0.0
    %463 = vmatprep.subr.mxu0 0.0
    %464 = vmatpush2.msra.mxu0 0.0
    %465 = vmatprep.subr.mxu0 0.0
    %466 = vmatpush2.msra.mxu0 0.0
    %467 = vmatprep.subr.mxu0 0.0
    %468 = vmatpush2.msra.mxu0 0.0
    %469 = vmatprep.subr.mxu0 0.0
    %470 = vmatpush2.msra.mxu0 0.0
    %471 = vmatprep.subr.mxu0 0.0
    %472 = vmatpush2.msra.mxu0 0.0
    %473 = vmatprep.subr.mxu0 0.0
    %474 = vmatpush2.msra.mxu0 0.0
    %475 = vmatprep.subr.mxu0 0.0
    %476 = vmatpush2.msra.mxu0 0.0
    %477 = vmatprep.mubr.f32.mxu0 0.0
    %v478 = vand.u32 %v28, 4294901760
    %479 = vmatmul.mubr.f32.gmra.mxu0 %v478
    %v480 = vpop.f32.mrf.mxu0
    %v481 = vadd.f32 %v388, %v480
    %v482 = vpop.f32.mrf.mxu0
    %483 = vmatprep.mubr.f32.mxu0 0.0
    %v484 = vand.u32 %v31, 4294901760
    %485 = vmatmul.mubr.f32.gmra.mxu0 %v484
    %v486 = vpop.f32.mrf.mxu0
    %v487 = vadd.f32 %v396, %v486
    %v488 = vpop.f32.mrf.mxu0
    %489 = vmatprep.mubr.f32.mxu0 0.0
    %v490 = vand.u32 %v34, 4294901760
    %491 = vmatmul.mubr.f32.gmra.mxu0 %v490
    %v492 = vpop.f32.mrf.mxu0
    %v493 = vadd.f32 %v404, %v492
    %v494 = vpop.f32.mrf.mxu0
    %495 = vdwg.mxu0
    %496 = vmatprep.subr.mxu0 0.0
    %497 = vmatpush1.msra.mxu0 0.0
    %498 = vmatprep.subr.mxu0 0.0
    %499 = vmatpush1.msra.mxu0 0.0
    %500 = vmatprep.subr.mxu0 0.0
    %501 = vmatpush1.msra.mxu0 0.0
    %502 = vmatprep.subr.mxu0 0.0
    %503 = vmatpush1.msra.mxu0 0.0
    %504 = vmatprep.subr.mxu0 0.0
    %505 = vmatpush1.msra.mxu0 0.0
    %506 = vmatprep.subr.mxu0 0.0
    %507 = vmatpush1.msra.mxu0 0.0
    %508 = vmatprep.subr.mxu0 0.0
    %509 = vmatpush1.msra.mxu0 0.0
    %510 = vmatprep.subr.mxu0 0.0
    %511 = vmatpush1.msra.mxu0 0.0
    %512 = vmatprep.subr.mxu0 0.0
    %513 = vmatpush1.msra.mxu0 0.0
    %514 = vmatprep.subr.mxu0 0.0
    %515 = vmatpush1.msra.mxu0 0.0
    %516 = vmatprep.subr.mxu0 0.0
    %517 = vmatpush1.msra.mxu0 0.0
    %518 = vmatprep.subr.mxu0 0.0
    %519 = vmatpush1.msra.mxu0 0.0
    %520 = vmatprep.subr.mxu0 0.0
    %521 = vmatpush1.msra.mxu0 0.0
    %522 = vmatprep.subr.mxu0 0.0
    %523 = vmatpush1.msra.mxu0 0.0
    %524 = vmatprep.subr.mxu0 0.0
    %v525 = vand.u32 %v25, 4294901760
    %526 = vmatpush1.msra.mxu0 %v525
    %527 = vmatprep.subr.mxu0 0.0
    %v528 = vand.u32 %v24, 4294901760
    %529 = vmatpush1.msra.mxu0 %v528
    %530 = vmatprep.subr.mxu0 0.0
    %531 = vmatpush2.msra.mxu0 0.0
    %532 = vmatprep.subr.mxu0 0.0
    %533 = vmatpush2.msra.mxu0 0.0
    %534 = vmatprep.subr.mxu0 0.0
    %535 = vmatpush2.msra.mxu0 0.0
    %536 = vmatprep.subr.mxu0 0.0
    %537 = vmatpush2.msra.mxu0 0.0
    %538 = vmatprep.subr.mxu0 0.0
    %539 = vmatpush2.msra.mxu0 0.0
    %540 = vmatprep.subr.mxu0 0.0
    %541 = vmatpush2.msra.mxu0 0.0
    %542 = vmatprep.subr.mxu0 0.0
    %543 = vmatpush2.msra.mxu0 0.0
    %544 = vmatprep.subr.mxu0 0.0
    %545 = vmatpush2.msra.mxu0 0.0
    %546 = vmatprep.subr.mxu0 0.0
    %547 = vmatpush2.msra.mxu0 0.0
    %548 = vmatprep.subr.mxu0 0.0
    %549 = vmatpush2.msra.mxu0 0.0
    %550 = vmatprep.subr.mxu0 0.0
    %551 = vmatpush2.msra.mxu0 0.0
    %552 = vmatprep.subr.mxu0 0.0
    %553 = vmatpush2.msra.mxu0 0.0
    %554 = vmatprep.subr.mxu0 0.0
    %555 = vmatpush2.msra.mxu0 0.0
    %556 = vmatprep.subr.mxu0 0.0
    %557 = vmatpush2.msra.mxu0 0.0
    %558 = vmatprep.subr.mxu0 0.0
    %559 = vmatpush2.msra.mxu0 0.0
    %560 = vmatprep.subr.mxu0 0.0
    %561 = vmatpush2.msra.mxu0 0.0
    %562 = vmatprep.mubr.f32.mxu0 0.0
    %v563 = vand.u32 %v28, 4294901760
    %564 = vmatmul.mubr.f32.gmra.mxu0 %v563
    %v565 = vpop.f32.mrf.mxu0
    %v566 = vadd.f32 %v481, %v565
    %v567 = vpop.f32.mrf.mxu0
    %568 = vmatprep.mubr.f32.mxu0 0.0
    %v569 = vand.u32 %v31, 4294901760
    %570 = vmatmul.mubr.f32.gmra.mxu0 %v569
    %v571 = vpop.f32.mrf.mxu0
    %v572 = vadd.f32 %v487, %v571
    %v573 = vpop.f32.mrf.mxu0
    %574 = vmatprep.mubr.f32.mxu0 0.0
    %v575 = vand.u32 %v34, 4294901760
    %576 = vmatmul.mubr.f32.gmra.mxu0 %v575
    %v577 = vpop.f32.mrf.mxu0
    %v578 = vadd.f32 %v493, %v577
    %v579 = vpop.f32.mrf.mxu0
    %580 = vdwg.mxu0
    %vm583 = vcmask 1043456
    %v584 = vrot.slane %v566, 4
    %v585 = vrot.slane %v572, 4
    %v586 = vsel %vm583, %v584, %v585
    %587 = vrot.lane.b32.xlu0 %v584, 120
    %v588 = vpop.permute.xlu0 %587
    %589 = vrot.lane.b32.xlu0 %v586, 120
    %v590 = vpop.permute.xlu0 %589
    %v594 = vrot.slane %v578, 4
    %v595 = vsel %vm583, %v585, %v594
    %596 = vrot.lane.b32.xlu0 %v595, 112
    %v597 = vpop.permute.xlu0 %596
    %598 = vrot.lane.b32.xlu0 %v594, 112
    %v599 = vpop.permute.xlu0 %598
    %v601 = vsel %vm583, %v572, %v588
    %v602 = vld [vmem:[%s2] sm:$0xff]
    %v603 = vld [vmem:[%s2 + $0x8] sm:$0xff]
    %v604 = vld [vmem:[%s2 + $0x10] sm:$0x3f]
    %v605 = vld [vmem:[%s3] sm:$0xff]
    %v606 = vld [vmem:[%s3 + $0x8] sm:$0xff]
    %v607 = vld [vmem:[%s3 + $0x10] sm:$0x3f]
    %vm608 = vcmask 277504
    %v610 = vsel %vm608, %v602, 0
    %v613 = vsel %vm608, %v603, 0
    %v616 = vsel %vm608, %v604, 0
    %vm618 = vcmask 1041408
    %v619 = vsel %vm618, %v599, 0
    %621 = vmatprep.subr.mxu0 0.0
    %622 = vmatpush1.msra.mxu0 0.0
    %623 = vmatprep.subr.mxu0 0.0
    %624 = vmatpush1.msra.mxu0 0.0
    %625 = vmatprep.subr.mxu0 0.0
    %626 = vmatpush1.msra.mxu0 0.0
    %627 = vmatprep.subr.mxu0 0.0
    %628 = vmatpush1.msra.mxu0 0.0
    %629 = vmatprep.subr.mxu0 0.0
    %630 = vmatpush1.msra.mxu0 0.0
    %631 = vmatprep.subr.mxu0 0.0
    %632 = vmatpush1.msra.mxu0 0.0
    %633 = vmatprep.subr.mxu0 0.0
    %634 = vmatpush1.msra.mxu0 0.0
    %635 = vmatprep.subr.mxu0 0.0
    %636 = vmatpush1.msra.mxu0 0.0
    %637 = vmatprep.subr.mxu0 0.0
    %638 = vmatpush1.msra.mxu0 0.0
    %639 = vmatprep.subr.mxu0 0.0
    %640 = vmatpush1.msra.mxu0 0.0
    %641 = vmatprep.subr.mxu0 0.0
    %642 = vmatpush1.msra.mxu0 0.0
    %643 = vmatprep.subr.mxu0 0.0
    %v644 = vand.u32 %v619, 4294901760
    %645 = vmatpush1.msra.mxu0 %v644
    %646 = vmatprep.subr.mxu0 0.0
    %v647 = vand.u32 %v597, 4294901760
    %648 = vmatpush1.msra.mxu0 %v647
    %649 = vmatprep.subr.mxu0 0.0
    %v650 = vand.u32 %v590, 4294901760
    %651 = vmatpush1.msra.mxu0 %v650
    %652 = vmatprep.subr.mxu0 0.0
    %v653 = vand.u32 %v601, 4294901760
    %654 = vmatpush1.msra.mxu0 %v653
    %655 = vmatprep.subr.mxu0 0.0
    %v656 = vand.u32 %v566, 4294901760
    %657 = vmatpush1.msra.mxu0 %v656
    %658 = vmatprep.subr.mxu0 0.0
    %659 = vmatpush2.msra.mxu0 0.0
    %660 = vmatprep.subr.mxu0 0.0
    %661 = vmatpush2.msra.mxu0 0.0
    %662 = vmatprep.subr.mxu0 0.0
    %663 = vmatpush2.msra.mxu0 0.0
    %664 = vmatprep.subr.mxu0 0.0
    %665 = vmatpush2.msra.mxu0 0.0
    %666 = vmatprep.subr.mxu0 0.0
    %667 = vmatpush2.msra.mxu0 0.0
    %668 = vmatprep.subr.mxu0 0.0
    %669 = vmatpush2.msra.mxu0 0.0
    %670 = vmatprep.subr.mxu0 0.0
    %671 = vmatpush2.msra.mxu0 0.0
    %672 = vmatprep.subr.mxu0 0.0
    %673 = vmatpush2.msra.mxu0 0.0
    %674 = vmatprep.subr.mxu0 0.0
    %675 = vmatpush2.msra.mxu0 0.0
    %676 = vmatprep.subr.mxu0 0.0
    %677 = vmatpush2.msra.mxu0 0.0
    %678 = vmatprep.subr.mxu0 0.0
    %679 = vmatpush2.msra.mxu0 0.0
    %680 = vmatprep.subr.mxu0 0.0
    %681 = vmatpush2.msra.mxu0 0.0
    %682 = vmatprep.subr.mxu0 0.0
    %683 = vmatpush2.msra.mxu0 0.0
    %684 = vmatprep.subr.mxu0 0.0
    %685 = vmatpush2.msra.mxu0 0.0
    %686 = vmatprep.subr.mxu0 0.0
    %687 = vmatpush2.msra.mxu0 0.0
    %688 = vmatprep.subr.mxu0 0.0
    %689 = vmatpush2.msra.mxu0 0.0
    %690 = vmatprep.mubr.f32.mxu0 0.0
    %v691 = vand.u32 %v610, 4294901760
    %v692 = vsub.f32 %v610, %v691
    %v693 = vand.u32 %v692, 4294901760
    %v694 = vsub.f32 %v692, %v693
    %v695 = vand.u32 %v694, 4294901760
    %696 = vmatmul.mubr.f32.gmra.mxu0 %v695
    %v697 = vpop.f32.mrf.mxu0
    %v698 = vadd.f32 %v605, %v697
    %v699 = vpop.f32.mrf.mxu0
    %700 = vmatprep.mubr.f32.mxu0 0.0
    %v701 = vand.u32 %v613, 4294901760
    %v702 = vsub.f32 %v613, %v701
    %v703 = vand.u32 %v702, 4294901760
    %v704 = vsub.f32 %v702, %v703
    %v705 = vand.u32 %v704, 4294901760
    %706 = vmatmul.mubr.f32.gmra.mxu0 %v705
    %v707 = vpop.f32.mrf.mxu0
    %v708 = vadd.f32 %v606, %v707
    %v709 = vpop.f32.mrf.mxu0
    %710 = vmatprep.mubr.f32.mxu0 0.0
    %v711 = vand.u32 %v616, 4294901760
    %v712 = vsub.f32 %v616, %v711
    %v713 = vand.u32 %v712, 4294901760
    %v714 = vsub.f32 %v712, %v713
    %v715 = vand.u32 %v714, 4294901760
    %716 = vmatmul.mubr.f32.gmra.mxu0 %v715
    %v717 = vpop.f32.mrf.mxu0
    %v718 = vadd.f32 %v607, %v717
    %v719 = vpop.f32.mrf.mxu0
    %720 = vdwg.mxu0
    %721 = vmatprep.subr.mxu0 0.0
    %722 = vmatpush1.msra.mxu0 0.0
    %723 = vmatprep.subr.mxu0 0.0
    %724 = vmatpush1.msra.mxu0 0.0
    %725 = vmatprep.subr.mxu0 0.0
    %726 = vmatpush1.msra.mxu0 0.0
    %727 = vmatprep.subr.mxu0 0.0
    %728 = vmatpush1.msra.mxu0 0.0
    %729 = vmatprep.subr.mxu0 0.0
    %730 = vmatpush1.msra.mxu0 0.0
    %731 = vmatprep.subr.mxu0 0.0
    %732 = vmatpush1.msra.mxu0 0.0
    %733 = vmatprep.subr.mxu0 0.0
    %734 = vmatpush1.msra.mxu0 0.0
    %735 = vmatprep.subr.mxu0 0.0
    %736 = vmatpush1.msra.mxu0 0.0
    %737 = vmatprep.subr.mxu0 0.0
    %738 = vmatpush1.msra.mxu0 0.0
    %739 = vmatprep.subr.mxu0 0.0
    %740 = vmatpush1.msra.mxu0 0.0
    %741 = vmatprep.subr.mxu0 0.0
    %742 = vmatpush1.msra.mxu0 0.0
    %743 = vmatprep.subr.mxu0 0.0
    %v744 = vand.u32 %v619, 4294901760
    %v745 = vsub.f32 %v619, %v744
    %v746 = vand.u32 %v745, 4294901760
    %v747 = vsub.f32 %v745, %v746
    %v748 = vand.u32 %v747, 4294901760
    %749 = vmatpush1.msra.mxu0 %v748
    %750 = vmatprep.subr.mxu0 0.0
    %v751 = vand.u32 %v597, 4294901760
    %v752 = vsub.f32 %v597, %v751
    %v753 = vand.u32 %v752, 4294901760
    %v754 = vsub.f32 %v752, %v753
    %v755 = vand.u32 %v754, 4294901760
    %756 = vmatpush1.msra.mxu0 %v755
    %757 = vmatprep.subr.mxu0 0.0
    %v758 = vand.u32 %v590, 4294901760
    %v759 = vsub.f32 %v590, %v758
    %v760 = vand.u32 %v759, 4294901760
    %v761 = vsub.f32 %v759, %v760
    %v762 = vand.u32 %v761, 4294901760
    %763 = vmatpush1.msra.mxu0 %v762
    %764 = vmatprep.subr.mxu0 0.0
    %v765 = vand.u32 %v601, 4294901760
    %v766 = vsub.f32 %v601, %v765
    %v767 = vand.u32 %v766, 4294901760
    %v768 = vsub.f32 %v766, %v767
    %v769 = vand.u32 %v768, 4294901760
    %770 = vmatpush1.msra.mxu0 %v769
    %771 = vmatprep.subr.mxu0 0.0
    %v772 = vand.u32 %v566, 4294901760
    %v773 = vsub.f32 %v566, %v772
    %v774 = vand.u32 %v773, 4294901760
    %v775 = vsub.f32 %v773, %v774
    %v776 = vand.u32 %v775, 4294901760
    %777 = vmatpush1.msra.mxu0 %v776
    %778 = vmatprep.subr.mxu0 0.0
    %779 = vmatpush2.msra.mxu0 0.0
    %780 = vmatprep.subr.mxu0 0.0
    %781 = vmatpush2.msra.mxu0 0.0
    %782 = vmatprep.subr.mxu0 0.0
    %783 = vmatpush2.msra.mxu0 0.0
    %784 = vmatprep.subr.mxu0 0.0
    %785 = vmatpush2.msra.mxu0 0.0
    %786 = vmatprep.subr.mxu0 0.0
    %787 = vmatpush2.msra.mxu0 0.0
    %788 = vmatprep.subr.mxu0 0.0
    %789 = vmatpush2.msra.mxu0 0.0
    %790 = vmatprep.subr.mxu0 0.0
    %791 = vmatpush2.msra.mxu0 0.0
    %792 = vmatprep.subr.mxu0 0.0
    %793 = vmatpush2.msra.mxu0 0.0
    %794 = vmatprep.subr.mxu0 0.0
    %795 = vmatpush2.msra.mxu0 0.0
    %796 = vmatprep.subr.mxu0 0.0
    %797 = vmatpush2.msra.mxu0 0.0
    %798 = vmatprep.subr.mxu0 0.0
    %799 = vmatpush2.msra.mxu0 0.0
    %800 = vmatprep.subr.mxu0 0.0
    %801 = vmatpush2.msra.mxu0 0.0
    %802 = vmatprep.subr.mxu0 0.0
    %803 = vmatpush2.msra.mxu0 0.0
    %804 = vmatprep.subr.mxu0 0.0
    %805 = vmatpush2.msra.mxu0 0.0
    %806 = vmatprep.subr.mxu0 0.0
    %807 = vmatpush2.msra.mxu0 0.0
    %808 = vmatprep.subr.mxu0 0.0
    %809 = vmatpush2.msra.mxu0 0.0
    %810 = vmatprep.mubr.f32.mxu0 0.0
    %v811 = vand.u32 %v610, 4294901760
    %812 = vmatmul.mubr.f32.gmra.mxu0 %v811
    %v813 = vpop.f32.mrf.mxu0
    %v814 = vadd.f32 %v698, %v813
    %v815 = vpop.f32.mrf.mxu0
    %816 = vmatprep.mubr.f32.mxu0 0.0
    %v817 = vand.u32 %v613, 4294901760
    %818 = vmatmul.mubr.f32.gmra.mxu0 %v817
    %v819 = vpop.f32.mrf.mxu0
    %v820 = vadd.f32 %v708, %v819
    %v821 = vpop.f32.mrf.mxu0
    %822 = vmatprep.mubr.f32.mxu0 0.0
    %v823 = vand.u32 %v616, 4294901760
    %824 = vmatmul.mubr.f32.gmra.mxu0 %v823
    %v825 = vpop.f32.mrf.mxu0
    %v826 = vadd.f32 %v718, %v825
    %v827 = vpop.f32.mrf.mxu0
    %828 = vdwg.mxu0
    %829 = vmatprep.subr.mxu0 0.0
    %830 = vmatpush1.msra.mxu0 0.0
    %831 = vmatprep.subr.mxu0 0.0
    %832 = vmatpush1.msra.mxu0 0.0
    %833 = vmatprep.subr.mxu0 0.0
    %834 = vmatpush1.msra.mxu0 0.0
    %835 = vmatprep.subr.mxu0 0.0
    %836 = vmatpush1.msra.mxu0 0.0
    %837 = vmatprep.subr.mxu0 0.0
    %838 = vmatpush1.msra.mxu0 0.0
    %839 = vmatprep.subr.mxu0 0.0
    %840 = vmatpush1.msra.mxu0 0.0
    %841 = vmatprep.subr.mxu0 0.0
    %842 = vmatpush1.msra.mxu0 0.0
    %843 = vmatprep.subr.mxu0 0.0
    %844 = vmatpush1.msra.mxu0 0.0
    %845 = vmatprep.subr.mxu0 0.0
    %846 = vmatpush1.msra.mxu0 0.0
    %847 = vmatprep.subr.mxu0 0.0
    %848 = vmatpush1.msra.mxu0 0.0
    %849 = vmatprep.subr.mxu0 0.0
    %850 = vmatpush1.msra.mxu0 0.0
    %851 = vmatprep.subr.mxu0 0.0
    %v852 = vand.u32 %v619, 4294901760
    %v853 = vsub.f32 %v619, %v852
    %854 = vmatpush1.msra.mxu0 %v853
    %855 = vmatprep.subr.mxu0 0.0
    %v856 = vand.u32 %v597, 4294901760
    %v857 = vsub.f32 %v597, %v856
    %858 = vmatpush1.msra.mxu0 %v857
    %859 = vmatprep.subr.mxu0 0.0
    %v860 = vand.u32 %v590, 4294901760
    %v861 = vsub.f32 %v590, %v860
    %862 = vmatpush1.msra.mxu0 %v861
    %863 = vmatprep.subr.mxu0 0.0
    %v864 = vand.u32 %v601, 4294901760
    %v865 = vsub.f32 %v601, %v864
    %866 = vmatpush1.msra.mxu0 %v865
    %867 = vmatprep.subr.mxu0 0.0
    %v868 = vand.u32 %v566, 4294901760
    %v869 = vsub.f32 %v566, %v868
    %870 = vmatpush1.msra.mxu0 %v869
    %871 = vmatprep.subr.mxu0 0.0
    %872 = vmatpush2.msra.mxu0 0.0
    %873 = vmatprep.subr.mxu0 0.0
    %874 = vmatpush2.msra.mxu0 0.0
    %875 = vmatprep.subr.mxu0 0.0
    %876 = vmatpush2.msra.mxu0 0.0
    %877 = vmatprep.subr.mxu0 0.0
    %878 = vmatpush2.msra.mxu0 0.0
    %879 = vmatprep.subr.mxu0 0.0
    %880 = vmatpush2.msra.mxu0 0.0
    %881 = vmatprep.subr.mxu0 0.0
    %882 = vmatpush2.msra.mxu0 0.0
    %883 = vmatprep.subr.mxu0 0.0
    %884 = vmatpush2.msra.mxu0 0.0
    %885 = vmatprep.subr.mxu0 0.0
    %886 = vmatpush2.msra.mxu0 0.0
    %887 = vmatprep.subr.mxu0 0.0
    %888 = vmatpush2.msra.mxu0 0.0
    %889 = vmatprep.subr.mxu0 0.0
    %890 = vmatpush2.msra.mxu0 0.0
    %891 = vmatprep.subr.mxu0 0.0
    %892 = vmatpush2.msra.mxu0 0.0
    %893 = vmatprep.subr.mxu0 0.0
    %894 = vmatpush2.msra.mxu0 0.0
    %895 = vmatprep.subr.mxu0 0.0
    %896 = vmatpush2.msra.mxu0 0.0
    %897 = vmatprep.subr.mxu0 0.0
    %898 = vmatpush2.msra.mxu0 0.0
    %899 = vmatprep.subr.mxu0 0.0
    %900 = vmatpush2.msra.mxu0 0.0
    %901 = vmatprep.subr.mxu0 0.0
    %902 = vmatpush2.msra.mxu0 0.0
    %903 = vmatprep.mubr.f32.mxu0 0.0
    %v904 = vand.u32 %v610, 4294901760
    %v905 = vsub.f32 %v610, %v904
    %906 = vmatmul.mubr.f32.gmra.mxu0 %v905
    %v907 = vpop.f32.mrf.mxu0
    %v908 = vadd.f32 %v814, %v907
    %v909 = vpop.f32.mrf.mxu0
    %910 = vmatprep.mubr.f32.mxu0 0.0
    %v911 = vand.u32 %v613, 4294901760
    %v912 = vsub.f32 %v613, %v911
    %913 = vmatmul.mubr.f32.gmra.mxu0 %v912
    %v914 = vpop.f32.mrf.mxu0
    %v915 = vadd.f32 %v820, %v914
    %v916 = vpop.f32.mrf.mxu0
    %917 = vmatprep.mubr.f32.mxu0 0.0
    %v918 = vand.u32 %v616, 4294901760
    %v919 = vsub.f32 %v616, %v918
    %920 = vmatmul.mubr.f32.gmra.mxu0 %v919
    %v921 = vpop.f32.mrf.mxu0
    %v922 = vadd.f32 %v826, %v921
    %v923 = vpop.f32.mrf.mxu0
    %924 = vdwg.mxu0
    %925 = vmatprep.subr.mxu0 0.0
    %926 = vmatpush1.msra.mxu0 0.0
    %927 = vmatprep.subr.mxu0 0.0
    %928 = vmatpush1.msra.mxu0 0.0
    %929 = vmatprep.subr.mxu0 0.0
    %930 = vmatpush1.msra.mxu0 0.0
    %931 = vmatprep.subr.mxu0 0.0
    %932 = vmatpush1.msra.mxu0 0.0
    %933 = vmatprep.subr.mxu0 0.0
    %934 = vmatpush1.msra.mxu0 0.0
    %935 = vmatprep.subr.mxu0 0.0
    %936 = vmatpush1.msra.mxu0 0.0
    %937 = vmatprep.subr.mxu0 0.0
    %938 = vmatpush1.msra.mxu0 0.0
    %939 = vmatprep.subr.mxu0 0.0
    %940 = vmatpush1.msra.mxu0 0.0
    %941 = vmatprep.subr.mxu0 0.0
    %942 = vmatpush1.msra.mxu0 0.0
    %943 = vmatprep.subr.mxu0 0.0
    %944 = vmatpush1.msra.mxu0 0.0
    %945 = vmatprep.subr.mxu0 0.0
    %946 = vmatpush1.msra.mxu0 0.0
    %947 = vmatprep.subr.mxu0 0.0
    %v948 = vand.u32 %v619, 4294901760
    %949 = vmatpush1.msra.mxu0 %v948
    %950 = vmatprep.subr.mxu0 0.0
    %v951 = vand.u32 %v597, 4294901760
    %952 = vmatpush1.msra.mxu0 %v951
    %953 = vmatprep.subr.mxu0 0.0
    %v954 = vand.u32 %v590, 4294901760
    %955 = vmatpush1.msra.mxu0 %v954
    %956 = vmatprep.subr.mxu0 0.0
    %v957 = vand.u32 %v601, 4294901760
    %958 = vmatpush1.msra.mxu0 %v957
    %959 = vmatprep.subr.mxu0 0.0
    %v960 = vand.u32 %v566, 4294901760
    %961 = vmatpush1.msra.mxu0 %v960
    %962 = vmatprep.subr.mxu0 0.0
    %963 = vmatpush2.msra.mxu0 0.0
    %964 = vmatprep.subr.mxu0 0.0
    %965 = vmatpush2.msra.mxu0 0.0
    %966 = vmatprep.subr.mxu0 0.0
    %967 = vmatpush2.msra.mxu0 0.0
    %968 = vmatprep.subr.mxu0 0.0
    %969 = vmatpush2.msra.mxu0 0.0
    %970 = vmatprep.subr.mxu0 0.0
    %971 = vmatpush2.msra.mxu0 0.0
    %972 = vmatprep.subr.mxu0 0.0
    %973 = vmatpush2.msra.mxu0 0.0
    %974 = vmatprep.subr.mxu0 0.0
    %975 = vmatpush2.msra.mxu0 0.0
    %976 = vmatprep.subr.mxu0 0.0
    %977 = vmatpush2.msra.mxu0 0.0
    %978 = vmatprep.subr.mxu0 0.0
    %979 = vmatpush2.msra.mxu0 0.0
    %980 = vmatprep.subr.mxu0 0.0
    %981 = vmatpush2.msra.mxu0 0.0
    %982 = vmatprep.subr.mxu0 0.0
    %983 = vmatpush2.msra.mxu0 0.0
    %984 = vmatprep.subr.mxu0 0.0
    %985 = vmatpush2.msra.mxu0 0.0
    %986 = vmatprep.subr.mxu0 0.0
    %987 = vmatpush2.msra.mxu0 0.0
    %988 = vmatprep.subr.mxu0 0.0
    %989 = vmatpush2.msra.mxu0 0.0
    %990 = vmatprep.subr.mxu0 0.0
    %991 = vmatpush2.msra.mxu0 0.0
    %992 = vmatprep.subr.mxu0 0.0
    %993 = vmatpush2.msra.mxu0 0.0
    %994 = vmatprep.mubr.f32.mxu0 0.0
    %v995 = vand.u32 %v610, 4294901760
    %v996 = vsub.f32 %v610, %v995
    %v997 = vand.u32 %v996, 4294901760
    %998 = vmatmul.mubr.f32.gmra.mxu0 %v997
    %v999 = vpop.f32.mrf.mxu0
    %v1000 = vadd.f32 %v908, %v999
    %v1001 = vpop.f32.mrf.mxu0
    %1002 = vmatprep.mubr.f32.mxu0 0.0
    %v1003 = vand.u32 %v613, 4294901760
    %v1004 = vsub.f32 %v613, %v1003
    %v1005 = vand.u32 %v1004, 4294901760
    %1006 = vmatmul.mubr.f32.gmra.mxu0 %v1005
    %v1007 = vpop.f32.mrf.mxu0
    %v1008 = vadd.f32 %v915, %v1007
    %v1009 = vpop.f32.mrf.mxu0
    %1010 = vmatprep.mubr.f32.mxu0 0.0
    %v1011 = vand.u32 %v616, 4294901760
    %v1012 = vsub.f32 %v616, %v1011
    %v1013 = vand.u32 %v1012, 4294901760
    %1014 = vmatmul.mubr.f32.gmra.mxu0 %v1013
    %v1015 = vpop.f32.mrf.mxu0
    %v1016 = vadd.f32 %v922, %v1015
    %v1017 = vpop.f32.mrf.mxu0
    %1018 = vdwg.mxu0
    %1019 = vmatprep.subr.mxu0 0.0
    %1020 = vmatpush1.msra.mxu0 0.0
    %1021 = vmatprep.subr.mxu0 0.0
    %1022 = vmatpush1.msra.mxu0 0.0
    %1023 = vmatprep.subr.mxu0 0.0
    %1024 = vmatpush1.msra.mxu0 0.0
    %1025 = vmatprep.subr.mxu0 0.0
    %1026 = vmatpush1.msra.mxu0 0.0
    %1027 = vmatprep.subr.mxu0 0.0
    %1028 = vmatpush1.msra.mxu0 0.0
    %1029 = vmatprep.subr.mxu0 0.0
    %1030 = vmatpush1.msra.mxu0 0.0
    %1031 = vmatprep.subr.mxu0 0.0
    %1032 = vmatpush1.msra.mxu0 0.0
    %1033 = vmatprep.subr.mxu0 0.0
    %1034 = vmatpush1.msra.mxu0 0.0
    %1035 = vmatprep.subr.mxu0 0.0
    %1036 = vmatpush1.msra.mxu0 0.0
    %1037 = vmatprep.subr.mxu0 0.0
    %1038 = vmatpush1.msra.mxu0 0.0
    %1039 = vmatprep.subr.mxu0 0.0
    %1040 = vmatpush1.msra.mxu0 0.0
    %1041 = vmatprep.subr.mxu0 0.0
    %v1042 = vand.u32 %v619, 4294901760
    %v1043 = vsub.f32 %v619, %v1042
    %v1044 = vand.u32 %v1043, 4294901760
    %1045 = vmatpush1.msra.mxu0 %v1044
    %1046 = vmatprep.subr.mxu0 0.0
    %v1047 = vand.u32 %v597, 4294901760
    %v1048 = vsub.f32 %v597, %v1047
    %v1049 = vand.u32 %v1048, 4294901760
    %1050 = vmatpush1.msra.mxu0 %v1049
    %1051 = vmatprep.subr.mxu0 0.0
    %v1052 = vand.u32 %v590, 4294901760
    %v1053 = vsub.f32 %v590, %v1052
    %v1054 = vand.u32 %v1053, 4294901760
    %1055 = vmatpush1.msra.mxu0 %v1054
    %1056 = vmatprep.subr.mxu0 0.0
    %v1057 = vand.u32 %v601, 4294901760
    %v1058 = vsub.f32 %v601, %v1057
    %v1059 = vand.u32 %v1058, 4294901760
    %1060 = vmatpush1.msra.mxu0 %v1059
    %1061 = vmatprep.subr.mxu0 0.0
    %v1062 = vand.u32 %v566, 4294901760
    %v1063 = vsub.f32 %v566, %v1062
    %v1064 = vand.u32 %v1063, 4294901760
    %1065 = vmatpush1.msra.mxu0 %v1064
    %1066 = vmatprep.subr.mxu0 0.0
    %1067 = vmatpush2.msra.mxu0 0.0
    %1068 = vmatprep.subr.mxu0 0.0
    %1069 = vmatpush2.msra.mxu0 0.0
    %1070 = vmatprep.subr.mxu0 0.0
    %1071 = vmatpush2.msra.mxu0 0.0
    %1072 = vmatprep.subr.mxu0 0.0
    %1073 = vmatpush2.msra.mxu0 0.0
    %1074 = vmatprep.subr.mxu0 0.0
    %1075 = vmatpush2.msra.mxu0 0.0
    %1076 = vmatprep.subr.mxu0 0.0
    %1077 = vmatpush2.msra.mxu0 0.0
    %1078 = vmatprep.subr.mxu0 0.0
    %1079 = vmatpush2.msra.mxu0 0.0
    %1080 = vmatprep.subr.mxu0 0.0
    %1081 = vmatpush2.msra.mxu0 0.0
    %1082 = vmatprep.subr.mxu0 0.0
    %1083 = vmatpush2.msra.mxu0 0.0
    %1084 = vmatprep.subr.mxu0 0.0
    %1085 = vmatpush2.msra.mxu0 0.0
    %1086 = vmatprep.subr.mxu0 0.0
    %1087 = vmatpush2.msra.mxu0 0.0
    %1088 = vmatprep.subr.mxu0 0.0
    %1089 = vmatpush2.msra.mxu0 0.0
    %1090 = vmatprep.subr.mxu0 0.0
    %1091 = vmatpush2.msra.mxu0 0.0
    %1092 = vmatprep.subr.mxu0 0.0
    %1093 = vmatpush2.msra.mxu0 0.0
    %1094 = vmatprep.subr.mxu0 0.0
    %1095 = vmatpush2.msra.mxu0 0.0
    %1096 = vmatprep.subr.mxu0 0.0
    %1097 = vmatpush2.msra.mxu0 0.0
    %1098 = vmatprep.mubr.f32.mxu0 0.0
    %v1099 = vand.u32 %v610, 4294901760
    %1100 = vmatmul.mubr.f32.gmra.mxu0 %v1099
    %v1101 = vpop.f32.mrf.mxu0
    %v1102 = vadd.f32 %v1000, %v1101
    %v1103 = vpop.f32.mrf.mxu0
    %1104 = vmatprep.mubr.f32.mxu0 0.0
    %v1105 = vand.u32 %v613, 4294901760
    %1106 = vmatmul.mubr.f32.gmra.mxu0 %v1105
    %v1107 = vpop.f32.mrf.mxu0
    %v1108 = vadd.f32 %v1008, %v1107
    %v1109 = vpop.f32.mrf.mxu0
    %1110 = vmatprep.mubr.f32.mxu0 0.0
    %v1111 = vand.u32 %v616, 4294901760
    %1112 = vmatmul.mubr.f32.gmra.mxu0 %v1111
    %v1113 = vpop.f32.mrf.mxu0
    %v1114 = vadd.f32 %v1016, %v1113
    %v1115 = vpop.f32.mrf.mxu0
    %1116 = vdwg.mxu0
    %1117 = vmatprep.subr.mxu0 0.0
    %1118 = vmatpush1.msra.mxu0 0.0
    %1119 = vmatprep.subr.mxu0 0.0
    %1120 = vmatpush1.msra.mxu0 0.0
    %1121 = vmatprep.subr.mxu0 0.0
    %1122 = vmatpush1.msra.mxu0 0.0
    %1123 = vmatprep.subr.mxu0 0.0
    %1124 = vmatpush1.msra.mxu0 0.0
    %1125 = vmatprep.subr.mxu0 0.0
    %1126 = vmatpush1.msra.mxu0 0.0
    %1127 = vmatprep.subr.mxu0 0.0
    %1128 = vmatpush1.msra.mxu0 0.0
    %1129 = vmatprep.subr.mxu0 0.0
    %1130 = vmatpush1.msra.mxu0 0.0
    %1131 = vmatprep.subr.mxu0 0.0
    %1132 = vmatpush1.msra.mxu0 0.0
    %1133 = vmatprep.subr.mxu0 0.0
    %1134 = vmatpush1.msra.mxu0 0.0
    %1135 = vmatprep.subr.mxu0 0.0
    %1136 = vmatpush1.msra.mxu0 0.0
    %1137 = vmatprep.subr.mxu0 0.0
    %1138 = vmatpush1.msra.mxu0 0.0
    %1139 = vmatprep.subr.mxu0 0.0
    %v1140 = vand.u32 %v619, 4294901760
    %1141 = vmatpush1.msra.mxu0 %v1140
    %1142 = vmatprep.subr.mxu0 0.0
    %v1143 = vand.u32 %v597, 4294901760
    %1144 = vmatpush1.msra.mxu0 %v1143
    %1145 = vmatprep.subr.mxu0 0.0
    %v1146 = vand.u32 %v590, 4294901760
    %1147 = vmatpush1.msra.mxu0 %v1146
    %1148 = vmatprep.subr.mxu0 0.0
    %v1149 = vand.u32 %v601, 4294901760
    %1150 = vmatpush1.msra.mxu0 %v1149
    %1151 = vmatprep.subr.mxu0 0.0
    %v1152 = vand.u32 %v566, 4294901760
    %1153 = vmatpush1.msra.mxu0 %v1152
    %1154 = vmatprep.subr.mxu0 0.0
    %1155 = vmatpush2.msra.mxu0 0.0
    %1156 = vmatprep.subr.mxu0 0.0
    %1157 = vmatpush2.msra.mxu0 0.0
    %1158 = vmatprep.subr.mxu0 0.0
    %1159 = vmatpush2.msra.mxu0 0.0
    %1160 = vmatprep.subr.mxu0 0.0
    %1161 = vmatpush2.msra.mxu0 0.0
    %1162 = vmatprep.subr.mxu0 0.0
    %1163 = vmatpush2.msra.mxu0 0.0
    %1164 = vmatprep.subr.mxu0 0.0
    %1165 = vmatpush2.msra.mxu0 0.0
    %1166 = vmatprep.subr.mxu0 0.0
    %1167 = vmatpush2.msra.mxu0 0.0
    %1168 = vmatprep.subr.mxu0 0.0
    %1169 = vmatpush2.msra.mxu0 0.0
    %1170 = vmatprep.subr.mxu0 0.0
    %1171 = vmatpush2.msra.mxu0 0.0
    %1172 = vmatprep.subr.mxu0 0.0
    %1173 = vmatpush2.msra.mxu0 0.0
    %1174 = vmatprep.subr.mxu0 0.0
    %1175 = vmatpush2.msra.mxu0 0.0
    %1176 = vmatprep.subr.mxu0 0.0
    %1177 = vmatpush2.msra.mxu0 0.0
    %1178 = vmatprep.subr.mxu0 0.0
    %1179 = vmatpush2.msra.mxu0 0.0
    %1180 = vmatprep.subr.mxu0 0.0
    %1181 = vmatpush2.msra.mxu0 0.0
    %1182 = vmatprep.subr.mxu0 0.0
    %1183 = vmatpush2.msra.mxu0 0.0
    %1184 = vmatprep.subr.mxu0 0.0
    %1185 = vmatpush2.msra.mxu0 0.0
    %1186 = vmatprep.mubr.f32.mxu0 0.0
    %v1187 = vand.u32 %v610, 4294901760
    %1188 = vmatmul.mubr.f32.gmra.mxu0 %v1187
    %v1189 = vpop.f32.mrf.mxu0
    %v1190 = vadd.f32 %v1102, %v1189
    %v1191 = vpop.f32.mrf.mxu0
    %1192 = vmatprep.mubr.f32.mxu0 0.0
    %v1193 = vand.u32 %v613, 4294901760
    %1194 = vmatmul.mubr.f32.gmra.mxu0 %v1193
    %v1195 = vpop.f32.mrf.mxu0
    %v1196 = vadd.f32 %v1108, %v1195
    %v1197 = vpop.f32.mrf.mxu0
    %1198 = vmatprep.mubr.f32.mxu0 0.0
    %v1199 = vand.u32 %v616, 4294901760
    %1200 = vmatmul.mubr.f32.gmra.mxu0 %v1199
    %v1201 = vpop.f32.mrf.mxu0
    %v1202 = vadd.f32 %v1114, %v1201
    %v1203 = vpop.f32.mrf.mxu0
    %1204 = vdwg.mxu0
    %vm1205 = vcmask 64512
    %v1207 = vsel %vm1205, %v1190, 0
    %v1210 = vsel %vm1205, %v1196, 0
    %v1213 = vsel %vm1205, %v1202, 0
    %1215 = vmatprep.subr.mxu0 0.0
    %1216 = vmatpush1.xpose.msra.mxu0 0.0
    %1217 = vmatprep.subr.mxu0 0.0
    %1218 = vmatpush1.xpose.msra.mxu0 0.0
    %1219 = vmatprep.subr.mxu0 0.0
    %1220 = vmatpush1.xpose.msra.mxu0 0.0
    %1221 = vmatprep.subr.mxu0 0.0
    %1222 = vmatpush1.xpose.msra.mxu0 0.0
    %1223 = vmatprep.subr.mxu0 0.0
    %1224 = vmatpush1.xpose.msra.mxu0 0.0
    %1225 = vmatprep.subr.mxu0 0.0
    %1226 = vmatpush1.xpose.msra.mxu0 0.0
    %1227 = vmatprep.subr.mxu0 0.0
    %1228 = vmatpush1.xpose.msra.mxu0 0.0
    %1229 = vmatprep.subr.mxu0 0.0
    %1230 = vmatpush1.xpose.msra.mxu0 0.0
    %1231 = vmatprep.subr.mxu0 0.0
    %1232 = vmatpush1.xpose.msra.mxu0 0.0
    %1233 = vmatprep.subr.mxu0 0.0
    %1234 = vmatpush1.xpose.msra.mxu0 0.0
    %1235 = vmatprep.subr.mxu0 0.0
    %1236 = vmatpush1.xpose.msra.mxu0 0.0
    %1237 = vmatprep.subr.mxu0 0.0
    %1238 = vmatpush1.xpose.msra.mxu0 0.0
    %1239 = vmatprep.subr.mxu0 0.0
    %1240 = vmatpush1.xpose.msra.mxu0 0.0
    %1241 = vmatprep.subr.mxu0 0.0
    %v1242 = vand.u32 %v1213, 4294901760
    %1243 = vmatpush1.xpose.msra.mxu0 %v1242
    %1244 = vmatprep.subr.mxu0 0.0
    %v1245 = vand.u32 %v1210, 4294901760
    %1246 = vmatpush1.xpose.msra.mxu0 %v1245
    %1247 = vmatprep.subr.mxu0 0.0
    %v1248 = vand.u32 %v1207, 4294901760
    %1249 = vmatpush1.xpose.msra.mxu0 %v1248
    %1250 = vmatprep.subr.mxu0 0.0
    %1251 = vmatpush2.xpose.msra.mxu0 0.0
    %1252 = vmatprep.subr.mxu0 0.0
    %1253 = vmatpush2.xpose.msra.mxu0 0.0
    %1254 = vmatprep.subr.mxu0 0.0
    %1255 = vmatpush2.xpose.msra.mxu0 0.0
    %1256 = vmatprep.subr.mxu0 0.0
    %1257 = vmatpush2.xpose.msra.mxu0 0.0
    %1258 = vmatprep.subr.mxu0 0.0
    %1259 = vmatpush2.xpose.msra.mxu0 0.0
    %1260 = vmatprep.subr.mxu0 0.0
    %1261 = vmatpush2.xpose.msra.mxu0 0.0
    %1262 = vmatprep.subr.mxu0 0.0
    %1263 = vmatpush2.xpose.msra.mxu0 0.0
    %1264 = vmatprep.subr.mxu0 0.0
    %1265 = vmatpush2.xpose.msra.mxu0 0.0
    %1266 = vmatprep.subr.mxu0 0.0
    %1267 = vmatpush2.xpose.msra.mxu0 0.0
    %1268 = vmatprep.subr.mxu0 0.0
    %1269 = vmatpush2.xpose.msra.mxu0 0.0
    %1270 = vmatprep.subr.mxu0 0.0
    %1271 = vmatpush2.xpose.msra.mxu0 0.0
    %1272 = vmatprep.subr.mxu0 0.0
    %1273 = vmatpush2.xpose.msra.mxu0 0.0
    %1274 = vmatprep.subr.mxu0 0.0
    %1275 = vmatpush2.xpose.msra.mxu0 0.0
    %1276 = vmatprep.subr.mxu0 0.0
    %1277 = vmatpush2.xpose.msra.mxu0 0.0
    %1278 = vmatprep.subr.mxu0 0.0
    %1279 = vmatpush2.xpose.msra.mxu0 0.0
    %1280 = vmatprep.subr.mxu0 0.0
    %1281 = vmatpush2.xpose.msra.mxu0 0.0
    %1282 = vmatprep.mubr.f32.mxu0 0.0
    %v1283 = vand.u32 %v1207, 4294901760
    %v1284 = vsub.f32 %v1207, %v1283
    %v1285 = vand.u32 %v1284, 4294901760
    %v1286 = vsub.f32 %v1284, %v1285
    %v1287 = vand.u32 %v1286, 4294901760
    %1288 = vmatmul.mubr.f32.gmra.mxu0 %v1287
    %v1289 = vpop.f32.mrf.mxu0
    %v1290 = vadd.f32 0.0, %v1289
    %v1291 = vpop.f32.mrf.mxu0
    %1292 = vmatprep.mubr.f32.mxu0 0.0
    %v1293 = vand.u32 %v1210, 4294901760
    %v1294 = vsub.f32 %v1210, %v1293
    %v1295 = vand.u32 %v1294, 4294901760
    %v1296 = vsub.f32 %v1294, %v1295
    %v1297 = vand.u32 %v1296, 4294901760
    %1298 = vmatmul.mubr.f32.gmra.mxu0 %v1297
    %v1299 = vpop.f32.mrf.mxu0
    %v1300 = vadd.f32 0.0, %v1299
    %v1301 = vpop.f32.mrf.mxu0
    %1302 = vmatprep.mubr.f32.mxu0 0.0
    %v1303 = vand.u32 %v1213, 4294901760
    %v1304 = vsub.f32 %v1213, %v1303
    %v1305 = vand.u32 %v1304, 4294901760
    %v1306 = vsub.f32 %v1304, %v1305
    %v1307 = vand.u32 %v1306, 4294901760
    %1308 = vmatmul.mubr.f32.gmra.mxu0 %v1307
    %v1309 = vpop.f32.mrf.mxu0
    %v1310 = vadd.f32 0.0, %v1309
    %v1311 = vpop.f32.mrf.mxu0
    %1312 = vdwg.mxu0
    %1313 = vmatprep.subr.mxu0 0.0
    %1314 = vmatpush1.xpose.msra.mxu0 0.0
    %1315 = vmatprep.subr.mxu0 0.0
    %1316 = vmatpush1.xpose.msra.mxu0 0.0
    %1317 = vmatprep.subr.mxu0 0.0
    %1318 = vmatpush1.xpose.msra.mxu0 0.0
    %1319 = vmatprep.subr.mxu0 0.0
    %1320 = vmatpush1.xpose.msra.mxu0 0.0
    %1321 = vmatprep.subr.mxu0 0.0
    %1322 = vmatpush1.xpose.msra.mxu0 0.0
    %1323 = vmatprep.subr.mxu0 0.0
    %1324 = vmatpush1.xpose.msra.mxu0 0.0
    %1325 = vmatprep.subr.mxu0 0.0
    %1326 = vmatpush1.xpose.msra.mxu0 0.0
    %1327 = vmatprep.subr.mxu0 0.0
    %1328 = vmatpush1.xpose.msra.mxu0 0.0
    %1329 = vmatprep.subr.mxu0 0.0
    %1330 = vmatpush1.xpose.msra.mxu0 0.0
    %1331 = vmatprep.subr.mxu0 0.0
    %1332 = vmatpush1.xpose.msra.mxu0 0.0
    %1333 = vmatprep.subr.mxu0 0.0
    %1334 = vmatpush1.xpose.msra.mxu0 0.0
    %1335 = vmatprep.subr.mxu0 0.0
    %1336 = vmatpush1.xpose.msra.mxu0 0.0
    %1337 = vmatprep.subr.mxu0 0.0
    %1338 = vmatpush1.xpose.msra.mxu0 0.0
    %1339 = vmatprep.subr.mxu0 0.0
    %v1340 = vand.u32 %v1213, 4294901760
    %v1341 = vsub.f32 %v1213, %v1340
    %v1342 = vand.u32 %v1341, 4294901760
    %v1343 = vsub.f32 %v1341, %v1342
    %v1344 = vand.u32 %v1343, 4294901760
    %1345 = vmatpush1.xpose.msra.mxu0 %v1344
    %1346 = vmatprep.subr.mxu0 0.0
    %v1347 = vand.u32 %v1210, 4294901760
    %v1348 = vsub.f32 %v1210, %v1347
    %v1349 = vand.u32 %v1348, 4294901760
    %v1350 = vsub.f32 %v1348, %v1349
    %v1351 = vand.u32 %v1350, 4294901760
    %1352 = vmatpush1.xpose.msra.mxu0 %v1351
    %1353 = vmatprep.subr.mxu0 0.0
    %v1354 = vand.u32 %v1207, 4294901760
    %v1355 = vsub.f32 %v1207, %v1354
    %v1356 = vand.u32 %v1355, 4294901760
    %v1357 = vsub.f32 %v1355, %v1356
    %v1358 = vand.u32 %v1357, 4294901760
    %1359 = vmatpush1.xpose.msra.mxu0 %v1358
    %1360 = vmatprep.subr.mxu0 0.0
    %1361 = vmatpush2.xpose.msra.mxu0 0.0
    %1362 = vmatprep.subr.mxu0 0.0
    %1363 = vmatpush2.xpose.msra.mxu0 0.0
    %1364 = vmatprep.subr.mxu0 0.0
    %1365 = vmatpush2.xpose.msra.mxu0 0.0
    %1366 = vmatprep.subr.mxu0 0.0
    %1367 = vmatpush2.xpose.msra.mxu0 0.0
    %1368 = vmatprep.subr.mxu0 0.0
    %1369 = vmatpush2.xpose.msra.mxu0 0.0
    %1370 = vmatprep.subr.mxu0 0.0
    %1371 = vmatpush2.xpose.msra.mxu0 0.0
    %1372 = vmatprep.subr.mxu0 0.0
    %1373 = vmatpush2.xpose.msra.mxu0 0.0
    %1374 = vmatprep.subr.mxu0 0.0
    %1375 = vmatpush2.xpose.msra.mxu0 0.0
    %1376 = vmatprep.subr.mxu0 0.0
    %1377 = vmatpush2.xpose.msra.mxu0 0.0
    %1378 = vmatprep.subr.mxu0 0.0
    %1379 = vmatpush2.xpose.msra.mxu0 0.0
    %1380 = vmatprep.subr.mxu0 0.0
    %1381 = vmatpush2.xpose.msra.mxu0 0.0
    %1382 = vmatprep.subr.mxu0 0.0
    %1383 = vmatpush2.xpose.msra.mxu0 0.0
    %1384 = vmatprep.subr.mxu0 0.0
    %1385 = vmatpush2.xpose.msra.mxu0 0.0
    %1386 = vmatprep.subr.mxu0 0.0
    %1387 = vmatpush2.xpose.msra.mxu0 0.0
    %1388 = vmatprep.subr.mxu0 0.0
    %1389 = vmatpush2.xpose.msra.mxu0 0.0
    %1390 = vmatprep.subr.mxu0 0.0
    %1391 = vmatpush2.xpose.msra.mxu0 0.0
    %1392 = vmatprep.mubr.f32.mxu0 0.0
    %v1393 = vand.u32 %v1207, 4294901760
    %1394 = vmatmul.mubr.f32.gmra.mxu0 %v1393
    %v1395 = vpop.f32.mrf.mxu0
    %v1396 = vadd.f32 %v1290, %v1395
    %v1397 = vpop.f32.mrf.mxu0
    %1398 = vmatprep.mubr.f32.mxu0 0.0
    %v1399 = vand.u32 %v1210, 4294901760
    %1400 = vmatmul.mubr.f32.gmra.mxu0 %v1399
    %v1401 = vpop.f32.mrf.mxu0
    %v1402 = vadd.f32 %v1300, %v1401
    %v1403 = vpop.f32.mrf.mxu0
    %1404 = vmatprep.mubr.f32.mxu0 0.0
    %v1405 = vand.u32 %v1213, 4294901760
    %1406 = vmatmul.mubr.f32.gmra.mxu0 %v1405
    %v1407 = vpop.f32.mrf.mxu0
    %v1408 = vadd.f32 %v1310, %v1407
    %v1409 = vpop.f32.mrf.mxu0
    %1410 = vdwg.mxu0
    %1411 = vmatprep.subr.mxu0 0.0
    %1412 = vmatpush1.xpose.msra.mxu0 0.0
    %1413 = vmatprep.subr.mxu0 0.0
    %1414 = vmatpush1.xpose.msra.mxu0 0.0
    %1415 = vmatprep.subr.mxu0 0.0
    %1416 = vmatpush1.xpose.msra.mxu0 0.0
    %1417 = vmatprep.subr.mxu0 0.0
    %1418 = vmatpush1.xpose.msra.mxu0 0.0
    %1419 = vmatprep.subr.mxu0 0.0
    %1420 = vmatpush1.xpose.msra.mxu0 0.0
    %1421 = vmatprep.subr.mxu0 0.0
    %1422 = vmatpush1.xpose.msra.mxu0 0.0
    %1423 = vmatprep.subr.mxu0 0.0
    %1424 = vmatpush1.xpose.msra.mxu0 0.0
    %1425 = vmatprep.subr.mxu0 0.0
    %1426 = vmatpush1.xpose.msra.mxu0 0.0
    %1427 = vmatprep.subr.mxu0 0.0
    %1428 = vmatpush1.xpose.msra.mxu0 0.0
    %1429 = vmatprep.subr.mxu0 0.0
    %1430 = vmatpush1.xpose.msra.mxu0 0.0
    %1431 = vmatprep.subr.mxu0 0.0
    %1432 = vmatpush1.xpose.msra.mxu0 0.0
    %1433 = vmatprep.subr.mxu0 0.0
    %1434 = vmatpush1.xpose.msra.mxu0 0.0
    %1435 = vmatprep.subr.mxu0 0.0
    %1436 = vmatpush1.xpose.msra.mxu0 0.0
    %1437 = vmatprep.subr.mxu0 0.0
    %v1438 = vand.u32 %v1213, 4294901760
    %v1439 = vsub.f32 %v1213, %v1438
    %1440 = vmatpush1.xpose.msra.mxu0 %v1439
    %1441 = vmatprep.subr.mxu0 0.0
    %v1442 = vand.u32 %v1210, 4294901760
    %v1443 = vsub.f32 %v1210, %v1442
    %1444 = vmatpush1.xpose.msra.mxu0 %v1443
    %1445 = vmatprep.subr.mxu0 0.0
    %v1446 = vand.u32 %v1207, 4294901760
    %v1447 = vsub.f32 %v1207, %v1446
    %1448 = vmatpush1.xpose.msra.mxu0 %v1447
    %1449 = vmatprep.subr.mxu0 0.0
    %1450 = vmatpush2.xpose.msra.mxu0 0.0
    %1451 = vmatprep.subr.mxu0 0.0
    %1452 = vmatpush2.xpose.msra.mxu0 0.0
    %1453 = vmatprep.subr.mxu0 0.0
    %1454 = vmatpush2.xpose.msra.mxu0 0.0
    %1455 = vmatprep.subr.mxu0 0.0
    %1456 = vmatpush2.xpose.msra.mxu0 0.0
    %1457 = vmatprep.subr.mxu0 0.0
    %1458 = vmatpush2.xpose.msra.mxu0 0.0
    %1459 = vmatprep.subr.mxu0 0.0
    %1460 = vmatpush2.xpose.msra.mxu0 0.0
    %1461 = vmatprep.subr.mxu0 0.0
    %1462 = vmatpush2.xpose.msra.mxu0 0.0
    %1463 = vmatprep.subr.mxu0 0.0
    %1464 = vmatpush2.xpose.msra.mxu0 0.0
    %1465 = vmatprep.subr.mxu0 0.0
    %1466 = vmatpush2.xpose.msra.mxu0 0.0
    %1467 = vmatprep.subr.mxu0 0.0
    %1468 = vmatpush2.xpose.msra.mxu0 0.0
    %1469 = vmatprep.subr.mxu0 0.0
    %1470 = vmatpush2.xpose.msra.mxu0 0.0
    %1471 = vmatprep.subr.mxu0 0.0
    %1472 = vmatpush2.xpose.msra.mxu0 0.0
    %1473 = vmatprep.subr.mxu0 0.0
    %1474 = vmatpush2.xpose.msra.mxu0 0.0
    %1475 = vmatprep.subr.mxu0 0.0
    %1476 = vmatpush2.xpose.msra.mxu0 0.0
    %1477 = vmatprep.subr.mxu0 0.0
    %1478 = vmatpush2.xpose.msra.mxu0 0.0
    %1479 = vmatprep.subr.mxu0 0.0
    %1480 = vmatpush2.xpose.msra.mxu0 0.0
    %1481 = vmatprep.mubr.f32.mxu0 0.0
    %v1482 = vand.u32 %v1207, 4294901760
    %v1483 = vsub.f32 %v1207, %v1482
    %1484 = vmatmul.mubr.f32.gmra.mxu0 %v1483
    %v1485 = vpop.f32.mrf.mxu0
    %v1486 = vadd.f32 %v1396, %v1485
    %v1487 = vpop.f32.mrf.mxu0
    %1488 = vmatprep.mubr.f32.mxu0 0.0
    %v1489 = vand.u32 %v1210, 4294901760
    %v1490 = vsub.f32 %v1210, %v1489
    %1491 = vmatmul.mubr.f32.gmra.mxu0 %v1490
    %v1492 = vpop.f32.mrf.mxu0
    %v1493 = vadd.f32 %v1402, %v1492
    %v1494 = vpop.f32.mrf.mxu0
    %1495 = vmatprep.mubr.f32.mxu0 0.0
    %v1496 = vand.u32 %v1213, 4294901760
    %v1497 = vsub.f32 %v1213, %v1496
    %1498 = vmatmul.mubr.f32.gmra.mxu0 %v1497
    %v1499 = vpop.f32.mrf.mxu0
    %v1500 = vadd.f32 %v1408, %v1499
    %v1501 = vpop.f32.mrf.mxu0
    %1502 = vdwg.mxu0
    %1503 = vmatprep.subr.mxu0 0.0
    %1504 = vmatpush1.xpose.msra.mxu0 0.0
    %1505 = vmatprep.subr.mxu0 0.0
    %1506 = vmatpush1.xpose.msra.mxu0 0.0
    %1507 = vmatprep.subr.mxu0 0.0
    %1508 = vmatpush1.xpose.msra.mxu0 0.0
    %1509 = vmatprep.subr.mxu0 0.0
    %1510 = vmatpush1.xpose.msra.mxu0 0.0
    %1511 = vmatprep.subr.mxu0 0.0
    %1512 = vmatpush1.xpose.msra.mxu0 0.0
    %1513 = vmatprep.subr.mxu0 0.0
    %1514 = vmatpush1.xpose.msra.mxu0 0.0
    %1515 = vmatprep.subr.mxu0 0.0
    %1516 = vmatpush1.xpose.msra.mxu0 0.0
    %1517 = vmatprep.subr.mxu0 0.0
    %1518 = vmatpush1.xpose.msra.mxu0 0.0
    %1519 = vmatprep.subr.mxu0 0.0
    %1520 = vmatpush1.xpose.msra.mxu0 0.0
    %1521 = vmatprep.subr.mxu0 0.0
    %1522 = vmatpush1.xpose.msra.mxu0 0.0
    %1523 = vmatprep.subr.mxu0 0.0
    %1524 = vmatpush1.xpose.msra.mxu0 0.0
    %1525 = vmatprep.subr.mxu0 0.0
    %1526 = vmatpush1.xpose.msra.mxu0 0.0
    %1527 = vmatprep.subr.mxu0 0.0
    %1528 = vmatpush1.xpose.msra.mxu0 0.0
    %1529 = vmatprep.subr.mxu0 0.0
    %v1530 = vand.u32 %v1213, 4294901760
    %1531 = vmatpush1.xpose.msra.mxu0 %v1530
    %1532 = vmatprep.subr.mxu0 0.0
    %v1533 = vand.u32 %v1210, 4294901760
    %1534 = vmatpush1.xpose.msra.mxu0 %v1533
    %1535 = vmatprep.subr.mxu0 0.0
    %v1536 = vand.u32 %v1207, 4294901760
    %1537 = vmatpush1.xpose.msra.mxu0 %v1536
    %1538 = vmatprep.subr.mxu0 0.0
    %1539 = vmatpush2.xpose.msra.mxu0 0.0
    %1540 = vmatprep.subr.mxu0 0.0
    %1541 = vmatpush2.xpose.msra.mxu0 0.0
    %1542 = vmatprep.subr.mxu0 0.0
    %1543 = vmatpush2.xpose.msra.mxu0 0.0
    %1544 = vmatprep.subr.mxu0 0.0
    %1545 = vmatpush2.xpose.msra.mxu0 0.0
    %1546 = vmatprep.subr.mxu0 0.0
    %1547 = vmatpush2.xpose.msra.mxu0 0.0
    %1548 = vmatprep.subr.mxu0 0.0
    %1549 = vmatpush2.xpose.msra.mxu0 0.0
    %1550 = vmatprep.subr.mxu0 0.0
    %1551 = vmatpush2.xpose.msra.mxu0 0.0
    %1552 = vmatprep.subr.mxu0 0.0
    %1553 = vmatpush2.xpose.msra.mxu0 0.0
    %1554 = vmatprep.subr.mxu0 0.0
    %1555 = vmatpush2.xpose.msra.mxu0 0.0
    %1556 = vmatprep.subr.mxu0 0.0
    %1557 = vmatpush2.xpose.msra.mxu0 0.0
    %1558 = vmatprep.subr.mxu0 0.0
    %1559 = vmatpush2.xpose.msra.mxu0 0.0
    %1560 = vmatprep.subr.mxu0 0.0
    %1561 = vmatpush2.xpose.msra.mxu0 0.0
    %1562 = vmatprep.subr.mxu0 0.0
    %1563 = vmatpush2.xpose.msra.mxu0 0.0
    %1564 = vmatprep.subr.mxu0 0.0
    %1565 = vmatpush2.xpose.msra.mxu0 0.0
    %1566 = vmatprep.subr.mxu0 0.0
    %1567 = vmatpush2.xpose.msra.mxu0 0.0
    %1568 = vmatprep.subr.mxu0 0.0
    %1569 = vmatpush2.xpose.msra.mxu0 0.0
    %1570 = vmatprep.mubr.f32.mxu0 0.0
    %v1571 = vand.u32 %v1207, 4294901760
    %v1572 = vsub.f32 %v1207, %v1571
    %v1573 = vand.u32 %v1572, 4294901760
    %1574 = vmatmul.mubr.f32.gmra.mxu0 %v1573
    %v1575 = vpop.f32.mrf.mxu0
    %v1576 = vadd.f32 %v1486, %v1575
    %v1577 = vpop.f32.mrf.mxu0
    %1578 = vmatprep.mubr.f32.mxu0 0.0
    %v1579 = vand.u32 %v1210, 4294901760
    %v1580 = vsub.f32 %v1210, %v1579
    %v1581 = vand.u32 %v1580, 4294901760
    %1582 = vmatmul.mubr.f32.gmra.mxu0 %v1581
    %v1583 = vpop.f32.mrf.mxu0
    %v1584 = vadd.f32 %v1493, %v1583
    %v1585 = vpop.f32.mrf.mxu0
    %1586 = vmatprep.mubr.f32.mxu0 0.0
    %v1587 = vand.u32 %v1213, 4294901760
    %v1588 = vsub.f32 %v1213, %v1587
    %v1589 = vand.u32 %v1588, 4294901760
    %1590 = vmatmul.mubr.f32.gmra.mxu0 %v1589
    %v1591 = vpop.f32.mrf.mxu0
    %v1592 = vadd.f32 %v1500, %v1591
    %v1593 = vpop.f32.mrf.mxu0
    %1594 = vdwg.mxu0
    %1595 = vmatprep.subr.mxu0 0.0
    %1596 = vmatpush1.xpose.msra.mxu0 0.0
    %1597 = vmatprep.subr.mxu0 0.0
    %1598 = vmatpush1.xpose.msra.mxu0 0.0
    %1599 = vmatprep.subr.mxu0 0.0
    %1600 = vmatpush1.xpose.msra.mxu0 0.0
    %1601 = vmatprep.subr.mxu0 0.0
    %1602 = vmatpush1.xpose.msra.mxu0 0.0
    %1603 = vmatprep.subr.mxu0 0.0
    %1604 = vmatpush1.xpose.msra.mxu0 0.0
    %1605 = vmatprep.subr.mxu0 0.0
    %1606 = vmatpush1.xpose.msra.mxu0 0.0
    %1607 = vmatprep.subr.mxu0 0.0
    %1608 = vmatpush1.xpose.msra.mxu0 0.0
    %1609 = vmatprep.subr.mxu0 0.0
    %1610 = vmatpush1.xpose.msra.mxu0 0.0
    %1611 = vmatprep.subr.mxu0 0.0
    %1612 = vmatpush1.xpose.msra.mxu0 0.0
    %1613 = vmatprep.subr.mxu0 0.0
    %1614 = vmatpush1.xpose.msra.mxu0 0.0
    %1615 = vmatprep.subr.mxu0 0.0
    %1616 = vmatpush1.xpose.msra.mxu0 0.0
    %1617 = vmatprep.subr.mxu0 0.0
    %1618 = vmatpush1.xpose.msra.mxu0 0.0
    %1619 = vmatprep.subr.mxu0 0.0
    %1620 = vmatpush1.xpose.msra.mxu0 0.0
    %1621 = vmatprep.subr.mxu0 0.0
    %v1622 = vand.u32 %v1213, 4294901760
    %v1623 = vsub.f32 %v1213, %v1622
    %v1624 = vand.u32 %v1623, 4294901760
    %1625 = vmatpush1.xpose.msra.mxu0 %v1624
    %1626 = vmatprep.subr.mxu0 0.0
    %v1627 = vand.u32 %v1210, 4294901760
    %v1628 = vsub.f32 %v1210, %v1627
    %v1629 = vand.u32 %v1628, 4294901760
    %1630 = vmatpush1.xpose.msra.mxu0 %v1629
    %1631 = vmatprep.subr.mxu0 0.0
    %v1632 = vand.u32 %v1207, 4294901760
    %v1633 = vsub.f32 %v1207, %v1632
    %v1634 = vand.u32 %v1633, 4294901760
    %1635 = vmatpush1.xpose.msra.mxu0 %v1634
    %1636 = vmatprep.subr.mxu0 0.0
    %1637 = vmatpush2.xpose.msra.mxu0 0.0
    %1638 = vmatprep.subr.mxu0 0.0
    %1639 = vmatpush2.xpose.msra.mxu0 0.0
    %1640 = vmatprep.subr.mxu0 0.0
    %1641 = vmatpush2.xpose.msra.mxu0 0.0
    %1642 = vmatprep.subr.mxu0 0.0
    %1643 = vmatpush2.xpose.msra.mxu0 0.0
    %1644 = vmatprep.subr.mxu0 0.0
    %1645 = vmatpush2.xpose.msra.mxu0 0.0
    %1646 = vmatprep.subr.mxu0 0.0
    %1647 = vmatpush2.xpose.msra.mxu0 0.0
    %1648 = vmatprep.subr.mxu0 0.0
    %1649 = vmatpush2.xpose.msra.mxu0 0.0
    %1650 = vmatprep.subr.mxu0 0.0
    %1651 = vmatpush2.xpose.msra.mxu0 0.0
    %1652 = vmatprep.subr.mxu0 0.0
    %1653 = vmatpush2.xpose.msra.mxu0 0.0
    %1654 = vmatprep.subr.mxu0 0.0
    %1655 = vmatpush2.xpose.msra.mxu0 0.0
    %1656 = vmatprep.subr.mxu0 0.0
    %1657 = vmatpush2.xpose.msra.mxu0 0.0
    %1658 = vmatprep.subr.mxu0 0.0
    %1659 = vmatpush2.xpose.msra.mxu0 0.0
    %1660 = vmatprep.subr.mxu0 0.0
    %1661 = vmatpush2.xpose.msra.mxu0 0.0
    %1662 = vmatprep.subr.mxu0 0.0
    %1663 = vmatpush2.xpose.msra.mxu0 0.0
    %1664 = vmatprep.subr.mxu0 0.0
    %1665 = vmatpush2.xpose.msra.mxu0 0.0
    %1666 = vmatprep.subr.mxu0 0.0
    %1667 = vmatpush2.xpose.msra.mxu0 0.0
    %1668 = vmatprep.mubr.f32.mxu0 0.0
    %v1669 = vand.u32 %v1207, 4294901760
    %1670 = vmatmul.mubr.f32.gmra.mxu0 %v1669
    %v1671 = vpop.f32.mrf.mxu0
    %v1672 = vadd.f32 %v1576, %v1671
    %v1673 = vpop.f32.mrf.mxu0
    %1674 = vmatprep.mubr.f32.mxu0 0.0
    %v1675 = vand.u32 %v1210, 4294901760
    %1676 = vmatmul.mubr.f32.gmra.mxu0 %v1675
    %v1677 = vpop.f32.mrf.mxu0
    %v1678 = vadd.f32 %v1584, %v1677
    %v1679 = vpop.f32.mrf.mxu0
    %1680 = vmatprep.mubr.f32.mxu0 0.0
    %v1681 = vand.u32 %v1213, 4294901760
    %1682 = vmatmul.mubr.f32.gmra.mxu0 %v1681
    %v1683 = vpop.f32.mrf.mxu0
    %v1684 = vadd.f32 %v1592, %v1683
    %v1685 = vpop.f32.mrf.mxu0
    %1686 = vdwg.mxu0
    %1687 = vmatprep.subr.mxu0 0.0
    %1688 = vmatpush1.xpose.msra.mxu0 0.0
    %1689 = vmatprep.subr.mxu0 0.0
    %1690 = vmatpush1.xpose.msra.mxu0 0.0
    %1691 = vmatprep.subr.mxu0 0.0
    %1692 = vmatpush1.xpose.msra.mxu0 0.0
    %1693 = vmatprep.subr.mxu0 0.0
    %1694 = vmatpush1.xpose.msra.mxu0 0.0
    %1695 = vmatprep.subr.mxu0 0.0
    %1696 = vmatpush1.xpose.msra.mxu0 0.0
    %1697 = vmatprep.subr.mxu0 0.0
    %1698 = vmatpush1.xpose.msra.mxu0 0.0
    %1699 = vmatprep.subr.mxu0 0.0
    %1700 = vmatpush1.xpose.msra.mxu0 0.0
    %1701 = vmatprep.subr.mxu0 0.0
    %1702 = vmatpush1.xpose.msra.mxu0 0.0
    %1703 = vmatprep.subr.mxu0 0.0
    %1704 = vmatpush1.xpose.msra.mxu0 0.0
    %1705 = vmatprep.subr.mxu0 0.0
    %1706 = vmatpush1.xpose.msra.mxu0 0.0
    %1707 = vmatprep.subr.mxu0 0.0
    %1708 = vmatpush1.xpose.msra.mxu0 0.0
    %1709 = vmatprep.subr.mxu0 0.0
    %1710 = vmatpush1.xpose.msra.mxu0 0.0
    %1711 = vmatprep.subr.mxu0 0.0
    %1712 = vmatpush1.xpose.msra.mxu0 0.0
    %1713 = vmatprep.subr.mxu0 0.0
    %v1714 = vand.u32 %v1213, 4294901760
    %1715 = vmatpush1.xpose.msra.mxu0 %v1714
    %1716 = vmatprep.subr.mxu0 0.0
    %v1717 = vand.u32 %v1210, 4294901760
    %1718 = vmatpush1.xpose.msra.mxu0 %v1717
    %1719 = vmatprep.subr.mxu0 0.0
    %v1720 = vand.u32 %v1207, 4294901760
    %1721 = vmatpush1.xpose.msra.mxu0 %v1720
    %1722 = vmatprep.subr.mxu0 0.0
    %1723 = vmatpush2.xpose.msra.mxu0 0.0
    %1724 = vmatprep.subr.mxu0 0.0
    %1725 = vmatpush2.xpose.msra.mxu0 0.0
    %1726 = vmatprep.subr.mxu0 0.0
    %1727 = vmatpush2.xpose.msra.mxu0 0.0
    %1728 = vmatprep.subr.mxu0 0.0
    %1729 = vmatpush2.xpose.msra.mxu0 0.0
    %1730 = vmatprep.subr.mxu0 0.0
    %1731 = vmatpush2.xpose.msra.mxu0 0.0
    %1732 = vmatprep.subr.mxu0 0.0
    %1733 = vmatpush2.xpose.msra.mxu0 0.0
    %1734 = vmatprep.subr.mxu0 0.0
    %1735 = vmatpush2.xpose.msra.mxu0 0.0
    %1736 = vmatprep.subr.mxu0 0.0
    %1737 = vmatpush2.xpose.msra.mxu0 0.0
    %1738 = vmatprep.subr.mxu0 0.0
    %1739 = vmatpush2.xpose.msra.mxu0 0.0
    %1740 = vmatprep.subr.mxu0 0.0
    %1741 = vmatpush2.xpose.msra.mxu0 0.0
    %1742 = vmatprep.subr.mxu0 0.0
    %1743 = vmatpush2.xpose.msra.mxu0 0.0
    %1744 = vmatprep.subr.mxu0 0.0
    %1745 = vmatpush2.xpose.msra.mxu0 0.0
    %1746 = vmatprep.subr.mxu0 0.0
    %1747 = vmatpush2.xpose.msra.mxu0 0.0
    %1748 = vmatprep.subr.mxu0 0.0
    %1749 = vmatpush2.xpose.msra.mxu0 0.0
    %1750 = vmatprep.subr.mxu0 0.0
    %1751 = vmatpush2.xpose.msra.mxu0 0.0
    %1752 = vmatprep.subr.mxu0 0.0
    %1753 = vmatpush2.xpose.msra.mxu0 0.0
    %1754 = vmatprep.mubr.f32.mxu0 0.0
    %v1755 = vand.u32 %v1207, 4294901760
    %1756 = vmatmul.mubr.f32.gmra.mxu0 %v1755
    %v1757 = vpop.f32.mrf.mxu0
    %v1758 = vadd.f32 %v1672, %v1757
    %v1759 = vpop.f32.mrf.mxu0
    %1760 = vmatprep.mubr.f32.mxu0 0.0
    %v1761 = vand.u32 %v1210, 4294901760
    %1762 = vmatmul.mubr.f32.gmra.mxu0 %v1761
    %v1763 = vpop.f32.mrf.mxu0
    %v1764 = vadd.f32 %v1678, %v1763
    %v1765 = vpop.f32.mrf.mxu0
    %1766 = vmatprep.mubr.f32.mxu0 0.0
    %v1767 = vand.u32 %v1213, 4294901760
    %1768 = vmatmul.mubr.f32.gmra.mxu0 %v1767
    %v1769 = vpop.f32.mrf.mxu0
    %v1770 = vadd.f32 %v1684, %v1769
    %v1771 = vpop.f32.mrf.mxu0
    %1772 = vdwg.mxu0
    %v1773 = vlaneseq
    %v1774 = vshrl.u32 %v1773, 7
    %v1775 = vadd.s32 %v1774, 8
    %v1776 = vadd.s32 %v1774, 16
    %v1777 = vld [vmem:[%s4] sm:$0x1]
    %v1778 = vlaneseq
    %v1779 = vshrl.u32 %v1778, 7
    %v1780 = vsub.s32 0, %v1779
    %v1781 = vrot.slane %v1777, %v1780
    %vm1782 = vcmp.eq.s32.totalorder %v1774, %v1781
    %vm1783 = vcmp.eq.s32.totalorder %v1775, %v1781
    %vm1784 = vcmp.eq.s32.totalorder %v1776, %v1781
    %v1785 = vsel %vm1782, 1, 0
    %v1786 = vsel %vm1783, 1, 0
    %v1787 = vsel %vm1784, 1, 0
    %v1788 = vcvt.s32.f32 %v1785
    %v1789 = vcvt.s32.f32 %v1786
    %v1790 = vcvt.s32.f32 %v1787
    %v1791 = vld [vmem:[%s4 + $0x3] sm:$0x1]
    %v1792 = vlaneseq
    %v1793 = vshrl.u32 %v1792, 7
    %v1794 = vsub.s32 0, %v1793
    %v1795 = vrot.slane %v1791, %v1794
    %vm1796 = vcmp.eq.s32.totalorder %v1774, %v1795
    %vm1797 = vcmp.eq.s32.totalorder %v1775, %v1795
    %vm1798 = vcmp.eq.s32.totalorder %v1776, %v1795
    %v1799 = vsel %vm1796, 1, 0
    %v1800 = vsel %vm1797, 1, 0
    %v1801 = vsel %vm1798, 1, 0
    %v1802 = vcvt.s32.f32 %v1799
    %v1803 = vcvt.s32.f32 %v1800
    %v1804 = vcvt.s32.f32 %v1801
    %vm1805 = vcmask 179200
    %v1807 = vsel %vm1805, %v1758, 0
    %v1810 = vsel %vm1805, %v1764, 0
    %v1813 = vsel %vm1805, %v1770, 0
    %vm1815 = vcmask 1045504
    %v1817 = vsel %vm1815, %v1804, 0
    %1819 = vmatprep.subr.mxu0 0.0
    %1820 = vmatpush1.msra.mxu0 0.0
    %1821 = vmatprep.subr.mxu0 0.0
    %1822 = vmatpush1.msra.mxu0 0.0
    %1823 = vmatprep.subr.mxu0 0.0
    %1824 = vmatpush1.msra.mxu0 0.0
    %1825 = vmatprep.subr.mxu0 0.0
    %1826 = vmatpush1.msra.mxu0 0.0
    %1827 = vmatprep.subr.mxu0 0.0
    %1828 = vmatpush1.msra.mxu0 0.0
    %1829 = vmatprep.subr.mxu0 0.0
    %1830 = vmatpush1.msra.mxu0 0.0
    %1831 = vmatprep.subr.mxu0 0.0
    %1832 = vmatpush1.msra.mxu0 0.0
    %1833 = vmatprep.subr.mxu0 0.0
    %1834 = vmatpush1.msra.mxu0 0.0
    %1835 = vmatprep.subr.mxu0 0.0
    %1836 = vmatpush1.msra.mxu0 0.0
    %1837 = vmatprep.subr.mxu0 0.0
    %1838 = vmatpush1.msra.mxu0 0.0
    %1839 = vmatprep.subr.mxu0 0.0
    %1840 = vmatpush1.msra.mxu0 0.0
    %1841 = vmatprep.subr.mxu0 0.0
    %1842 = vmatpush1.msra.mxu0 0.0
    %1843 = vmatprep.subr.mxu0 0.0
    %1844 = vmatpush1.msra.mxu0 0.0
    %1845 = vmatprep.subr.mxu0 0.0
    %v1846 = vand.u32 %v1817, 4294901760
    %1847 = vmatpush1.msra.mxu0 %v1846
    %1848 = vmatprep.subr.mxu0 0.0
    %v1849 = vand.u32 %v1803, 4294901760
    %1850 = vmatpush1.msra.mxu0 %v1849
    %1851 = vmatprep.subr.mxu0 0.0
    %v1852 = vand.u32 %v1802, 4294901760
    %1853 = vmatpush1.msra.mxu0 %v1852
    %1854 = vmatprep.subr.mxu0 0.0
    %1855 = vmatpush2.msra.mxu0 0.0
    %1856 = vmatprep.subr.mxu0 0.0
    %1857 = vmatpush2.msra.mxu0 0.0
    %1858 = vmatprep.subr.mxu0 0.0
    %1859 = vmatpush2.msra.mxu0 0.0
    %1860 = vmatprep.subr.mxu0 0.0
    %1861 = vmatpush2.msra.mxu0 0.0
    %1862 = vmatprep.subr.mxu0 0.0
    %1863 = vmatpush2.msra.mxu0 0.0
    %1864 = vmatprep.subr.mxu0 0.0
    %1865 = vmatpush2.msra.mxu0 0.0
    %1866 = vmatprep.subr.mxu0 0.0
    %1867 = vmatpush2.msra.mxu0 0.0
    %1868 = vmatprep.subr.mxu0 0.0
    %1869 = vmatpush2.msra.mxu0 0.0
    %1870 = vmatprep.subr.mxu0 0.0
    %1871 = vmatpush2.msra.mxu0 0.0
    %1872 = vmatprep.subr.mxu0 0.0
    %1873 = vmatpush2.msra.mxu0 0.0
    %1874 = vmatprep.subr.mxu0 0.0
    %1875 = vmatpush2.msra.mxu0 0.0
    %1876 = vmatprep.subr.mxu0 0.0
    %1877 = vmatpush2.msra.mxu0 0.0
    %1878 = vmatprep.subr.mxu0 0.0
    %1879 = vmatpush2.msra.mxu0 0.0
    %1880 = vmatprep.subr.mxu0 0.0
    %1881 = vmatpush2.msra.mxu0 0.0
    %1882 = vmatprep.subr.mxu0 0.0
    %1883 = vmatpush2.msra.mxu0 0.0
    %1884 = vmatprep.subr.mxu0 0.0
    %1885 = vmatpush2.msra.mxu0 0.0
    %1886 = vmatprep.mubr.f32.mxu0 0.0
    %v1887 = vand.u32 %v1807, 4294901760
    %v1888 = vsub.f32 %v1807, %v1887
    %v1889 = vand.u32 %v1888, 4294901760
    %v1890 = vsub.f32 %v1888, %v1889
    %v1891 = vand.u32 %v1890, 4294901760
    %1892 = vmatmul.mubr.f32.gmra.mxu0 %v1891
    %v1893 = vpop.f32.mrf.mxu0
    %v1894 = vadd.f32 0.0, %v1893
    %v1895 = vpop.f32.mrf.mxu0
    %1896 = vmatprep.mubr.f32.mxu0 0.0
    %v1897 = vand.u32 %v1810, 4294901760
    %v1898 = vsub.f32 %v1810, %v1897
    %v1899 = vand.u32 %v1898, 4294901760
    %v1900 = vsub.f32 %v1898, %v1899
    %v1901 = vand.u32 %v1900, 4294901760
    %1902 = vmatmul.mubr.f32.gmra.mxu0 %v1901
    %v1903 = vpop.f32.mrf.mxu0
    %v1904 = vadd.f32 0.0, %v1903
    %v1905 = vpop.f32.mrf.mxu0
    %1906 = vmatprep.mubr.f32.mxu0 0.0
    %v1907 = vand.u32 %v1813, 4294901760
    %v1908 = vsub.f32 %v1813, %v1907
    %v1909 = vand.u32 %v1908, 4294901760
    %v1910 = vsub.f32 %v1908, %v1909
    %v1911 = vand.u32 %v1910, 4294901760
    %1912 = vmatmul.mubr.f32.gmra.mxu0 %v1911
    %v1913 = vpop.f32.mrf.mxu0
    %v1914 = vadd.f32 0.0, %v1913
    %v1915 = vpop.f32.mrf.mxu0
    %1916 = vdwg.mxu0
    %1917 = vmatprep.subr.mxu0 0.0
    %1918 = vmatpush1.msra.mxu0 0.0
    %1919 = vmatprep.subr.mxu0 0.0
    %1920 = vmatpush1.msra.mxu0 0.0
    %1921 = vmatprep.subr.mxu0 0.0
    %1922 = vmatpush1.msra.mxu0 0.0
    %1923 = vmatprep.subr.mxu0 0.0
    %1924 = vmatpush1.msra.mxu0 0.0
    %1925 = vmatprep.subr.mxu0 0.0
    %1926 = vmatpush1.msra.mxu0 0.0
    %1927 = vmatprep.subr.mxu0 0.0
    %1928 = vmatpush1.msra.mxu0 0.0
    %1929 = vmatprep.subr.mxu0 0.0
    %1930 = vmatpush1.msra.mxu0 0.0
    %1931 = vmatprep.subr.mxu0 0.0
    %1932 = vmatpush1.msra.mxu0 0.0
    %1933 = vmatprep.subr.mxu0 0.0
    %1934 = vmatpush1.msra.mxu0 0.0
    %1935 = vmatprep.subr.mxu0 0.0
    %1936 = vmatpush1.msra.mxu0 0.0
    %1937 = vmatprep.subr.mxu0 0.0
    %1938 = vmatpush1.msra.mxu0 0.0
    %1939 = vmatprep.subr.mxu0 0.0
    %1940 = vmatpush1.msra.mxu0 0.0
    %1941 = vmatprep.subr.mxu0 0.0
    %1942 = vmatpush1.msra.mxu0 0.0
    %1943 = vmatprep.subr.mxu0 0.0
    %v1944 = vand.u32 %v1817, 4294901760
    %v1945 = vsub.f32 %v1817, %v1944
    %v1946 = vand.u32 %v1945, 4294901760
    %v1947 = vsub.f32 %v1945, %v1946
    %v1948 = vand.u32 %v1947, 4294901760
    %1949 = vmatpush1.msra.mxu0 %v1948
    %1950 = vmatprep.subr.mxu0 0.0
    %v1951 = vand.u32 %v1803, 4294901760
    %v1952 = vsub.f32 %v1803, %v1951
    %v1953 = vand.u32 %v1952, 4294901760
    %v1954 = vsub.f32 %v1952, %v1953
    %v1955 = vand.u32 %v1954, 4294901760
    %1956 = vmatpush1.msra.mxu0 %v1955
    %1957 = vmatprep.subr.mxu0 0.0
    %v1958 = vand.u32 %v1802, 4294901760
    %v1959 = vsub.f32 %v1802, %v1958
    %v1960 = vand.u32 %v1959, 4294901760
    %v1961 = vsub.f32 %v1959, %v1960
    %v1962 = vand.u32 %v1961, 4294901760
    %1963 = vmatpush1.msra.mxu0 %v1962
    %1964 = vmatprep.subr.mxu0 0.0
    %1965 = vmatpush2.msra.mxu0 0.0
    %1966 = vmatprep.subr.mxu0 0.0
    %1967 = vmatpush2.msra.mxu0 0.0
    %1968 = vmatprep.subr.mxu0 0.0
    %1969 = vmatpush2.msra.mxu0 0.0
    %1970 = vmatprep.subr.mxu0 0.0
    %1971 = vmatpush2.msra.mxu0 0.0
    %1972 = vmatprep.subr.mxu0 0.0
    %1973 = vmatpush2.msra.mxu0 0.0
    %1974 = vmatprep.subr.mxu0 0.0
    %1975 = vmatpush2.msra.mxu0 0.0
    %1976 = vmatprep.subr.mxu0 0.0
    %1977 = vmatpush2.msra.mxu0 0.0
    %1978 = vmatprep.subr.mxu0 0.0
    %1979 = vmatpush2.msra.mxu0 0.0
    %1980 = vmatprep.subr.mxu0 0.0
    %1981 = vmatpush2.msra.mxu0 0.0
    %1982 = vmatprep.subr.mxu0 0.0
    %1983 = vmatpush2.msra.mxu0 0.0
    %1984 = vmatprep.subr.mxu0 0.0
    %1985 = vmatpush2.msra.mxu0 0.0
    %1986 = vmatprep.subr.mxu0 0.0
    %1987 = vmatpush2.msra.mxu0 0.0
    %1988 = vmatprep.subr.mxu0 0.0
    %1989 = vmatpush2.msra.mxu0 0.0
    %1990 = vmatprep.subr.mxu0 0.0
    %1991 = vmatpush2.msra.mxu0 0.0
    %1992 = vmatprep.subr.mxu0 0.0
    %1993 = vmatpush2.msra.mxu0 0.0
    %1994 = vmatprep.subr.mxu0 0.0
    %1995 = vmatpush2.msra.mxu0 0.0
    %1996 = vmatprep.mubr.f32.mxu0 0.0
    %v1997 = vand.u32 %v1807, 4294901760
    %1998 = vmatmul.mubr.f32.gmra.mxu0 %v1997
    %v1999 = vpop.f32.mrf.mxu0
    %v2000 = vadd.f32 %v1894, %v1999
    %v2001 = vpop.f32.mrf.mxu0
    %2002 = vmatprep.mubr.f32.mxu0 0.0
    %v2003 = vand.u32 %v1810, 4294901760
    %2004 = vmatmul.mubr.f32.gmra.mxu0 %v2003
    %v2005 = vpop.f32.mrf.mxu0
    %v2006 = vadd.f32 %v1904, %v2005
    %v2007 = vpop.f32.mrf.mxu0
    %2008 = vmatprep.mubr.f32.mxu0 0.0
    %v2009 = vand.u32 %v1813, 4294901760
    %2010 = vmatmul.mubr.f32.gmra.mxu0 %v2009
    %v2011 = vpop.f32.mrf.mxu0
    %v2012 = vadd.f32 %v1914, %v2011
    %v2013 = vpop.f32.mrf.mxu0
    %2014 = vdwg.mxu0
    %2015 = vmatprep.subr.mxu0 0.0
    %2016 = vmatpush1.msra.mxu0 0.0
    %2017 = vmatprep.subr.mxu0 0.0
    %2018 = vmatpush1.msra.mxu0 0.0
    %2019 = vmatprep.subr.mxu0 0.0
    %2020 = vmatpush1.msra.mxu0 0.0
    %2021 = vmatprep.subr.mxu0 0.0
    %2022 = vmatpush1.msra.mxu0 0.0
    %2023 = vmatprep.subr.mxu0 0.0
    %2024 = vmatpush1.msra.mxu0 0.0
    %2025 = vmatprep.subr.mxu0 0.0
    %2026 = vmatpush1.msra.mxu0 0.0
    %2027 = vmatprep.subr.mxu0 0.0
    %2028 = vmatpush1.msra.mxu0 0.0
    %2029 = vmatprep.subr.mxu0 0.0
    %2030 = vmatpush1.msra.mxu0 0.0
    %2031 = vmatprep.subr.mxu0 0.0
    %2032 = vmatpush1.msra.mxu0 0.0
    %2033 = vmatprep.subr.mxu0 0.0
    %2034 = vmatpush1.msra.mxu0 0.0
    %2035 = vmatprep.subr.mxu0 0.0
    %2036 = vmatpush1.msra.mxu0 0.0
    %2037 = vmatprep.subr.mxu0 0.0
    %2038 = vmatpush1.msra.mxu0 0.0
    %2039 = vmatprep.subr.mxu0 0.0
    %2040 = vmatpush1.msra.mxu0 0.0
    %2041 = vmatprep.subr.mxu0 0.0
    %v2042 = vand.u32 %v1817, 4294901760
    %v2043 = vsub.f32 %v1817, %v2042
    %2044 = vmatpush1.msra.mxu0 %v2043
    %2045 = vmatprep.subr.mxu0 0.0
    %v2046 = vand.u32 %v1803, 4294901760
    %v2047 = vsub.f32 %v1803, %v2046
    %2048 = vmatpush1.msra.mxu0 %v2047
    %2049 = vmatprep.subr.mxu0 0.0
    %v2050 = vand.u32 %v1802, 4294901760
    %v2051 = vsub.f32 %v1802, %v2050
    %2052 = vmatpush1.msra.mxu0 %v2051
    %2053 = vmatprep.subr.mxu0 0.0
    %2054 = vmatpush2.msra.mxu0 0.0
    %2055 = vmatprep.subr.mxu0 0.0
    %2056 = vmatpush2.msra.mxu0 0.0
    %2057 = vmatprep.subr.mxu0 0.0
    %2058 = vmatpush2.msra.mxu0 0.0
    %2059 = vmatprep.subr.mxu0 0.0
    %2060 = vmatpush2.msra.mxu0 0.0
    %2061 = vmatprep.subr.mxu0 0.0
    %2062 = vmatpush2.msra.mxu0 0.0
    %2063 = vmatprep.subr.mxu0 0.0
    %2064 = vmatpush2.msra.mxu0 0.0
    %2065 = vmatprep.subr.mxu0 0.0
    %2066 = vmatpush2.msra.mxu0 0.0
    %2067 = vmatprep.subr.mxu0 0.0
    %2068 = vmatpush2.msra.mxu0 0.0
    %2069 = vmatprep.subr.mxu0 0.0
    %2070 = vmatpush2.msra.mxu0 0.0
    %2071 = vmatprep.subr.mxu0 0.0
    %2072 = vmatpush2.msra.mxu0 0.0
    %2073 = vmatprep.subr.mxu0 0.0
    %2074 = vmatpush2.msra.mxu0 0.0
    %2075 = vmatprep.subr.mxu0 0.0
    %2076 = vmatpush2.msra.mxu0 0.0
    %2077 = vmatprep.subr.mxu0 0.0
    %2078 = vmatpush2.msra.mxu0 0.0
    %2079 = vmatprep.subr.mxu0 0.0
    %2080 = vmatpush2.msra.mxu0 0.0
    %2081 = vmatprep.subr.mxu0 0.0
    %2082 = vmatpush2.msra.mxu0 0.0
    %2083 = vmatprep.subr.mxu0 0.0
    %2084 = vmatpush2.msra.mxu0 0.0
    %2085 = vmatprep.mubr.f32.mxu0 0.0
    %v2086 = vand.u32 %v1807, 4294901760
    %v2087 = vsub.f32 %v1807, %v2086
    %2088 = vmatmul.mubr.f32.gmra.mxu0 %v2087
    %v2089 = vpop.f32.mrf.mxu0
    %v2090 = vadd.f32 %v2000, %v2089
    %v2091 = vpop.f32.mrf.mxu0
    %2092 = vmatprep.mubr.f32.mxu0 0.0
    %v2093 = vand.u32 %v1810, 4294901760
    %v2094 = vsub.f32 %v1810, %v2093
    %2095 = vmatmul.mubr.f32.gmra.mxu0 %v2094
    %v2096 = vpop.f32.mrf.mxu0
    %v2097 = vadd.f32 %v2006, %v2096
    %v2098 = vpop.f32.mrf.mxu0
    %2099 = vmatprep.mubr.f32.mxu0 0.0
    %v2100 = vand.u32 %v1813, 4294901760
    %v2101 = vsub.f32 %v1813, %v2100
    %2102 = vmatmul.mubr.f32.gmra.mxu0 %v2101
    %v2103 = vpop.f32.mrf.mxu0
    %v2104 = vadd.f32 %v2012, %v2103
    %v2105 = vpop.f32.mrf.mxu0
    %2106 = vdwg.mxu0
    %2107 = vmatprep.subr.mxu0 0.0
    %2108 = vmatpush1.msra.mxu0 0.0
    %2109 = vmatprep.subr.mxu0 0.0
    %2110 = vmatpush1.msra.mxu0 0.0
    %2111 = vmatprep.subr.mxu0 0.0
    %2112 = vmatpush1.msra.mxu0 0.0
    %2113 = vmatprep.subr.mxu0 0.0
    %2114 = vmatpush1.msra.mxu0 0.0
    %2115 = vmatprep.subr.mxu0 0.0
    %2116 = vmatpush1.msra.mxu0 0.0
    %2117 = vmatprep.subr.mxu0 0.0
    %2118 = vmatpush1.msra.mxu0 0.0
    %2119 = vmatprep.subr.mxu0 0.0
    %2120 = vmatpush1.msra.mxu0 0.0
    %2121 = vmatprep.subr.mxu0 0.0
    %2122 = vmatpush1.msra.mxu0 0.0
    %2123 = vmatprep.subr.mxu0 0.0
    %2124 = vmatpush1.msra.mxu0 0.0
    %2125 = vmatprep.subr.mxu0 0.0
    %2126 = vmatpush1.msra.mxu0 0.0
    %2127 = vmatprep.subr.mxu0 0.0
    %2128 = vmatpush1.msra.mxu0 0.0
    %2129 = vmatprep.subr.mxu0 0.0
    %2130 = vmatpush1.msra.mxu0 0.0
    %2131 = vmatprep.subr.mxu0 0.0
    %2132 = vmatpush1.msra.mxu0 0.0
    %2133 = vmatprep.subr.mxu0 0.0
    %v2134 = vand.u32 %v1817, 4294901760
    %2135 = vmatpush1.msra.mxu0 %v2134
    %2136 = vmatprep.subr.mxu0 0.0
    %v2137 = vand.u32 %v1803, 4294901760
    %2138 = vmatpush1.msra.mxu0 %v2137
    %2139 = vmatprep.subr.mxu0 0.0
    %v2140 = vand.u32 %v1802, 4294901760
    %2141 = vmatpush1.msra.mxu0 %v2140
    %2142 = vmatprep.subr.mxu0 0.0
    %2143 = vmatpush2.msra.mxu0 0.0
    %2144 = vmatprep.subr.mxu0 0.0
    %2145 = vmatpush2.msra.mxu0 0.0
    %2146 = vmatprep.subr.mxu0 0.0
    %2147 = vmatpush2.msra.mxu0 0.0
    %2148 = vmatprep.subr.mxu0 0.0
    %2149 = vmatpush2.msra.mxu0 0.0
    %2150 = vmatprep.subr.mxu0 0.0
    %2151 = vmatpush2.msra.mxu0 0.0
    %2152 = vmatprep.subr.mxu0 0.0
    %2153 = vmatpush2.msra.mxu0 0.0
    %2154 = vmatprep.subr.mxu0 0.0
    %2155 = vmatpush2.msra.mxu0 0.0
    %2156 = vmatprep.subr.mxu0 0.0
    %2157 = vmatpush2.msra.mxu0 0.0
    %2158 = vmatprep.subr.mxu0 0.0
    %2159 = vmatpush2.msra.mxu0 0.0
    %2160 = vmatprep.subr.mxu0 0.0
    %2161 = vmatpush2.msra.mxu0 0.0
    %2162 = vmatprep.subr.mxu0 0.0
    %2163 = vmatpush2.msra.mxu0 0.0
    %2164 = vmatprep.subr.mxu0 0.0
    %2165 = vmatpush2.msra.mxu0 0.0
    %2166 = vmatprep.subr.mxu0 0.0
    %2167 = vmatpush2.msra.mxu0 0.0
    %2168 = vmatprep.subr.mxu0 0.0
    %2169 = vmatpush2.msra.mxu0 0.0
    %2170 = vmatprep.subr.mxu0 0.0
    %2171 = vmatpush2.msra.mxu0 0.0
    %2172 = vmatprep.subr.mxu0 0.0
    %2173 = vmatpush2.msra.mxu0 0.0
    %2174 = vmatprep.mubr.f32.mxu0 0.0
    %v2175 = vand.u32 %v1807, 4294901760
    %v2176 = vsub.f32 %v1807, %v2175
    %v2177 = vand.u32 %v2176, 4294901760
    %2178 = vmatmul.mubr.f32.gmra.mxu0 %v2177
    %v2179 = vpop.f32.mrf.mxu0
    %v2180 = vadd.f32 %v2090, %v2179
    %v2181 = vpop.f32.mrf.mxu0
    %2182 = vmatprep.mubr.f32.mxu0 0.0
    %v2183 = vand.u32 %v1810, 4294901760
    %v2184 = vsub.f32 %v1810, %v2183
    %v2185 = vand.u32 %v2184, 4294901760
    %2186 = vmatmul.mubr.f32.gmra.mxu0 %v2185
    %v2187 = vpop.f32.mrf.mxu0
    %v2188 = vadd.f32 %v2097, %v2187
    %v2189 = vpop.f32.mrf.mxu0
    %2190 = vmatprep.mubr.f32.mxu0 0.0
    %v2191 = vand.u32 %v1813, 4294901760
    %v2192 = vsub.f32 %v1813, %v2191
    %v2193 = vand.u32 %v2192, 4294901760
    %2194 = vmatmul.mubr.f32.gmra.mxu0 %v2193
    %v2195 = vpop.f32.mrf.mxu0
    %v2196 = vadd.f32 %v2104, %v2195
    %v2197 = vpop.f32.mrf.mxu0
    %2198 = vdwg.mxu0
    %2199 = vmatprep.subr.mxu0 0.0
    %2200 = vmatpush1.msra.mxu0 0.0
    %2201 = vmatprep.subr.mxu0 0.0
    %2202 = vmatpush1.msra.mxu0 0.0
    %2203 = vmatprep.subr.mxu0 0.0
    %2204 = vmatpush1.msra.mxu0 0.0
    %2205 = vmatprep.subr.mxu0 0.0
    %2206 = vmatpush1.msra.mxu0 0.0
    %2207 = vmatprep.subr.mxu0 0.0
    %2208 = vmatpush1.msra.mxu0 0.0
    %2209 = vmatprep.subr.mxu0 0.0
    %2210 = vmatpush1.msra.mxu0 0.0
    %2211 = vmatprep.subr.mxu0 0.0
    %2212 = vmatpush1.msra.mxu0 0.0
    %2213 = vmatprep.subr.mxu0 0.0
    %2214 = vmatpush1.msra.mxu0 0.0
    %2215 = vmatprep.subr.mxu0 0.0
    %2216 = vmatpush1.msra.mxu0 0.0
    %2217 = vmatprep.subr.mxu0 0.0
    %2218 = vmatpush1.msra.mxu0 0.0
    %2219 = vmatprep.subr.mxu0 0.0
    %2220 = vmatpush1.msra.mxu0 0.0
    %2221 = vmatprep.subr.mxu0 0.0
    %2222 = vmatpush1.msra.mxu0 0.0
    %2223 = vmatprep.subr.mxu0 0.0
    %2224 = vmatpush1.msra.mxu0 0.0
    %2225 = vmatprep.subr.mxu0 0.0
    %v2226 = vand.u32 %v1817, 4294901760
    %v2227 = vsub.f32 %v1817, %v2226
    %v2228 = vand.u32 %v2227, 4294901760
    %2229 = vmatpush1.msra.mxu0 %v2228
    %2230 = vmatprep.subr.mxu0 0.0
    %v2231 = vand.u32 %v1803, 4294901760
    %v2232 = vsub.f32 %v1803, %v2231
    %v2233 = vand.u32 %v2232, 4294901760
    %2234 = vmatpush1.msra.mxu0 %v2233
    %2235 = vmatprep.subr.mxu0 0.0
    %v2236 = vand.u32 %v1802, 4294901760
    %v2237 = vsub.f32 %v1802, %v2236
    %v2238 = vand.u32 %v2237, 4294901760
    %2239 = vmatpush1.msra.mxu0 %v2238
    %2240 = vmatprep.subr.mxu0 0.0
    %2241 = vmatpush2.msra.mxu0 0.0
    %2242 = vmatprep.subr.mxu0 0.0
    %2243 = vmatpush2.msra.mxu0 0.0
    %2244 = vmatprep.subr.mxu0 0.0
    %2245 = vmatpush2.msra.mxu0 0.0
    %2246 = vmatprep.subr.mxu0 0.0
    %2247 = vmatpush2.msra.mxu0 0.0
    %2248 = vmatprep.subr.mxu0 0.0
    %2249 = vmatpush2.msra.mxu0 0.0
    %2250 = vmatprep.subr.mxu0 0.0
    %2251 = vmatpush2.msra.mxu0 0.0
    %2252 = vmatprep.subr.mxu0 0.0
    %2253 = vmatpush2.msra.mxu0 0.0
    %2254 = vmatprep.subr.mxu0 0.0
    %2255 = vmatpush2.msra.mxu0 0.0
    %2256 = vmatprep.subr.mxu0 0.0
    %2257 = vmatpush2.msra.mxu0 0.0
    %2258 = vmatprep.subr.mxu0 0.0
    %2259 = vmatpush2.msra.mxu0 0.0
    %2260 = vmatprep.subr.mxu0 0.0
    %2261 = vmatpush2.msra.mxu0 0.0
    %2262 = vmatprep.subr.mxu0 0.0
    %2263 = vmatpush2.msra.mxu0 0.0
    %2264 = vmatprep.subr.mxu0 0.0
    %2265 = vmatpush2.msra.mxu0 0.0
    %2266 = vmatprep.subr.mxu0 0.0
    %2267 = vmatpush2.msra.mxu0 0.0
    %2268 = vmatprep.subr.mxu0 0.0
    %2269 = vmatpush2.msra.mxu0 0.0
    %2270 = vmatprep.subr.mxu0 0.0
    %2271 = vmatpush2.msra.mxu0 0.0
    %2272 = vmatprep.mubr.f32.mxu0 0.0
    %v2273 = vand.u32 %v1807, 4294901760
    %2274 = vmatmul.mubr.f32.gmra.mxu0 %v2273
    %v2275 = vpop.f32.mrf.mxu0
    %v2276 = vadd.f32 %v2180, %v2275
    %v2277 = vpop.f32.mrf.mxu0
    %2278 = vmatprep.mubr.f32.mxu0 0.0
    %v2279 = vand.u32 %v1810, 4294901760
    %2280 = vmatmul.mubr.f32.gmra.mxu0 %v2279
    %v2281 = vpop.f32.mrf.mxu0
    %v2282 = vadd.f32 %v2188, %v2281
    %v2283 = vpop.f32.mrf.mxu0
    %2284 = vmatprep.mubr.f32.mxu0 0.0
    %v2285 = vand.u32 %v1813, 4294901760
    %2286 = vmatmul.mubr.f32.gmra.mxu0 %v2285
    %v2287 = vpop.f32.mrf.mxu0
    %v2288 = vadd.f32 %v2196, %v2287
    %v2289 = vpop.f32.mrf.mxu0
    %2290 = vdwg.mxu0
    %2291 = vmatprep.subr.mxu0 0.0
    %2292 = vmatpush1.msra.mxu0 0.0
    %2293 = vmatprep.subr.mxu0 0.0
    %2294 = vmatpush1.msra.mxu0 0.0
    %2295 = vmatprep.subr.mxu0 0.0
    %2296 = vmatpush1.msra.mxu0 0.0
    %2297 = vmatprep.subr.mxu0 0.0
    %2298 = vmatpush1.msra.mxu0 0.0
    %2299 = vmatprep.subr.mxu0 0.0
    %2300 = vmatpush1.msra.mxu0 0.0
    %2301 = vmatprep.subr.mxu0 0.0
    %2302 = vmatpush1.msra.mxu0 0.0
    %2303 = vmatprep.subr.mxu0 0.0
    %2304 = vmatpush1.msra.mxu0 0.0
    %2305 = vmatprep.subr.mxu0 0.0
    %2306 = vmatpush1.msra.mxu0 0.0
    %2307 = vmatprep.subr.mxu0 0.0
    %2308 = vmatpush1.msra.mxu0 0.0
    %2309 = vmatprep.subr.mxu0 0.0
    %2310 = vmatpush1.msra.mxu0 0.0
    %2311 = vmatprep.subr.mxu0 0.0
    %2312 = vmatpush1.msra.mxu0 0.0
    %2313 = vmatprep.subr.mxu0 0.0
    %2314 = vmatpush1.msra.mxu0 0.0
    %2315 = vmatprep.subr.mxu0 0.0
    %2316 = vmatpush1.msra.mxu0 0.0
    %2317 = vmatprep.subr.mxu0 0.0
    %v2318 = vand.u32 %v1817, 4294901760
    %2319 = vmatpush1.msra.mxu0 %v2318
    %2320 = vmatprep.subr.mxu0 0.0
    %v2321 = vand.u32 %v1803, 4294901760
    %2322 = vmatpush1.msra.mxu0 %v2321
    %2323 = vmatprep.subr.mxu0 0.0
    %v2324 = vand.u32 %v1802, 4294901760
    %2325 = vmatpush1.msra.mxu0 %v2324
    %2326 = vmatprep.subr.mxu0 0.0
    %2327 = vmatpush2.msra.mxu0 0.0
    %2328 = vmatprep.subr.mxu0 0.0
    %2329 = vmatpush2.msra.mxu0 0.0
    %2330 = vmatprep.subr.mxu0 0.0
    %2331 = vmatpush2.msra.mxu0 0.0
    %2332 = vmatprep.subr.mxu0 0.0
    %2333 = vmatpush2.msra.mxu0 0.0
    %2334 = vmatprep.subr.mxu0 0.0
    %2335 = vmatpush2.msra.mxu0 0.0
    %2336 = vmatprep.subr.mxu0 0.0
    %2337 = vmatpush2.msra.mxu0 0.0
    %2338 = vmatprep.subr.mxu0 0.0
    %2339 = vmatpush2.msra.mxu0 0.0
    %2340 = vmatprep.subr.mxu0 0.0
    %2341 = vmatpush2.msra.mxu0 0.0
    %2342 = vmatprep.subr.mxu0 0.0
    %2343 = vmatpush2.msra.mxu0 0.0
    %2344 = vmatprep.subr.mxu0 0.0
    %2345 = vmatpush2.msra.mxu0 0.0
    %2346 = vmatprep.subr.mxu0 0.0
    %2347 = vmatpush2.msra.mxu0 0.0
    %2348 = vmatprep.subr.mxu0 0.0
    %2349 = vmatpush2.msra.mxu0 0.0
    %2350 = vmatprep.subr.mxu0 0.0
    %2351 = vmatpush2.msra.mxu0 0.0
    %2352 = vmatprep.subr.mxu0 0.0
    %2353 = vmatpush2.msra.mxu0 0.0
    %2354 = vmatprep.subr.mxu0 0.0
    %2355 = vmatpush2.msra.mxu0 0.0
    %2356 = vmatprep.subr.mxu0 0.0
    %2357 = vmatpush2.msra.mxu0 0.0
    %2358 = vmatprep.mubr.f32.mxu0 0.0
    %v2359 = vand.u32 %v1807, 4294901760
    %2360 = vmatmul.mubr.f32.gmra.mxu0 %v2359
    %v2361 = vpop.f32.mrf.mxu0
    %v2362 = vadd.f32 %v2276, %v2361
    %v2363 = vpop.f32.mrf.mxu0
    %2364 = vmatprep.mubr.f32.mxu0 0.0
    %v2365 = vand.u32 %v1810, 4294901760
    %2366 = vmatmul.mubr.f32.gmra.mxu0 %v2365
    %v2367 = vpop.f32.mrf.mxu0
    %v2368 = vadd.f32 %v2282, %v2367
    %v2369 = vpop.f32.mrf.mxu0
    %2370 = vmatprep.mubr.f32.mxu0 0.0
    %v2371 = vand.u32 %v1813, 4294901760
    %2372 = vmatmul.mubr.f32.gmra.mxu0 %v2371
    %v2373 = vpop.f32.mrf.mxu0
    %v2374 = vadd.f32 %v2288, %v2373
    %v2375 = vpop.f32.mrf.mxu0
    %2376 = vdwg.mxu0
    %v2377 = vmul.f32 %v1788, %v2362
    %v2378 = vmul.f32 %v1789, %v2368
    %v2379 = vmul.f32 %v1790, %v2374
    %v2380 = vadd.f32 %v2377, %v2378
    %v2381 = vsel %vm1815, %v2379, 0.0
    %v2382 = vadd.f32 %v2380, %v2381
    %v2383 = vrot.slane %v2382, 4
    %v2384 = vadd.f32 %v2382, %v2383
    %v2385 = vrot.slane %v2384, 2
    %v2386 = vadd.f32 %v2384, %v2385
    %v2387 = vrot.slane %v2386, 1
    %v2388 = vadd.f32 %v2386, %v2387
    %v2389 = vld [vmem:[%s4 + $0x1] sm:$0x1]
    %v2390 = vlaneseq
    %v2391 = vshrl.u32 %v2390, 7
    %v2392 = vsub.s32 0, %v2391
    %v2393 = vrot.slane %v2389, %v2392
    %vm2394 = vcmp.eq.s32.totalorder %v1774, %v2393
    %vm2395 = vcmp.eq.s32.totalorder %v1775, %v2393
    %vm2396 = vcmp.eq.s32.totalorder %v1776, %v2393
    %v2397 = vsel %vm2394, 1, 0
    %v2398 = vsel %vm2395, 1, 0
    %v2399 = vsel %vm2396, 1, 0
    %v2400 = vcvt.s32.f32 %v2397
    %v2401 = vcvt.s32.f32 %v2398
    %v2402 = vcvt.s32.f32 %v2399
    %v2403 = vld [vmem:[%s4 + $0x4] sm:$0x1]
    %v2404 = vlaneseq
    %v2405 = vshrl.u32 %v2404, 7
    %v2406 = vsub.s32 0, %v2405
    %v2407 = vrot.slane %v2403, %v2406
    %vm2408 = vcmp.eq.s32.totalorder %v1774, %v2407
    %vm2409 = vcmp.eq.s32.totalorder %v1775, %v2407
    %vm2410 = vcmp.eq.s32.totalorder %v1776, %v2407
    %v2411 = vsel %vm2408, 1, 0
    %v2412 = vsel %vm2409, 1, 0
    %v2413 = vsel %vm2410, 1, 0
    %v2414 = vcvt.s32.f32 %v2411
    %v2415 = vcvt.s32.f32 %v2412
    %v2416 = vcvt.s32.f32 %v2413
    %v2418 = vsel %vm1815, %v2416, 0
    %2420 = vmatprep.subr.mxu0 0.0
    %2421 = vmatpush1.msra.mxu0 0.0
    %2422 = vmatprep.subr.mxu0 0.0
    %2423 = vmatpush1.msra.mxu0 0.0
    %2424 = vmatprep.subr.mxu0 0.0
    %2425 = vmatpush1.msra.mxu0 0.0
    %2426 = vmatprep.subr.mxu0 0.0
    %2427 = vmatpush1.msra.mxu0 0.0
    %2428 = vmatprep.subr.mxu0 0.0
    %2429 = vmatpush1.msra.mxu0 0.0
    %2430 = vmatprep.subr.mxu0 0.0
    %2431 = vmatpush1.msra.mxu0 0.0
    %2432 = vmatprep.subr.mxu0 0.0
    %2433 = vmatpush1.msra.mxu0 0.0
    %2434 = vmatprep.subr.mxu0 0.0
    %2435 = vmatpush1.msra.mxu0 0.0
    %2436 = vmatprep.subr.mxu0 0.0
    %2437 = vmatpush1.msra.mxu0 0.0
    %2438 = vmatprep.subr.mxu0 0.0
    %2439 = vmatpush1.msra.mxu0 0.0
    %2440 = vmatprep.subr.mxu0 0.0
    %2441 = vmatpush1.msra.mxu0 0.0
    %2442 = vmatprep.subr.mxu0 0.0
    %2443 = vmatpush1.msra.mxu0 0.0
    %2444 = vmatprep.subr.mxu0 0.0
    %2445 = vmatpush1.msra.mxu0 0.0
    %2446 = vmatprep.subr.mxu0 0.0
    %v2447 = vand.u32 %v2418, 4294901760
    %2448 = vmatpush1.msra.mxu0 %v2447
    %2449 = vmatprep.subr.mxu0 0.0
    %v2450 = vand.u32 %v2415, 4294901760
    %2451 = vmatpush1.msra.mxu0 %v2450
    %2452 = vmatprep.subr.mxu0 0.0
    %v2453 = vand.u32 %v2414, 4294901760
    %2454 = vmatpush1.msra.mxu0 %v2453
    %2455 = vmatprep.subr.mxu0 0.0
    %2456 = vmatpush2.msra.mxu0 0.0
    %2457 = vmatprep.subr.mxu0 0.0
    %2458 = vmatpush2.msra.mxu0 0.0
    %2459 = vmatprep.subr.mxu0 0.0
    %2460 = vmatpush2.msra.mxu0 0.0
    %2461 = vmatprep.subr.mxu0 0.0
    %2462 = vmatpush2.msra.mxu0 0.0
    %2463 = vmatprep.subr.mxu0 0.0
    %2464 = vmatpush2.msra.mxu0 0.0
    %2465 = vmatprep.subr.mxu0 0.0
    %2466 = vmatpush2.msra.mxu0 0.0
    %2467 = vmatprep.subr.mxu0 0.0
    %2468 = vmatpush2.msra.mxu0 0.0
    %2469 = vmatprep.subr.mxu0 0.0
    %2470 = vmatpush2.msra.mxu0 0.0
    %2471 = vmatprep.subr.mxu0 0.0
    %2472 = vmatpush2.msra.mxu0 0.0
    %2473 = vmatprep.subr.mxu0 0.0
    %2474 = vmatpush2.msra.mxu0 0.0
    %2475 = vmatprep.subr.mxu0 0.0
    %2476 = vmatpush2.msra.mxu0 0.0
    %2477 = vmatprep.subr.mxu0 0.0
    %2478 = vmatpush2.msra.mxu0 0.0
    %2479 = vmatprep.subr.mxu0 0.0
    %2480 = vmatpush2.msra.mxu0 0.0
    %2481 = vmatprep.subr.mxu0 0.0
    %2482 = vmatpush2.msra.mxu0 0.0
    %2483 = vmatprep.subr.mxu0 0.0
    %2484 = vmatpush2.msra.mxu0 0.0
    %2485 = vmatprep.subr.mxu0 0.0
    %2486 = vmatpush2.msra.mxu0 0.0
    %2487 = vmatprep.mubr.f32.mxu0 0.0
    %v2488 = vand.u32 %v1807, 4294901760
    %v2489 = vsub.f32 %v1807, %v2488
    %v2490 = vand.u32 %v2489, 4294901760
    %v2491 = vsub.f32 %v2489, %v2490
    %v2492 = vand.u32 %v2491, 4294901760
    %2493 = vmatmul.mubr.f32.gmra.mxu0 %v2492
    %v2494 = vpop.f32.mrf.mxu0
    %v2495 = vadd.f32 0.0, %v2494
    %v2496 = vpop.f32.mrf.mxu0
    %2497 = vmatprep.mubr.f32.mxu0 0.0
    %v2498 = vand.u32 %v1810, 4294901760
    %v2499 = vsub.f32 %v1810, %v2498
    %v2500 = vand.u32 %v2499, 4294901760
    %v2501 = vsub.f32 %v2499, %v2500
    %v2502 = vand.u32 %v2501, 4294901760
    %2503 = vmatmul.mubr.f32.gmra.mxu0 %v2502
    %v2504 = vpop.f32.mrf.mxu0
    %v2505 = vadd.f32 0.0, %v2504
    %v2506 = vpop.f32.mrf.mxu0
    %2507 = vmatprep.mubr.f32.mxu0 0.0
    %v2508 = vand.u32 %v1813, 4294901760
    %v2509 = vsub.f32 %v1813, %v2508
    %v2510 = vand.u32 %v2509, 4294901760
    %v2511 = vsub.f32 %v2509, %v2510
    %v2512 = vand.u32 %v2511, 4294901760
    %2513 = vmatmul.mubr.f32.gmra.mxu0 %v2512
    %v2514 = vpop.f32.mrf.mxu0
    %v2515 = vadd.f32 0.0, %v2514
    %v2516 = vpop.f32.mrf.mxu0
    %2517 = vdwg.mxu0
    %2518 = vmatprep.subr.mxu0 0.0
    %2519 = vmatpush1.msra.mxu0 0.0
    %2520 = vmatprep.subr.mxu0 0.0
    %2521 = vmatpush1.msra.mxu0 0.0
    %2522 = vmatprep.subr.mxu0 0.0
    %2523 = vmatpush1.msra.mxu0 0.0
    %2524 = vmatprep.subr.mxu0 0.0
    %2525 = vmatpush1.msra.mxu0 0.0
    %2526 = vmatprep.subr.mxu0 0.0
    %2527 = vmatpush1.msra.mxu0 0.0
    %2528 = vmatprep.subr.mxu0 0.0
    %2529 = vmatpush1.msra.mxu0 0.0
    %2530 = vmatprep.subr.mxu0 0.0
    %2531 = vmatpush1.msra.mxu0 0.0
    %2532 = vmatprep.subr.mxu0 0.0
    %2533 = vmatpush1.msra.mxu0 0.0
    %2534 = vmatprep.subr.mxu0 0.0
    %2535 = vmatpush1.msra.mxu0 0.0
    %2536 = vmatprep.subr.mxu0 0.0
    %2537 = vmatpush1.msra.mxu0 0.0
    %2538 = vmatprep.subr.mxu0 0.0
    %2539 = vmatpush1.msra.mxu0 0.0
    %2540 = vmatprep.subr.mxu0 0.0
    %2541 = vmatpush1.msra.mxu0 0.0
    %2542 = vmatprep.subr.mxu0 0.0
    %2543 = vmatpush1.msra.mxu0 0.0
    %2544 = vmatprep.subr.mxu0 0.0
    %v2545 = vand.u32 %v2418, 4294901760
    %v2546 = vsub.f32 %v2418, %v2545
    %v2547 = vand.u32 %v2546, 4294901760
    %v2548 = vsub.f32 %v2546, %v2547
    %v2549 = vand.u32 %v2548, 4294901760
    %2550 = vmatpush1.msra.mxu0 %v2549
    %2551 = vmatprep.subr.mxu0 0.0
    %v2552 = vand.u32 %v2415, 4294901760
    %v2553 = vsub.f32 %v2415, %v2552
    %v2554 = vand.u32 %v2553, 4294901760
    %v2555 = vsub.f32 %v2553, %v2554
    %v2556 = vand.u32 %v2555, 4294901760
    %2557 = vmatpush1.msra.mxu0 %v2556
    %2558 = vmatprep.subr.mxu0 0.0
    %v2559 = vand.u32 %v2414, 4294901760
    %v2560 = vsub.f32 %v2414, %v2559
    %v2561 = vand.u32 %v2560, 4294901760
    %v2562 = vsub.f32 %v2560, %v2561
    %v2563 = vand.u32 %v2562, 4294901760
    %2564 = vmatpush1.msra.mxu0 %v2563
    %2565 = vmatprep.subr.mxu0 0.0
    %2566 = vmatpush2.msra.mxu0 0.0
    %2567 = vmatprep.subr.mxu0 0.0
    %2568 = vmatpush2.msra.mxu0 0.0
    %2569 = vmatprep.subr.mxu0 0.0
    %2570 = vmatpush2.msra.mxu0 0.0
    %2571 = vmatprep.subr.mxu0 0.0
    %2572 = vmatpush2.msra.mxu0 0.0
    %2573 = vmatprep.subr.mxu0 0.0
    %2574 = vmatpush2.msra.mxu0 0.0
    %2575 = vmatprep.subr.mxu0 0.0
    %2576 = vmatpush2.msra.mxu0 0.0
    %2577 = vmatprep.subr.mxu0 0.0
    %2578 = vmatpush2.msra.mxu0 0.0
    %2579 = vmatprep.subr.mxu0 0.0
    %2580 = vmatpush2.msra.mxu0 0.0
    %2581 = vmatprep.subr.mxu0 0.0
    %2582 = vmatpush2.msra.mxu0 0.0
    %2583 = vmatprep.subr.mxu0 0.0
    %2584 = vmatpush2.msra.mxu0 0.0
    %2585 = vmatprep.subr.mxu0 0.0
    %2586 = vmatpush2.msra.mxu0 0.0
    %2587 = vmatprep.subr.mxu0 0.0
    %2588 = vmatpush2.msra.mxu0 0.0
    %2589 = vmatprep.subr.mxu0 0.0
    %2590 = vmatpush2.msra.mxu0 0.0
    %2591 = vmatprep.subr.mxu0 0.0
    %2592 = vmatpush2.msra.mxu0 0.0
    %2593 = vmatprep.subr.mxu0 0.0
    %2594 = vmatpush2.msra.mxu0 0.0
    %2595 = vmatprep.subr.mxu0 0.0
    %2596 = vmatpush2.msra.mxu0 0.0
    %2597 = vmatprep.mubr.f32.mxu0 0.0
    %v2598 = vand.u32 %v1807, 4294901760
    %2599 = vmatmul.mubr.f32.gmra.mxu0 %v2598
    %v2600 = vpop.f32.mrf.mxu0
    %v2601 = vadd.f32 %v2495, %v2600
    %v2602 = vpop.f32.mrf.mxu0
    %2603 = vmatprep.mubr.f32.mxu0 0.0
    %v2604 = vand.u32 %v1810, 4294901760
    %2605 = vmatmul.mubr.f32.gmra.mxu0 %v2604
    %v2606 = vpop.f32.mrf.mxu0
    %v2607 = vadd.f32 %v2505, %v2606
    %v2608 = vpop.f32.mrf.mxu0
    %2609 = vmatprep.mubr.f32.mxu0 0.0
    %v2610 = vand.u32 %v1813, 4294901760
    %2611 = vmatmul.mubr.f32.gmra.mxu0 %v2610
    %v2612 = vpop.f32.mrf.mxu0
    %v2613 = vadd.f32 %v2515, %v2612
    %v2614 = vpop.f32.mrf.mxu0
    %2615 = vdwg.mxu0
    %2616 = vmatprep.subr.mxu0 0.0
    %2617 = vmatpush1.msra.mxu0 0.0
    %2618 = vmatprep.subr.mxu0 0.0
    %2619 = vmatpush1.msra.mxu0 0.0
    %2620 = vmatprep.subr.mxu0 0.0
    %2621 = vmatpush1.msra.mxu0 0.0
    %2622 = vmatprep.subr.mxu0 0.0
    %2623 = vmatpush1.msra.mxu0 0.0
    %2624 = vmatprep.subr.mxu0 0.0
    %2625 = vmatpush1.msra.mxu0 0.0
    %2626 = vmatprep.subr.mxu0 0.0
    %2627 = vmatpush1.msra.mxu0 0.0
    %2628 = vmatprep.subr.mxu0 0.0
    %2629 = vmatpush1.msra.mxu0 0.0
    %2630 = vmatprep.subr.mxu0 0.0
    %2631 = vmatpush1.msra.mxu0 0.0
    %2632 = vmatprep.subr.mxu0 0.0
    %2633 = vmatpush1.msra.mxu0 0.0
    %2634 = vmatprep.subr.mxu0 0.0
    %2635 = vmatpush1.msra.mxu0 0.0
    %2636 = vmatprep.subr.mxu0 0.0
    %2637 = vmatpush1.msra.mxu0 0.0
    %2638 = vmatprep.subr.mxu0 0.0
    %2639 = vmatpush1.msra.mxu0 0.0
    %2640 = vmatprep.subr.mxu0 0.0
    %2641 = vmatpush1.msra.mxu0 0.0
    %2642 = vmatprep.subr.mxu0 0.0
    %v2643 = vand.u32 %v2418, 4294901760
    %v2644 = vsub.f32 %v2418, %v2643
    %2645 = vmatpush1.msra.mxu0 %v2644
    %2646 = vmatprep.subr.mxu0 0.0
    %v2647 = vand.u32 %v2415, 4294901760
    %v2648 = vsub.f32 %v2415, %v2647
    %2649 = vmatpush1.msra.mxu0 %v2648
    %2650 = vmatprep.subr.mxu0 0.0
    %v2651 = vand.u32 %v2414, 4294901760
    %v2652 = vsub.f32 %v2414, %v2651
    %2653 = vmatpush1.msra.mxu0 %v2652
    %2654 = vmatprep.subr.mxu0 0.0
    %2655 = vmatpush2.msra.mxu0 0.0
    %2656 = vmatprep.subr.mxu0 0.0
    %2657 = vmatpush2.msra.mxu0 0.0
    %2658 = vmatprep.subr.mxu0 0.0
    %2659 = vmatpush2.msra.mxu0 0.0
    %2660 = vmatprep.subr.mxu0 0.0
    %2661 = vmatpush2.msra.mxu0 0.0
    %2662 = vmatprep.subr.mxu0 0.0
    %2663 = vmatpush2.msra.mxu0 0.0
    %2664 = vmatprep.subr.mxu0 0.0
    %2665 = vmatpush2.msra.mxu0 0.0
    %2666 = vmatprep.subr.mxu0 0.0
    %2667 = vmatpush2.msra.mxu0 0.0
    %2668 = vmatprep.subr.mxu0 0.0
    %2669 = vmatpush2.msra.mxu0 0.0
    %2670 = vmatprep.subr.mxu0 0.0
    %2671 = vmatpush2.msra.mxu0 0.0
    %2672 = vmatprep.subr.mxu0 0.0
    %2673 = vmatpush2.msra.mxu0 0.0
    %2674 = vmatprep.subr.mxu0 0.0
    %2675 = vmatpush2.msra.mxu0 0.0
    %2676 = vmatprep.subr.mxu0 0.0
    %2677 = vmatpush2.msra.mxu0 0.0
    %2678 = vmatprep.subr.mxu0 0.0
    %2679 = vmatpush2.msra.mxu0 0.0
    %2680 = vmatprep.subr.mxu0 0.0
    %2681 = vmatpush2.msra.mxu0 0.0
    %2682 = vmatprep.subr.mxu0 0.0
    %2683 = vmatpush2.msra.mxu0 0.0
    %2684 = vmatprep.subr.mxu0 0.0
    %2685 = vmatpush2.msra.mxu0 0.0
    %2686 = vmatprep.mubr.f32.mxu0 0.0
    %v2687 = vand.u32 %v1807, 4294901760
    %v2688 = vsub.f32 %v1807, %v2687
    %2689 = vmatmul.mubr.f32.gmra.mxu0 %v2688
    %v2690 = vpop.f32.mrf.mxu0
    %v2691 = vadd.f32 %v2601, %v2690
    %v2692 = vpop.f32.mrf.mxu0
    %2693 = vmatprep.mubr.f32.mxu0 0.0
    %v2694 = vand.u32 %v1810, 4294901760
    %v2695 = vsub.f32 %v1810, %v2694
    %2696 = vmatmul.mubr.f32.gmra.mxu0 %v2695
    %v2697 = vpop.f32.mrf.mxu0
    %v2698 = vadd.f32 %v2607, %v2697
    %v2699 = vpop.f32.mrf.mxu0
    %2700 = vmatprep.mubr.f32.mxu0 0.0
    %v2701 = vand.u32 %v1813, 4294901760
    %v2702 = vsub.f32 %v1813, %v2701
    %2703 = vmatmul.mubr.f32.gmra.mxu0 %v2702
    %v2704 = vpop.f32.mrf.mxu0
    %v2705 = vadd.f32 %v2613, %v2704
    %v2706 = vpop.f32.mrf.mxu0
    %2707 = vdwg.mxu0
    %2708 = vmatprep.subr.mxu0 0.0
    %2709 = vmatpush1.msra.mxu0 0.0
    %2710 = vmatprep.subr.mxu0 0.0
    %2711 = vmatpush1.msra.mxu0 0.0
    %2712 = vmatprep.subr.mxu0 0.0
    %2713 = vmatpush1.msra.mxu0 0.0
    %2714 = vmatprep.subr.mxu0 0.0
    %2715 = vmatpush1.msra.mxu0 0.0
    %2716 = vmatprep.subr.mxu0 0.0
    %2717 = vmatpush1.msra.mxu0 0.0
    %2718 = vmatprep.subr.mxu0 0.0
    %2719 = vmatpush1.msra.mxu0 0.0
    %2720 = vmatprep.subr.mxu0 0.0
    %2721 = vmatpush1.msra.mxu0 0.0
    %2722 = vmatprep.subr.mxu0 0.0
    %2723 = vmatpush1.msra.mxu0 0.0
    %2724 = vmatprep.subr.mxu0 0.0
    %2725 = vmatpush1.msra.mxu0 0.0
    %2726 = vmatprep.subr.mxu0 0.0
    %2727 = vmatpush1.msra.mxu0 0.0
    %2728 = vmatprep.subr.mxu0 0.0
    %2729 = vmatpush1.msra.mxu0 0.0
    %2730 = vmatprep.subr.mxu0 0.0
    %2731 = vmatpush1.msra.mxu0 0.0
    %2732 = vmatprep.subr.mxu0 0.0
    %2733 = vmatpush1.msra.mxu0 0.0
    %2734 = vmatprep.subr.mxu0 0.0
    %v2735 = vand.u32 %v2418, 4294901760
    %2736 = vmatpush1.msra.mxu0 %v2735
    %2737 = vmatprep.subr.mxu0 0.0
    %v2738 = vand.u32 %v2415, 4294901760
    %2739 = vmatpush1.msra.mxu0 %v2738
    %2740 = vmatprep.subr.mxu0 0.0
    %v2741 = vand.u32 %v2414, 4294901760
    %2742 = vmatpush1.msra.mxu0 %v2741
    %2743 = vmatprep.subr.mxu0 0.0
    %2744 = vmatpush2.msra.mxu0 0.0
    %2745 = vmatprep.subr.mxu0 0.0
    %2746 = vmatpush2.msra.mxu0 0.0
    %2747 = vmatprep.subr.mxu0 0.0
    %2748 = vmatpush2.msra.mxu0 0.0
    %2749 = vmatprep.subr.mxu0 0.0
    %2750 = vmatpush2.msra.mxu0 0.0
    %2751 = vmatprep.subr.mxu0 0.0
    %2752 = vmatpush2.msra.mxu0 0.0
    %2753 = vmatprep.subr.mxu0 0.0
    %2754 = vmatpush2.msra.mxu0 0.0
    %2755 = vmatprep.subr.mxu0 0.0
    %2756 = vmatpush2.msra.mxu0 0.0
    %2757 = vmatprep.subr.mxu0 0.0
    %2758 = vmatpush2.msra.mxu0 0.0
    %2759 = vmatprep.subr.mxu0 0.0
    %2760 = vmatpush2.msra.mxu0 0.0
    %2761 = vmatprep.subr.mxu0 0.0
    %2762 = vmatpush2.msra.mxu0 0.0
    %2763 = vmatprep.subr.mxu0 0.0
    %2764 = vmatpush2.msra.mxu0 0.0
    %2765 = vmatprep.subr.mxu0 0.0
    %2766 = vmatpush2.msra.mxu0 0.0
    %2767 = vmatprep.subr.mxu0 0.0
    %2768 = vmatpush2.msra.mxu0 0.0
    %2769 = vmatprep.subr.mxu0 0.0
    %2770 = vmatpush2.msra.mxu0 0.0
    %2771 = vmatprep.subr.mxu0 0.0
    %2772 = vmatpush2.msra.mxu0 0.0
    %2773 = vmatprep.subr.mxu0 0.0
    %2774 = vmatpush2.msra.mxu0 0.0
    %2775 = vmatprep.mubr.f32.mxu0 0.0
    %v2776 = vand.u32 %v1807, 4294901760
    %v2777 = vsub.f32 %v1807, %v2776
    %v2778 = vand.u32 %v2777, 4294901760
    %2779 = vmatmul.mubr.f32.gmra.mxu0 %v2778
    %v2780 = vpop.f32.mrf.mxu0
    %v2781 = vadd.f32 %v2691, %v2780
    %v2782 = vpop.f32.mrf.mxu0
    %2783 = vmatprep.mubr.f32.mxu0 0.0
    %v2784 = vand.u32 %v1810, 4294901760
    %v2785 = vsub.f32 %v1810, %v2784
    %v2786 = vand.u32 %v2785, 4294901760
    %2787 = vmatmul.mubr.f32.gmra.mxu0 %v2786
    %v2788 = vpop.f32.mrf.mxu0
    %v2789 = vadd.f32 %v2698, %v2788
    %v2790 = vpop.f32.mrf.mxu0
    %2791 = vmatprep.mubr.f32.mxu0 0.0
    %v2792 = vand.u32 %v1813, 4294901760
    %v2793 = vsub.f32 %v1813, %v2792
    %v2794 = vand.u32 %v2793, 4294901760
    %2795 = vmatmul.mubr.f32.gmra.mxu0 %v2794
    %v2796 = vpop.f32.mrf.mxu0
    %v2797 = vadd.f32 %v2705, %v2796
    %v2798 = vpop.f32.mrf.mxu0
    %2799 = vdwg.mxu0
    %2800 = vmatprep.subr.mxu0 0.0
    %2801 = vmatpush1.msra.mxu0 0.0
    %2802 = vmatprep.subr.mxu0 0.0
    %2803 = vmatpush1.msra.mxu0 0.0
    %2804 = vmatprep.subr.mxu0 0.0
    %2805 = vmatpush1.msra.mxu0 0.0
    %2806 = vmatprep.subr.mxu0 0.0
    %2807 = vmatpush1.msra.mxu0 0.0
    %2808 = vmatprep.subr.mxu0 0.0
    %2809 = vmatpush1.msra.mxu0 0.0
    %2810 = vmatprep.subr.mxu0 0.0
    %2811 = vmatpush1.msra.mxu0 0.0
    %2812 = vmatprep.subr.mxu0 0.0
    %2813 = vmatpush1.msra.mxu0 0.0
    %2814 = vmatprep.subr.mxu0 0.0
    %2815 = vmatpush1.msra.mxu0 0.0
    %2816 = vmatprep.subr.mxu0 0.0
    %2817 = vmatpush1.msra.mxu0 0.0
    %2818 = vmatprep.subr.mxu0 0.0
    %2819 = vmatpush1.msra.mxu0 0.0
    %2820 = vmatprep.subr.mxu0 0.0
    %2821 = vmatpush1.msra.mxu0 0.0
    %2822 = vmatprep.subr.mxu0 0.0
    %2823 = vmatpush1.msra.mxu0 0.0
    %2824 = vmatprep.subr.mxu0 0.0
    %2825 = vmatpush1.msra.mxu0 0.0
    %2826 = vmatprep.subr.mxu0 0.0
    %v2827 = vand.u32 %v2418, 4294901760
    %v2828 = vsub.f32 %v2418, %v2827
    %v2829 = vand.u32 %v2828, 4294901760
    %2830 = vmatpush1.msra.mxu0 %v2829
    %2831 = vmatprep.subr.mxu0 0.0
    %v2832 = vand.u32 %v2415, 4294901760
    %v2833 = vsub.f32 %v2415, %v2832
    %v2834 = vand.u32 %v2833, 4294901760
    %2835 = vmatpush1.msra.mxu0 %v2834
    %2836 = vmatprep.subr.mxu0 0.0
    %v2837 = vand.u32 %v2414, 4294901760
    %v2838 = vsub.f32 %v2414, %v2837
    %v2839 = vand.u32 %v2838, 4294901760
    %2840 = vmatpush1.msra.mxu0 %v2839
    %2841 = vmatprep.subr.mxu0 0.0
    %2842 = vmatpush2.msra.mxu0 0.0
    %2843 = vmatprep.subr.mxu0 0.0
    %2844 = vmatpush2.msra.mxu0 0.0
    %2845 = vmatprep.subr.mxu0 0.0
    %2846 = vmatpush2.msra.mxu0 0.0
    %2847 = vmatprep.subr.mxu0 0.0
    %2848 = vmatpush2.msra.mxu0 0.0
    %2849 = vmatprep.subr.mxu0 0.0
    %2850 = vmatpush2.msra.mxu0 0.0
    %2851 = vmatprep.subr.mxu0 0.0
    %2852 = vmatpush2.msra.mxu0 0.0
    %2853 = vmatprep.subr.mxu0 0.0
    %2854 = vmatpush2.msra.mxu0 0.0
    %2855 = vmatprep.subr.mxu0 0.0
    %2856 = vmatpush2.msra.mxu0 0.0
    %2857 = vmatprep.subr.mxu0 0.0
    %2858 = vmatpush2.msra.mxu0 0.0
    %2859 = vmatprep.subr.mxu0 0.0
    %2860 = vmatpush2.msra.mxu0 0.0
    %2861 = vmatprep.subr.mxu0 0.0
    %2862 = vmatpush2.msra.mxu0 0.0
    %2863 = vmatprep.subr.mxu0 0.0
    %2864 = vmatpush2.msra.mxu0 0.0
    %2865 = vmatprep.subr.mxu0 0.0
    %2866 = vmatpush2.msra.mxu0 0.0
    %2867 = vmatprep.subr.mxu0 0.0
    %2868 = vmatpush2.msra.mxu0 0.0
    %2869 = vmatprep.subr.mxu0 0.0
    %2870 = vmatpush2.msra.mxu0 0.0
    %2871 = vmatprep.subr.mxu0 0.0
    %2872 = vmatpush2.msra.mxu0 0.0
    %2873 = vmatprep.mubr.f32.mxu0 0.0
    %v2874 = vand.u32 %v1807, 4294901760
    %2875 = vmatmul.mubr.f32.gmra.mxu0 %v2874
    %v2876 = vpop.f32.mrf.mxu0
    %v2877 = vadd.f32 %v2781, %v2876
    %v2878 = vpop.f32.mrf.mxu0
    %2879 = vmatprep.mubr.f32.mxu0 0.0
    %v2880 = vand.u32 %v1810, 4294901760
    %2881 = vmatmul.mubr.f32.gmra.mxu0 %v2880
    %v2882 = vpop.f32.mrf.mxu0
    %v2883 = vadd.f32 %v2789, %v2882
    %v2884 = vpop.f32.mrf.mxu0
    %2885 = vmatprep.mubr.f32.mxu0 0.0
    %v2886 = vand.u32 %v1813, 4294901760
    %2887 = vmatmul.mubr.f32.gmra.mxu0 %v2886
    %v2888 = vpop.f32.mrf.mxu0
    %v2889 = vadd.f32 %v2797, %v2888
    %v2890 = vpop.f32.mrf.mxu0
    %2891 = vdwg.mxu0
    %2892 = vmatprep.subr.mxu0 0.0
    %2893 = vmatpush1.msra.mxu0 0.0
    %2894 = vmatprep.subr.mxu0 0.0
    %2895 = vmatpush1.msra.mxu0 0.0
    %2896 = vmatprep.subr.mxu0 0.0
    %2897 = vmatpush1.msra.mxu0 0.0
    %2898 = vmatprep.subr.mxu0 0.0
    %2899 = vmatpush1.msra.mxu0 0.0
    %2900 = vmatprep.subr.mxu0 0.0
    %2901 = vmatpush1.msra.mxu0 0.0
    %2902 = vmatprep.subr.mxu0 0.0
    %2903 = vmatpush1.msra.mxu0 0.0
    %2904 = vmatprep.subr.mxu0 0.0
    %2905 = vmatpush1.msra.mxu0 0.0
    %2906 = vmatprep.subr.mxu0 0.0
    %2907 = vmatpush1.msra.mxu0 0.0
    %2908 = vmatprep.subr.mxu0 0.0
    %2909 = vmatpush1.msra.mxu0 0.0
    %2910 = vmatprep.subr.mxu0 0.0
    %2911 = vmatpush1.msra.mxu0 0.0
    %2912 = vmatprep.subr.mxu0 0.0
    %2913 = vmatpush1.msra.mxu0 0.0
    %2914 = vmatprep.subr.mxu0 0.0
    %2915 = vmatpush1.msra.mxu0 0.0
    %2916 = vmatprep.subr.mxu0 0.0
    %2917 = vmatpush1.msra.mxu0 0.0
    %2918 = vmatprep.subr.mxu0 0.0
    %v2919 = vand.u32 %v2418, 4294901760
    %2920 = vmatpush1.msra.mxu0 %v2919
    %2921 = vmatprep.subr.mxu0 0.0
    %v2922 = vand.u32 %v2415, 4294901760
    %2923 = vmatpush1.msra.mxu0 %v2922
    %2924 = vmatprep.subr.mxu0 0.0
    %v2925 = vand.u32 %v2414, 4294901760
    %2926 = vmatpush1.msra.mxu0 %v2925
    %2927 = vmatprep.subr.mxu0 0.0
    %2928 = vmatpush2.msra.mxu0 0.0
    %2929 = vmatprep.subr.mxu0 0.0
    %2930 = vmatpush2.msra.mxu0 0.0
    %2931 = vmatprep.subr.mxu0 0.0
    %2932 = vmatpush2.msra.mxu0 0.0
    %2933 = vmatprep.subr.mxu0 0.0
    %2934 = vmatpush2.msra.mxu0 0.0
    %2935 = vmatprep.subr.mxu0 0.0
    %2936 = vmatpush2.msra.mxu0 0.0
    %2937 = vmatprep.subr.mxu0 0.0
    %2938 = vmatpush2.msra.mxu0 0.0
    %2939 = vmatprep.subr.mxu0 0.0
    %2940 = vmatpush2.msra.mxu0 0.0
    %2941 = vmatprep.subr.mxu0 0.0
    %2942 = vmatpush2.msra.mxu0 0.0
    %2943 = vmatprep.subr.mxu0 0.0
    %2944 = vmatpush2.msra.mxu0 0.0
    %2945 = vmatprep.subr.mxu0 0.0
    %2946 = vmatpush2.msra.mxu0 0.0
    %2947 = vmatprep.subr.mxu0 0.0
    %2948 = vmatpush2.msra.mxu0 0.0
    %2949 = vmatprep.subr.mxu0 0.0
    %2950 = vmatpush2.msra.mxu0 0.0
    %2951 = vmatprep.subr.mxu0 0.0
    %2952 = vmatpush2.msra.mxu0 0.0
    %2953 = vmatprep.subr.mxu0 0.0
    %2954 = vmatpush2.msra.mxu0 0.0
    %2955 = vmatprep.subr.mxu0 0.0
    %2956 = vmatpush2.msra.mxu0 0.0
    %2957 = vmatprep.subr.mxu0 0.0
    %2958 = vmatpush2.msra.mxu0 0.0
    %2959 = vmatprep.mubr.f32.mxu0 0.0
    %v2960 = vand.u32 %v1807, 4294901760
    %2961 = vmatmul.mubr.f32.gmra.mxu0 %v2960
    %v2962 = vpop.f32.mrf.mxu0
    %v2963 = vadd.f32 %v2877, %v2962
    %v2964 = vpop.f32.mrf.mxu0
    %2965 = vmatprep.mubr.f32.mxu0 0.0
    %v2966 = vand.u32 %v1810, 4294901760
    %2967 = vmatmul.mubr.f32.gmra.mxu0 %v2966
    %v2968 = vpop.f32.mrf.mxu0
    %v2969 = vadd.f32 %v2883, %v2968
    %v2970 = vpop.f32.mrf.mxu0
    %2971 = vmatprep.mubr.f32.mxu0 0.0
    %v2972 = vand.u32 %v1813, 4294901760
    %2973 = vmatmul.mubr.f32.gmra.mxu0 %v2972
    %v2974 = vpop.f32.mrf.mxu0
    %v2975 = vadd.f32 %v2889, %v2974
    %v2976 = vpop.f32.mrf.mxu0
    %2977 = vdwg.mxu0
    %v2978 = vmul.f32 %v2400, %v2963
    %v2979 = vmul.f32 %v2401, %v2969
    %v2980 = vmul.f32 %v2402, %v2975
    %v2981 = vadd.f32 %v2978, %v2979
    %v2982 = vsel %vm1815, %v2980, 0.0
    %v2983 = vadd.f32 %v2981, %v2982
    %v2984 = vrot.slane %v2983, 4
    %v2985 = vadd.f32 %v2983, %v2984
    %v2986 = vrot.slane %v2985, 2
    %v2987 = vadd.f32 %v2985, %v2986
    %v2988 = vrot.slane %v2987, 1
    %v2989 = vadd.f32 %v2987, %v2988
    %v2990 = vld [vmem:[%s4 + $0x2] sm:$0x1]
    %v2991 = vlaneseq
    %v2992 = vshrl.u32 %v2991, 7
    %v2993 = vsub.s32 0, %v2992
    %v2994 = vrot.slane %v2990, %v2993
    %vm2995 = vcmp.eq.s32.totalorder %v1774, %v2994
    %vm2996 = vcmp.eq.s32.totalorder %v1775, %v2994
    %vm2997 = vcmp.eq.s32.totalorder %v1776, %v2994
    %v2998 = vsel %vm2995, 1, 0
    %v2999 = vsel %vm2996, 1, 0
    %v3000 = vsel %vm2997, 1, 0
    %v3001 = vcvt.s32.f32 %v2998
    %v3002 = vcvt.s32.f32 %v2999
    %v3003 = vcvt.s32.f32 %v3000
    %v3004 = vld [vmem:[%s4 + $0x5] sm:$0x1]
    %v3005 = vlaneseq
    %v3006 = vshrl.u32 %v3005, 7
    %v3007 = vsub.s32 0, %v3006
    %v3008 = vrot.slane %v3004, %v3007
    %vm3009 = vcmp.eq.s32.totalorder %v1774, %v3008
    %vm3010 = vcmp.eq.s32.totalorder %v1775, %v3008
    %vm3011 = vcmp.eq.s32.totalorder %v1776, %v3008
    %v3012 = vsel %vm3009, 1, 0
    %v3013 = vsel %vm3010, 1, 0
    %v3014 = vsel %vm3011, 1, 0
    %v3015 = vcvt.s32.f32 %v3012
    %v3016 = vcvt.s32.f32 %v3013
    %v3017 = vcvt.s32.f32 %v3014
    %v3019 = vsel %vm1815, %v3017, 0
    %3021 = vmatprep.subr.mxu0 0.0
    %3022 = vmatpush1.msra.mxu0 0.0
    %3023 = vmatprep.subr.mxu0 0.0
    %3024 = vmatpush1.msra.mxu0 0.0
    %3025 = vmatprep.subr.mxu0 0.0
    %3026 = vmatpush1.msra.mxu0 0.0
    %3027 = vmatprep.subr.mxu0 0.0
    %3028 = vmatpush1.msra.mxu0 0.0
    %3029 = vmatprep.subr.mxu0 0.0
    %3030 = vmatpush1.msra.mxu0 0.0
    %3031 = vmatprep.subr.mxu0 0.0
    %3032 = vmatpush1.msra.mxu0 0.0
    %3033 = vmatprep.subr.mxu0 0.0
    %3034 = vmatpush1.msra.mxu0 0.0
    %3035 = vmatprep.subr.mxu0 0.0
    %3036 = vmatpush1.msra.mxu0 0.0
    %3037 = vmatprep.subr.mxu0 0.0
    %3038 = vmatpush1.msra.mxu0 0.0
    %3039 = vmatprep.subr.mxu0 0.0
    %3040 = vmatpush1.msra.mxu0 0.0
    %3041 = vmatprep.subr.mxu0 0.0
    %3042 = vmatpush1.msra.mxu0 0.0
    %3043 = vmatprep.subr.mxu0 0.0
    %3044 = vmatpush1.msra.mxu0 0.0
    %3045 = vmatprep.subr.mxu0 0.0
    %3046 = vmatpush1.msra.mxu0 0.0
    %3047 = vmatprep.subr.mxu0 0.0
    %v3048 = vand.u32 %v3019, 4294901760
    %3049 = vmatpush1.msra.mxu0 %v3048
    %3050 = vmatprep.subr.mxu0 0.0
    %v3051 = vand.u32 %v3016, 4294901760
    %3052 = vmatpush1.msra.mxu0 %v3051
    %3053 = vmatprep.subr.mxu0 0.0
    %v3054 = vand.u32 %v3015, 4294901760
    %3055 = vmatpush1.msra.mxu0 %v3054
    %3056 = vmatprep.subr.mxu0 0.0
    %3057 = vmatpush2.msra.mxu0 0.0
    %3058 = vmatprep.subr.mxu0 0.0
    %3059 = vmatpush2.msra.mxu0 0.0
    %3060 = vmatprep.subr.mxu0 0.0
    %3061 = vmatpush2.msra.mxu0 0.0
    %3062 = vmatprep.subr.mxu0 0.0
    %3063 = vmatpush2.msra.mxu0 0.0
    %3064 = vmatprep.subr.mxu0 0.0
    %3065 = vmatpush2.msra.mxu0 0.0
    %3066 = vmatprep.subr.mxu0 0.0
    %3067 = vmatpush2.msra.mxu0 0.0
    %3068 = vmatprep.subr.mxu0 0.0
    %3069 = vmatpush2.msra.mxu0 0.0
    %3070 = vmatprep.subr.mxu0 0.0
    %3071 = vmatpush2.msra.mxu0 0.0
    %3072 = vmatprep.subr.mxu0 0.0
    %3073 = vmatpush2.msra.mxu0 0.0
    %3074 = vmatprep.subr.mxu0 0.0
    %3075 = vmatpush2.msra.mxu0 0.0
    %3076 = vmatprep.subr.mxu0 0.0
    %3077 = vmatpush2.msra.mxu0 0.0
    %3078 = vmatprep.subr.mxu0 0.0
    %3079 = vmatpush2.msra.mxu0 0.0
    %3080 = vmatprep.subr.mxu0 0.0
    %3081 = vmatpush2.msra.mxu0 0.0
    %3082 = vmatprep.subr.mxu0 0.0
    %3083 = vmatpush2.msra.mxu0 0.0
    %3084 = vmatprep.subr.mxu0 0.0
    %3085 = vmatpush2.msra.mxu0 0.0
    %3086 = vmatprep.subr.mxu0 0.0
    %3087 = vmatpush2.msra.mxu0 0.0
    %3088 = vmatprep.mubr.f32.mxu0 0.0
    %v3089 = vand.u32 %v1807, 4294901760
    %v3090 = vsub.f32 %v1807, %v3089
    %v3091 = vand.u32 %v3090, 4294901760
    %v3092 = vsub.f32 %v3090, %v3091
    %v3093 = vand.u32 %v3092, 4294901760
    %3094 = vmatmul.mubr.f32.gmra.mxu0 %v3093
    %v3095 = vpop.f32.mrf.mxu0
    %v3096 = vadd.f32 0.0, %v3095
    %v3097 = vpop.f32.mrf.mxu0
    %3098 = vmatprep.mubr.f32.mxu0 0.0
    %v3099 = vand.u32 %v1810, 4294901760
    %v3100 = vsub.f32 %v1810, %v3099
    %v3101 = vand.u32 %v3100, 4294901760
    %v3102 = vsub.f32 %v3100, %v3101
    %v3103 = vand.u32 %v3102, 4294901760
    %3104 = vmatmul.mubr.f32.gmra.mxu0 %v3103
    %v3105 = vpop.f32.mrf.mxu0
    %v3106 = vadd.f32 0.0, %v3105
    %v3107 = vpop.f32.mrf.mxu0
    %3108 = vmatprep.mubr.f32.mxu0 0.0
    %v3109 = vand.u32 %v1813, 4294901760
    %v3110 = vsub.f32 %v1813, %v3109
    %v3111 = vand.u32 %v3110, 4294901760
    %v3112 = vsub.f32 %v3110, %v3111
    %v3113 = vand.u32 %v3112, 4294901760
    %3114 = vmatmul.mubr.f32.gmra.mxu0 %v3113
    %v3115 = vpop.f32.mrf.mxu0
    %v3116 = vadd.f32 0.0, %v3115
    %v3117 = vpop.f32.mrf.mxu0
    %3118 = vdwg.mxu0
    %3119 = vmatprep.subr.mxu0 0.0
    %3120 = vmatpush1.msra.mxu0 0.0
    %3121 = vmatprep.subr.mxu0 0.0
    %3122 = vmatpush1.msra.mxu0 0.0
    %3123 = vmatprep.subr.mxu0 0.0
    %3124 = vmatpush1.msra.mxu0 0.0
    %3125 = vmatprep.subr.mxu0 0.0
    %3126 = vmatpush1.msra.mxu0 0.0
    %3127 = vmatprep.subr.mxu0 0.0
    %3128 = vmatpush1.msra.mxu0 0.0
    %3129 = vmatprep.subr.mxu0 0.0
    %3130 = vmatpush1.msra.mxu0 0.0
    %3131 = vmatprep.subr.mxu0 0.0
    %3132 = vmatpush1.msra.mxu0 0.0
    %3133 = vmatprep.subr.mxu0 0.0
    %3134 = vmatpush1.msra.mxu0 0.0
    %3135 = vmatprep.subr.mxu0 0.0
    %3136 = vmatpush1.msra.mxu0 0.0
    %3137 = vmatprep.subr.mxu0 0.0
    %3138 = vmatpush1.msra.mxu0 0.0
    %3139 = vmatprep.subr.mxu0 0.0
    %3140 = vmatpush1.msra.mxu0 0.0
    %3141 = vmatprep.subr.mxu0 0.0
    %3142 = vmatpush1.msra.mxu0 0.0
    %3143 = vmatprep.subr.mxu0 0.0
    %3144 = vmatpush1.msra.mxu0 0.0
    %3145 = vmatprep.subr.mxu0 0.0
    %v3146 = vand.u32 %v3019, 4294901760
    %v3147 = vsub.f32 %v3019, %v3146
    %v3148 = vand.u32 %v3147, 4294901760
    %v3149 = vsub.f32 %v3147, %v3148
    %v3150 = vand.u32 %v3149, 4294901760
    %3151 = vmatpush1.msra.mxu0 %v3150
    %3152 = vmatprep.subr.mxu0 0.0
    %v3153 = vand.u32 %v3016, 4294901760
    %v3154 = vsub.f32 %v3016, %v3153
    %v3155 = vand.u32 %v3154, 4294901760
    %v3156 = vsub.f32 %v3154, %v3155
    %v3157 = vand.u32 %v3156, 4294901760
    %3158 = vmatpush1.msra.mxu0 %v3157
    %3159 = vmatprep.subr.mxu0 0.0
    %v3160 = vand.u32 %v3015, 4294901760
    %v3161 = vsub.f32 %v3015, %v3160
    %v3162 = vand.u32 %v3161, 4294901760
    %v3163 = vsub.f32 %v3161, %v3162
    %v3164 = vand.u32 %v3163, 4294901760
    %3165 = vmatpush1.msra.mxu0 %v3164
    %3166 = vmatprep.subr.mxu0 0.0
    %3167 = vmatpush2.msra.mxu0 0.0
    %3168 = vmatprep.subr.mxu0 0.0
    %3169 = vmatpush2.msra.mxu0 0.0
    %3170 = vmatprep.subr.mxu0 0.0
    %3171 = vmatpush2.msra.mxu0 0.0
    %3172 = vmatprep.subr.mxu0 0.0
    %3173 = vmatpush2.msra.mxu0 0.0
    %3174 = vmatprep.subr.mxu0 0.0
    %3175 = vmatpush2.msra.mxu0 0.0
    %3176 = vmatprep.subr.mxu0 0.0
    %3177 = vmatpush2.msra.mxu0 0.0
    %3178 = vmatprep.subr.mxu0 0.0
    %3179 = vmatpush2.msra.mxu0 0.0
    %3180 = vmatprep.subr.mxu0 0.0
    %3181 = vmatpush2.msra.mxu0 0.0
    %3182 = vmatprep.subr.mxu0 0.0
    %3183 = vmatpush2.msra.mxu0 0.0
    %3184 = vmatprep.subr.mxu0 0.0
    %3185 = vmatpush2.msra.mxu0 0.0
    %3186 = vmatprep.subr.mxu0 0.0
    %3187 = vmatpush2.msra.mxu0 0.0
    %3188 = vmatprep.subr.mxu0 0.0
    %3189 = vmatpush2.msra.mxu0 0.0
    %3190 = vmatprep.subr.mxu0 0.0
    %3191 = vmatpush2.msra.mxu0 0.0
    %3192 = vmatprep.subr.mxu0 0.0
    %3193 = vmatpush2.msra.mxu0 0.0
    %3194 = vmatprep.subr.mxu0 0.0
    %3195 = vmatpush2.msra.mxu0 0.0
    %3196 = vmatprep.subr.mxu0 0.0
    %3197 = vmatpush2.msra.mxu0 0.0
    %3198 = vmatprep.mubr.f32.mxu0 0.0
    %v3199 = vand.u32 %v1807, 4294901760
    %3200 = vmatmul.mubr.f32.gmra.mxu0 %v3199
    %v3201 = vpop.f32.mrf.mxu0
    %v3202 = vadd.f32 %v3096, %v3201
    %v3203 = vpop.f32.mrf.mxu0
    %3204 = vmatprep.mubr.f32.mxu0 0.0
    %v3205 = vand.u32 %v1810, 4294901760
    %3206 = vmatmul.mubr.f32.gmra.mxu0 %v3205
    %v3207 = vpop.f32.mrf.mxu0
    %v3208 = vadd.f32 %v3106, %v3207
    %v3209 = vpop.f32.mrf.mxu0
    %3210 = vmatprep.mubr.f32.mxu0 0.0
    %v3211 = vand.u32 %v1813, 4294901760
    %3212 = vmatmul.mubr.f32.gmra.mxu0 %v3211
    %v3213 = vpop.f32.mrf.mxu0
    %v3214 = vadd.f32 %v3116, %v3213
    %v3215 = vpop.f32.mrf.mxu0
    %3216 = vdwg.mxu0
    %3217 = vmatprep.subr.mxu0 0.0
    %3218 = vmatpush1.msra.mxu0 0.0
    %3219 = vmatprep.subr.mxu0 0.0
    %3220 = vmatpush1.msra.mxu0 0.0
    %3221 = vmatprep.subr.mxu0 0.0
    %3222 = vmatpush1.msra.mxu0 0.0
    %3223 = vmatprep.subr.mxu0 0.0
    %3224 = vmatpush1.msra.mxu0 0.0
    %3225 = vmatprep.subr.mxu0 0.0
    %3226 = vmatpush1.msra.mxu0 0.0
    %3227 = vmatprep.subr.mxu0 0.0
    %3228 = vmatpush1.msra.mxu0 0.0
    %3229 = vmatprep.subr.mxu0 0.0
    %3230 = vmatpush1.msra.mxu0 0.0
    %3231 = vmatprep.subr.mxu0 0.0
    %3232 = vmatpush1.msra.mxu0 0.0
    %3233 = vmatprep.subr.mxu0 0.0
    %3234 = vmatpush1.msra.mxu0 0.0
    %3235 = vmatprep.subr.mxu0 0.0
    %3236 = vmatpush1.msra.mxu0 0.0
    %3237 = vmatprep.subr.mxu0 0.0
    %3238 = vmatpush1.msra.mxu0 0.0
    %3239 = vmatprep.subr.mxu0 0.0
    %3240 = vmatpush1.msra.mxu0 0.0
    %3241 = vmatprep.subr.mxu0 0.0
    %3242 = vmatpush1.msra.mxu0 0.0
    %3243 = vmatprep.subr.mxu0 0.0
    %v3244 = vand.u32 %v3019, 4294901760
    %v3245 = vsub.f32 %v3019, %v3244
    %3246 = vmatpush1.msra.mxu0 %v3245
    %3247 = vmatprep.subr.mxu0 0.0
    %v3248 = vand.u32 %v3016, 4294901760
    %v3249 = vsub.f32 %v3016, %v3248
    %3250 = vmatpush1.msra.mxu0 %v3249
    %3251 = vmatprep.subr.mxu0 0.0
    %v3252 = vand.u32 %v3015, 4294901760
    %v3253 = vsub.f32 %v3015, %v3252
    %3254 = vmatpush1.msra.mxu0 %v3253
    %3255 = vmatprep.subr.mxu0 0.0
    %3256 = vmatpush2.msra.mxu0 0.0
    %3257 = vmatprep.subr.mxu0 0.0
    %3258 = vmatpush2.msra.mxu0 0.0
    %3259 = vmatprep.subr.mxu0 0.0
    %3260 = vmatpush2.msra.mxu0 0.0
    %3261 = vmatprep.subr.mxu0 0.0
    %3262 = vmatpush2.msra.mxu0 0.0
    %3263 = vmatprep.subr.mxu0 0.0
    %3264 = vmatpush2.msra.mxu0 0.0
    %3265 = vmatprep.subr.mxu0 0.0
    %3266 = vmatpush2.msra.mxu0 0.0
    %3267 = vmatprep.subr.mxu0 0.0
    %3268 = vmatpush2.msra.mxu0 0.0
    %3269 = vmatprep.subr.mxu0 0.0
    %3270 = vmatpush2.msra.mxu0 0.0
    %3271 = vmatprep.subr.mxu0 0.0
    %3272 = vmatpush2.msra.mxu0 0.0
    %3273 = vmatprep.subr.mxu0 0.0
    %3274 = vmatpush2.msra.mxu0 0.0
    %3275 = vmatprep.subr.mxu0 0.0
    %3276 = vmatpush2.msra.mxu0 0.0
    %3277 = vmatprep.subr.mxu0 0.0
    %3278 = vmatpush2.msra.mxu0 0.0
    %3279 = vmatprep.subr.mxu0 0.0
    %3280 = vmatpush2.msra.mxu0 0.0
    %3281 = vmatprep.subr.mxu0 0.0
    %3282 = vmatpush2.msra.mxu0 0.0
    %3283 = vmatprep.subr.mxu0 0.0
    %3284 = vmatpush2.msra.mxu0 0.0
    %3285 = vmatprep.subr.mxu0 0.0
    %3286 = vmatpush2.msra.mxu0 0.0
    %3287 = vmatprep.mubr.f32.mxu0 0.0
    %v3288 = vand.u32 %v1807, 4294901760
    %v3289 = vsub.f32 %v1807, %v3288
    %3290 = vmatmul.mubr.f32.gmra.mxu0 %v3289
    %v3291 = vpop.f32.mrf.mxu0
    %v3292 = vadd.f32 %v3202, %v3291
    %v3293 = vpop.f32.mrf.mxu0
    %3294 = vmatprep.mubr.f32.mxu0 0.0
    %v3295 = vand.u32 %v1810, 4294901760
    %v3296 = vsub.f32 %v1810, %v3295
    %3297 = vmatmul.mubr.f32.gmra.mxu0 %v3296
    %v3298 = vpop.f32.mrf.mxu0
    %v3299 = vadd.f32 %v3208, %v3298
    %v3300 = vpop.f32.mrf.mxu0
    %3301 = vmatprep.mubr.f32.mxu0 0.0
    %v3302 = vand.u32 %v1813, 4294901760
    %v3303 = vsub.f32 %v1813, %v3302
    %3304 = vmatmul.mubr.f32.gmra.mxu0 %v3303
    %v3305 = vpop.f32.mrf.mxu0
    %v3306 = vadd.f32 %v3214, %v3305
    %v3307 = vpop.f32.mrf.mxu0
    %3308 = vdwg.mxu0
    %3309 = vmatprep.subr.mxu0 0.0
    %3310 = vmatpush1.msra.mxu0 0.0
    %3311 = vmatprep.subr.mxu0 0.0
    %3312 = vmatpush1.msra.mxu0 0.0
    %3313 = vmatprep.subr.mxu0 0.0
    %3314 = vmatpush1.msra.mxu0 0.0
    %3315 = vmatprep.subr.mxu0 0.0
    %3316 = vmatpush1.msra.mxu0 0.0
    %3317 = vmatprep.subr.mxu0 0.0
    %3318 = vmatpush1.msra.mxu0 0.0
    %3319 = vmatprep.subr.mxu0 0.0
    %3320 = vmatpush1.msra.mxu0 0.0
    %3321 = vmatprep.subr.mxu0 0.0
    %3322 = vmatpush1.msra.mxu0 0.0
    %3323 = vmatprep.subr.mxu0 0.0
    %3324 = vmatpush1.msra.mxu0 0.0
    %3325 = vmatprep.subr.mxu0 0.0
    %3326 = vmatpush1.msra.mxu0 0.0
    %3327 = vmatprep.subr.mxu0 0.0
    %3328 = vmatpush1.msra.mxu0 0.0
    %3329 = vmatprep.subr.mxu0 0.0
    %3330 = vmatpush1.msra.mxu0 0.0
    %3331 = vmatprep.subr.mxu0 0.0
    %3332 = vmatpush1.msra.mxu0 0.0
    %3333 = vmatprep.subr.mxu0 0.0
    %3334 = vmatpush1.msra.mxu0 0.0
    %3335 = vmatprep.subr.mxu0 0.0
    %v3336 = vand.u32 %v3019, 4294901760
    %3337 = vmatpush1.msra.mxu0 %v3336
    %3338 = vmatprep.subr.mxu0 0.0
    %v3339 = vand.u32 %v3016, 4294901760
    %3340 = vmatpush1.msra.mxu0 %v3339
    %3341 = vmatprep.subr.mxu0 0.0
    %v3342 = vand.u32 %v3015, 4294901760
    %3343 = vmatpush1.msra.mxu0 %v3342
    %3344 = vmatprep.subr.mxu0 0.0
    %3345 = vmatpush2.msra.mxu0 0.0
    %3346 = vmatprep.subr.mxu0 0.0
    %3347 = vmatpush2.msra.mxu0 0.0
    %3348 = vmatprep.subr.mxu0 0.0
    %3349 = vmatpush2.msra.mxu0 0.0
    %3350 = vmatprep.subr.mxu0 0.0
    %3351 = vmatpush2.msra.mxu0 0.0
    %3352 = vmatprep.subr.mxu0 0.0
    %3353 = vmatpush2.msra.mxu0 0.0
    %3354 = vmatprep.subr.mxu0 0.0
    %3355 = vmatpush2.msra.mxu0 0.0
    %3356 = vmatprep.subr.mxu0 0.0
    %3357 = vmatpush2.msra.mxu0 0.0
    %3358 = vmatprep.subr.mxu0 0.0
    %3359 = vmatpush2.msra.mxu0 0.0
    %3360 = vmatprep.subr.mxu0 0.0
    %3361 = vmatpush2.msra.mxu0 0.0
    %3362 = vmatprep.subr.mxu0 0.0
    %3363 = vmatpush2.msra.mxu0 0.0
    %3364 = vmatprep.subr.mxu0 0.0
    %3365 = vmatpush2.msra.mxu0 0.0
    %3366 = vmatprep.subr.mxu0 0.0
    %3367 = vmatpush2.msra.mxu0 0.0
    %3368 = vmatprep.subr.mxu0 0.0
    %3369 = vmatpush2.msra.mxu0 0.0
    %3370 = vmatprep.subr.mxu0 0.0
    %3371 = vmatpush2.msra.mxu0 0.0
    %3372 = vmatprep.subr.mxu0 0.0
    %3373 = vmatpush2.msra.mxu0 0.0
    %3374 = vmatprep.subr.mxu0 0.0
    %3375 = vmatpush2.msra.mxu0 0.0
    %3376 = vmatprep.mubr.f32.mxu0 0.0
    %v3377 = vand.u32 %v1807, 4294901760
    %v3378 = vsub.f32 %v1807, %v3377
    %v3379 = vand.u32 %v3378, 4294901760
    %3380 = vmatmul.mubr.f32.gmra.mxu0 %v3379
    %v3381 = vpop.f32.mrf.mxu0
    %v3382 = vadd.f32 %v3292, %v3381
    %v3383 = vpop.f32.mrf.mxu0
    %3384 = vmatprep.mubr.f32.mxu0 0.0
    %v3385 = vand.u32 %v1810, 4294901760
    %v3386 = vsub.f32 %v1810, %v3385
    %v3387 = vand.u32 %v3386, 4294901760
    %3388 = vmatmul.mubr.f32.gmra.mxu0 %v3387
    %v3389 = vpop.f32.mrf.mxu0
    %v3390 = vadd.f32 %v3299, %v3389
    %v3391 = vpop.f32.mrf.mxu0
    %3392 = vmatprep.mubr.f32.mxu0 0.0
    %v3393 = vand.u32 %v1813, 4294901760
    %v3394 = vsub.f32 %v1813, %v3393
    %v3395 = vand.u32 %v3394, 4294901760
    %3396 = vmatmul.mubr.f32.gmra.mxu0 %v3395
    %v3397 = vpop.f32.mrf.mxu0
    %v3398 = vadd.f32 %v3306, %v3397
    %v3399 = vpop.f32.mrf.mxu0
    %3400 = vdwg.mxu0
    %3401 = vmatprep.subr.mxu0 0.0
    %3402 = vmatpush1.msra.mxu0 0.0
    %3403 = vmatprep.subr.mxu0 0.0
    %3404 = vmatpush1.msra.mxu0 0.0
    %3405 = vmatprep.subr.mxu0 0.0
    %3406 = vmatpush1.msra.mxu0 0.0
    %3407 = vmatprep.subr.mxu0 0.0
    %3408 = vmatpush1.msra.mxu0 0.0
    %3409 = vmatprep.subr.mxu0 0.0
    %3410 = vmatpush1.msra.mxu0 0.0
    %3411 = vmatprep.subr.mxu0 0.0
    %3412 = vmatpush1.msra.mxu0 0.0
    %3413 = vmatprep.subr.mxu0 0.0
    %3414 = vmatpush1.msra.mxu0 0.0
    %3415 = vmatprep.subr.mxu0 0.0
    %3416 = vmatpush1.msra.mxu0 0.0
    %3417 = vmatprep.subr.mxu0 0.0
    %3418 = vmatpush1.msra.mxu0 0.0
    %3419 = vmatprep.subr.mxu0 0.0
    %3420 = vmatpush1.msra.mxu0 0.0
    %3421 = vmatprep.subr.mxu0 0.0
    %3422 = vmatpush1.msra.mxu0 0.0
    %3423 = vmatprep.subr.mxu0 0.0
    %3424 = vmatpush1.msra.mxu0 0.0
    %3425 = vmatprep.subr.mxu0 0.0
    %3426 = vmatpush1.msra.mxu0 0.0
    %3427 = vmatprep.subr.mxu0 0.0
    %v3428 = vand.u32 %v3019, 4294901760
    %v3429 = vsub.f32 %v3019, %v3428
    %v3430 = vand.u32 %v3429, 4294901760
    %3431 = vmatpush1.msra.mxu0 %v3430
    %3432 = vmatprep.subr.mxu0 0.0
    %v3433 = vand.u32 %v3016, 4294901760
    %v3434 = vsub.f32 %v3016, %v3433
    %v3435 = vand.u32 %v3434, 4294901760
    %3436 = vmatpush1.msra.mxu0 %v3435
    %3437 = vmatprep.subr.mxu0 0.0
    %v3438 = vand.u32 %v3015, 4294901760
    %v3439 = vsub.f32 %v3015, %v3438
    %v3440 = vand.u32 %v3439, 4294901760
    %3441 = vmatpush1.msra.mxu0 %v3440
    %3442 = vmatprep.subr.mxu0 0.0
    %3443 = vmatpush2.msra.mxu0 0.0
    %3444 = vmatprep.subr.mxu0 0.0
    %3445 = vmatpush2.msra.mxu0 0.0
    %3446 = vmatprep.subr.mxu0 0.0
    %3447 = vmatpush2.msra.mxu0 0.0
    %3448 = vmatprep.subr.mxu0 0.0
    %3449 = vmatpush2.msra.mxu0 0.0
    %3450 = vmatprep.subr.mxu0 0.0
    %3451 = vmatpush2.msra.mxu0 0.0
    %3452 = vmatprep.subr.mxu0 0.0
    %3453 = vmatpush2.msra.mxu0 0.0
    %3454 = vmatprep.subr.mxu0 0.0
    %3455 = vmatpush2.msra.mxu0 0.0
    %3456 = vmatprep.subr.mxu0 0.0
    %3457 = vmatpush2.msra.mxu0 0.0
    %3458 = vmatprep.subr.mxu0 0.0
    %3459 = vmatpush2.msra.mxu0 0.0
    %3460 = vmatprep.subr.mxu0 0.0
    %3461 = vmatpush2.msra.mxu0 0.0
    %3462 = vmatprep.subr.mxu0 0.0
    %3463 = vmatpush2.msra.mxu0 0.0
    %3464 = vmatprep.subr.mxu0 0.0
    %3465 = vmatpush2.msra.mxu0 0.0
    %3466 = vmatprep.subr.mxu0 0.0
    %3467 = vmatpush2.msra.mxu0 0.0
    %3468 = vmatprep.subr.mxu0 0.0
    %3469 = vmatpush2.msra.mxu0 0.0
    %3470 = vmatprep.subr.mxu0 0.0
    %3471 = vmatpush2.msra.mxu0 0.0
    %3472 = vmatprep.subr.mxu0 0.0
    %3473 = vmatpush2.msra.mxu0 0.0
    %3474 = vmatprep.mubr.f32.mxu0 0.0
    %v3475 = vand.u32 %v1807, 4294901760
    %3476 = vmatmul.mubr.f32.gmra.mxu0 %v3475
    %v3477 = vpop.f32.mrf.mxu0
    %v3478 = vadd.f32 %v3382, %v3477
    %v3479 = vpop.f32.mrf.mxu0
    %3480 = vmatprep.mubr.f32.mxu0 0.0
    %v3481 = vand.u32 %v1810, 4294901760
    %3482 = vmatmul.mubr.f32.gmra.mxu0 %v3481
    %v3483 = vpop.f32.mrf.mxu0
    %v3484 = vadd.f32 %v3390, %v3483
    %v3485 = vpop.f32.mrf.mxu0
    %3486 = vmatprep.mubr.f32.mxu0 0.0
    %v3487 = vand.u32 %v1813, 4294901760
    %3488 = vmatmul.mubr.f32.gmra.mxu0 %v3487
    %v3489 = vpop.f32.mrf.mxu0
    %v3490 = vadd.f32 %v3398, %v3489
    %v3491 = vpop.f32.mrf.mxu0
    %3492 = vdwg.mxu0
    %3493 = vmatprep.subr.mxu0 0.0
    %3494 = vmatpush1.msra.mxu0 0.0
    %3495 = vmatprep.subr.mxu0 0.0
    %3496 = vmatpush1.msra.mxu0 0.0
    %3497 = vmatprep.subr.mxu0 0.0
    %3498 = vmatpush1.msra.mxu0 0.0
    %3499 = vmatprep.subr.mxu0 0.0
    %3500 = vmatpush1.msra.mxu0 0.0
    %3501 = vmatprep.subr.mxu0 0.0
    %3502 = vmatpush1.msra.mxu0 0.0
    %3503 = vmatprep.subr.mxu0 0.0
    %3504 = vmatpush1.msra.mxu0 0.0
    %3505 = vmatprep.subr.mxu0 0.0
    %3506 = vmatpush1.msra.mxu0 0.0
    %3507 = vmatprep.subr.mxu0 0.0
    %3508 = vmatpush1.msra.mxu0 0.0
    %3509 = vmatprep.subr.mxu0 0.0
    %3510 = vmatpush1.msra.mxu0 0.0
    %3511 = vmatprep.subr.mxu0 0.0
    %3512 = vmatpush1.msra.mxu0 0.0
    %3513 = vmatprep.subr.mxu0 0.0
    %3514 = vmatpush1.msra.mxu0 0.0
    %3515 = vmatprep.subr.mxu0 0.0
    %3516 = vmatpush1.msra.mxu0 0.0
    %3517 = vmatprep.subr.mxu0 0.0
    %3518 = vmatpush1.msra.mxu0 0.0
    %3519 = vmatprep.subr.mxu0 0.0
    %v3520 = vand.u32 %v3019, 4294901760
    %3521 = vmatpush1.msra.mxu0 %v3520
    %3522 = vmatprep.subr.mxu0 0.0
    %v3523 = vand.u32 %v3016, 4294901760
    %3524 = vmatpush1.msra.mxu0 %v3523
    %3525 = vmatprep.subr.mxu0 0.0
    %v3526 = vand.u32 %v3015, 4294901760
    %3527 = vmatpush1.msra.mxu0 %v3526
    %3528 = vmatprep.subr.mxu0 0.0
    %3529 = vmatpush2.msra.mxu0 0.0
    %3530 = vmatprep.subr.mxu0 0.0
    %3531 = vmatpush2.msra.mxu0 0.0
    %3532 = vmatprep.subr.mxu0 0.0
    %3533 = vmatpush2.msra.mxu0 0.0
    %3534 = vmatprep.subr.mxu0 0.0
    %3535 = vmatpush2.msra.mxu0 0.0
    %3536 = vmatprep.subr.mxu0 0.0
    %3537 = vmatpush2.msra.mxu0 0.0
    %3538 = vmatprep.subr.mxu0 0.0
    %3539 = vmatpush2.msra.mxu0 0.0
    %3540 = vmatprep.subr.mxu0 0.0
    %3541 = vmatpush2.msra.mxu0 0.0
    %3542 = vmatprep.subr.mxu0 0.0
    %3543 = vmatpush2.msra.mxu0 0.0
    %3544 = vmatprep.subr.mxu0 0.0
    %3545 = vmatpush2.msra.mxu0 0.0
    %3546 = vmatprep.subr.mxu0 0.0
    %3547 = vmatpush2.msra.mxu0 0.0
    %3548 = vmatprep.subr.mxu0 0.0
    %3549 = vmatpush2.msra.mxu0 0.0
    %3550 = vmatprep.subr.mxu0 0.0
    %3551 = vmatpush2.msra.mxu0 0.0
    %3552 = vmatprep.subr.mxu0 0.0
    %3553 = vmatpush2.msra.mxu0 0.0
    %3554 = vmatprep.subr.mxu0 0.0
    %3555 = vmatpush2.msra.mxu0 0.0
    %3556 = vmatprep.subr.mxu0 0.0
    %3557 = vmatpush2.msra.mxu0 0.0
    %3558 = vmatprep.subr.mxu0 0.0
    %3559 = vmatpush2.msra.mxu0 0.0
    %3560 = vmatprep.mubr.f32.mxu0 0.0
    %v3561 = vand.u32 %v1807, 4294901760
    %3562 = vmatmul.mubr.f32.gmra.mxu0 %v3561
    %v3563 = vpop.f32.mrf.mxu0
    %v3564 = vadd.f32 %v3478, %v3563
    %v3565 = vpop.f32.mrf.mxu0
    %3566 = vmatprep.mubr.f32.mxu0 0.0
    %v3567 = vand.u32 %v1810, 4294901760
    %3568 = vmatmul.mubr.f32.gmra.mxu0 %v3567
    %v3569 = vpop.f32.mrf.mxu0
    %v3570 = vadd.f32 %v3484, %v3569
    %v3571 = vpop.f32.mrf.mxu0
    %3572 = vmatprep.mubr.f32.mxu0 0.0
    %v3573 = vand.u32 %v1813, 4294901760
    %3574 = vmatmul.mubr.f32.gmra.mxu0 %v3573
    %v3575 = vpop.f32.mrf.mxu0
    %v3576 = vadd.f32 %v3490, %v3575
    %v3577 = vpop.f32.mrf.mxu0
    %3578 = vdwg.mxu0
    %v3579 = vmul.f32 %v3001, %v3564
    %v3580 = vmul.f32 %v3002, %v3570
    %v3581 = vmul.f32 %v3003, %v3576
    %v3582 = vadd.f32 %v3579, %v3580
    %v3583 = vsel %vm1815, %v3581, 0.0
    %v3584 = vadd.f32 %v3582, %v3583
    %v3585 = vrot.slane %v3584, 4
    %v3586 = vadd.f32 %v3584, %v3585
    %v3587 = vrot.slane %v3586, 2
    %v3588 = vadd.f32 %v3586, %v3587
    %v3589 = vrot.slane %v3588, 1
    %v3590 = vadd.f32 %v3588, %v3589
    %vm3591 = vcmask 1040384
    %v3592 = vsel %vm3591, %v2388, %v2989
    %v3593 = vsel %vm618, %v3592, %v3590
    %vm3594 = vcmask 1042432
    %v3595 = vsel %vm3594, %v3593, 0.0
    %3596 = vst [vmem:[#allocation2] sm:$0xff] %v3595
    // Predicated region
    $region22: #{tpu_custom_call.1} parent=1 // pred_check
      _
    $region23: #{tpu_custom_call.1} parent=1 // pred_check_branch
      %3598 = sbr.rel (0) target = $region25
    $region24: #{tpu_custom_call.1} parent=1 // pred_region
      %s3600 = ssub.s32 128, 128
      %3601 = vsyncadd [#allocation3], %s3600
      %s3603 = sshll.u32 [#allocation2], 4
      %s3604 = int_to_ptr.vmem [resolvable:$true] %s3603
      %3606 = dma.vmem_to_hbm [thread:$0]  %s3604, 128, %s5, [#allocation3]
    $region25: #{tpu_custom_call.1} parent=1 // pred_fallthru
      _
    // Predicated region
    $region26: #{tpu_custom_call.1} parent=1 // pred_check
      _
    $region27: #{tpu_custom_call.1} parent=1 // pred_check_branch
      %3608 = sbr.rel (0) target = $region29
    $region28: #{tpu_custom_call.1} parent=1 // pred_region
      %3609 = dma.done [#allocation3], 128
    $region29: #{tpu_custom_call.1} parent=1 // pred_fallthru
      _
    %3610 = vsyncpa [#allocation3], 1

</llo_original>
